<compile_context>
chip_gen: v7x
topology: tpu7x:2x2x1
jax: 0.10.0
libtpu: 0.0.40
codegen_flags: <defaults>
</compile_context>

<pallas_src>
import functools

import jax
import jax.numpy as jnp
from jax.experimental import pallas as pl
from jax.experimental.pallas import tpu as pltpu


# ----------------------------------------------------------------------------
# Pallas kernels
# ----------------------------------------------------------------------------
def _full_spec(shape):
    nd = len(shape)
    return pl.BlockSpec(shape, lambda: (0,) * nd)


def _root_init_kernel(H, feat_ref, wfc_ref, bfc_ref, wih_a_ref, b_a_ref,
                      wa_ref, ba_ref, bf_ref, h_ref):
    """Fused: fc_embed -> cell_a (h_prev=c_prev=0) -> tanh(linear_a(h_a)+linear_f(0))."""
    fc = (jnp.dot(feat_ref[...], wfc_ref[...], preferred_element_type=jnp.float32)
          + bfc_ref[...])
    # h_prev == 0 so h_prev @ Whh vanishes; b already holds b_ih + b_hh.
    gates = (jnp.dot(fc, wih_a_ref[...], preferred_element_type=jnp.float32)
             + b_a_ref[...])
    i = jax.nn.sigmoid(gates[:, 0:H])
    g = jnp.tanh(gates[:, 2 * H:3 * H])
    o = jax.nn.sigmoid(gates[:, 3 * H:4 * H])
    c_new = i * g                              # f * c_prev == 0
    h_a = o * jnp.tanh(c_new)
    h_ref[...] = jnp.tanh(
        jnp.dot(h_a, wa_ref[...], preferred_element_type=jnp.float32)
        + ba_ref[...] + bf_ref[...])           # linear_f(0) == bias_f


def _cell_a_h_kernel(H, xh_ref, c_ref, w_ref, b_ref, h_ref):
    """PyTorch LSTMCell, single stacked-weight matmul; only h is emitted."""
    gates = (jnp.dot(xh_ref[...], w_ref[...], preferred_element_type=jnp.float32)
             + b_ref[...])
    i = jax.nn.sigmoid(gates[:, 0:H])
    f = jax.nn.sigmoid(gates[:, H:2 * H])
    g = jnp.tanh(gates[:, 2 * H:3 * H])
    o = jax.nn.sigmoid(gates[:, 3 * H:4 * H])
    c_new = f * c_ref[...] + i * g
    h_ref[...] = o * jnp.tanh(c_new)           # c_a is never consumed downstream


def _node_with_brother_kernel(H, ha_ref, xh_f_ref, cf_ref, wcf_ref, bcf_ref,
                              wa_ref, wf_ref, ba_ref, bf_ref, h_ref, cf_out_ref):
    """Fused: cell_f on the left brother + tanh(linear_a(h_a) + linear_f(h_f))."""
    gates = (jnp.dot(xh_f_ref[...], wcf_ref[...], preferred_element_type=jnp.float32)
             + bcf_ref[...])
    i = jax.nn.sigmoid(gates[:, 0:H])
    f = jax.nn.sigmoid(gates[:, H:2 * H])
    g = jnp.tanh(gates[:, 2 * H:3 * H])
    o = jax.nn.sigmoid(gates[:, 3 * H:4 * H])
    c_new = f * cf_ref[...] + i * g
    h_f = o * jnp.tanh(c_new)
    h_ref[...] = jnp.tanh(
        jnp.dot(ha_ref[...], wa_ref[...], preferred_element_type=jnp.float32)
        + ba_ref[...]
        + jnp.dot(h_f, wf_ref[...], preferred_element_type=jnp.float32)
        + bf_ref[...])
    cf_out_ref[...] = c_new


def _node_no_brother_kernel(ha_ref, wa_ref, ba_ref, bf_ref, h_ref):
    """h_f == 0 -> linear_f(h_f) == bias_f."""
    h_ref[...] = jnp.tanh(
        jnp.dot(ha_ref[...], wa_ref[...], preferred_element_type=jnp.float32)
        + ba_ref[...] + bf_ref[...])


def _tiled_linear_kernel(x_ref, w_ref, b_ref, o_ref, acc_ref):
    @pl.when(pl.program_id(2) == 0)
    def _():
        acc_ref[...] = jnp.zeros_like(acc_ref)

    acc_ref[...] += jnp.dot(x_ref[...], w_ref[...],
                            preferred_element_type=jnp.float32)

    @pl.when(pl.program_id(2) == pl.num_programs(2) - 1)
    def _():
        o_ref[...] = (acc_ref[...] + b_ref[...]).astype(o_ref.dtype)


# ----------------------------------------------------------------------------
# Pallas wrappers
# ----------------------------------------------------------------------------
def pallas_root_init(feature, params):
    B = feature.shape[0]
    H = params["linear_a_b"].shape[1]
    args = (feature, params["fc_embed_wT"], params["fc_embed_b"],
            params["cell_a"]["wih_t"], params["cell_a"]["b"],
            params["linear_a_wT"], params["linear_a_b"], params["linear_f_b"])
    return pl.pallas_call(
        functools.partial(_root_init_kernel, H),
        out_shape=jax.ShapeDtypeStruct((B, H), jnp.float32),
        in_specs=[_full_spec(a.shape) for a in args],
        out_specs=_full_spec((B, H)),
    )(*args)


def pallas_cell_a_h(x, h_prev, c_prev, cell):
    B, H = h_prev.shape
    xh = jnp.concatenate([x, h_prev], axis=-1)         # fused by XLA under jit
    args = (xh, c_prev, cell["w_t"], cell["b"])
    return pl.pallas_call(
        functools.partial(_cell_a_h_kernel, H),
        out_shape=jax.ShapeDtypeStruct((B, H), jnp.float32),
        in_specs=[_full_spec(a.shape) for a in args],
        out_specs=_full_spec((B, H)),
    )(*args)


def pallas_node_with_brother(h_a, x_f, h_f_prev, c_f_prev, params):
    B, H = h_a.shape
    cell = params["cell_f"]
    xh_f = jnp.concatenate([x_f, h_f_prev], axis=-1)
    args = (h_a, xh_f, c_f_prev, cell["w_t"], cell["b"],
            params["linear_a_wT"], params["linear_f_wT"],
            params["linear_a_b"], params["linear_f_b"])
    h, c_f = pl.pallas_call(
        functools.partial(_node_with_brother_kernel, H),
        out_shape=(jax.ShapeDtypeStruct((B, H), jnp.float32),
                   jax.ShapeDtypeStruct((B, H), jnp.float32)),
        in_specs=[_full_spec(a.shape) for a in args],
        out_specs=(_full_spec((B, H)), _full_spec((B, H))),
    )(*args)
    return h, c_f


def pallas_node_no_brother(h_a, params):
    B, H = h_a.shape
    args = (h_a, params["linear_a_wT"], params["linear_a_b"], params["linear_f_b"])
    return pl.pallas_call(
        _node_no_brother_kernel,
        out_shape=jax.ShapeDtypeStruct((B, H), jnp.float32),
        in_specs=[_full_spec(a.shape) for a in args],
        out_specs=_full_spec((B, H)),
    )(*args)


def pallas_logit(x, w_t, b, *, tn=128, tk=128):
    """Tiled y = x @ w_t + b with f32 VMEM accumulator (grid over rows/vocab/K)."""
    M, K = x.shape
    N = w_t.shape[1]
    tm = M                                   # row count is tiny; keep full rows
    tn = min(tn, N)
    tk = min(tk, K)
    grid = (pl.cdiv(M, tm), pl.cdiv(N, tn), pl.cdiv(K, tk))
    return pl.pallas_call(
        _tiled_linear_kernel,
        out_shape=jax.ShapeDtypeStruct((M, N), jnp.float32),
        grid_spec=pltpu.PrefetchScalarGridSpec(
            num_scalar_prefetch=0,
            grid=grid,
            in_specs=[
                pl.BlockSpec((tm, tk), lambda i, j, k: (i, k)),
                pl.BlockSpec((tk, tn), lambda i, j, k: (k, j)),
                pl.BlockSpec((1, tn), lambda i, j, k: (0, j)),
            ],
            out_specs=pl.BlockSpec((tm, tn), lambda i, j, k: (i, j)),
            scratch_shapes=[pltpu.VMEM((tm, tn), jnp.float32)],
        ),
        compiler_params=pltpu.CompilerParams(
            dimension_semantics=("parallel", "parallel", "arbitrary")),
    )(x, w_t, b)


# ----------------------------------------------------------------------------
# Tree data structure (pure Python glue, mirrors the PyTorch Tree/Node usage)
# ----------------------------------------------------------------------------
class TreeNode:
    def __init__(self, idx, word_idx):
        self.idx = idx
        self.word_idx = word_idx          # jnp int32 array of shape (B,)
        self.parent = None
        self.left_brother = None
        self.lc = None
        self.mc = None
        self.rc = None


class Tree:
    def __init__(self):
        self.root = None
        self.nodes = {}                   # insertion-ordered dict


def build_example_tree(batch, vocab_size):
    """Deterministic small tree: root, 3 children, 2 grandchildren (6 nodes)."""
    def widx(k):
        return jnp.asarray(
            [(k * 7 + b * 3 + 1) % vocab_size for b in range(batch)],
            dtype=jnp.int32,
        )

    tree = Tree()
    nodes = [TreeNode(i, widx(i)) for i in range(6)]
    root, n1, n2, n3, n4, n5 = nodes

    root.lc, root.mc, root.rc = n1, n2, n3
    for n in (n1, n2, n3):
        n.parent = root
    n2.left_brother = n1
    n3.left_brother = n2

    n1.lc, n1.mc = n4, n5
    n4.parent = n1
    n5.parent = n1
    n5.left_brother = n4

    tree.root = root
    for n in nodes:
        tree.nodes[n.idx] = n
    return tree


def extract_topology(tree):
    """DFS pre-order processing list of (node_pos, parent_pos, left_brother_pos).

    Positions index into tree.nodes insertion order (the stacking order used for
    the output / target, exactly like tree.nodes.values() in the reference).
    """
    pos = {nid: i for i, nid in enumerate(tree.nodes.keys())}
    proc = []

    def dfs(node):
        if node is None:
            return
        p = pos[node.parent.idx] if node.parent is not None else -1
        lb = pos[node.left_brother.idx] if node.left_brother is not None else -1
        proc.append((pos[node.idx], p, lb))
        for child in (node.lc, node.mc, node.rc):
            dfs(child)

    dfs(tree.root)
    return tuple(proc)


# ----------------------------------------------------------------------------
# TreeModel1 forward (matches the PyTorch semantics), fully jitted
# ----------------------------------------------------------------------------
def make_tree_forward(topology, hidden_size):
    n_nodes = len(topology)

    @jax.jit
    def fwd(params, feature, word_idx):
        # feature: (B, fc_feat)   word_idx: (n_nodes, B) int32 (insertion order)
        B = feature.shape[0]
        H = hidden_size
        zeros_c = jnp.zeros((B, H), jnp.float32)

        node_h = [None] * n_nodes
        node_c = [None] * n_nodes
        node_emb = [None] * n_nodes
        cell_a_cache = {}        # parent pos -> h_a (shared by all siblings)

        for (idx, parent, lbro) in topology:
            if parent < 0:
                # root: fc_embed + cell_a(zeros) + node_h fused in one kernel
                h = pallas_root_init(feature, params)
                c_f = zeros_c
            else:
                if parent not in cell_a_cache:
                    cell_a_cache[parent] = pallas_cell_a_h(
                        node_emb[parent], node_h[parent], node_c[parent],
                        params["cell_a"])
                h_a = cell_a_cache[parent]
                if lbro >= 0:
                    h, c_f = pallas_node_with_brother(
                        h_a, node_emb[lbro], node_h[lbro], node_c[lbro], params)
                else:
                    h = pallas_node_no_brother(h_a, params)
                    c_f = zeros_c
            node_h[idx] = h
            node_c[idx] = c_f
            # TODO(synk): for large vocab/embed, fold this gather into the node
            # kernel via PrefetchScalarGridSpec + pl.Element row gather.
            node_emb[idx] = jnp.take(params["embed"], word_idx[idx], axis=0)

        states = jnp.stack(node_h, axis=1)                 # (B, N, H)
        flat_states = states.reshape(B * n_nodes, H)
        output = pallas_logit(flat_states, params["logit_wT"], params["logit_b"])
        target = jnp.transpose(word_idx, (1, 0)).reshape(-1)   # (B*N,)
        return output, target

    return fwd


# ----------------------------------------------------------------------------
# Deterministic parameter init (shapes follow TreeModel1.__init__)
# ----------------------------------------------------------------------------
def init_params(key, fc_feat_size, embed_size, hidden_size, vocab_size):
    ks = jax.random.split(key, 16)

    def u(k, shape, fan_in):
        bound = 1.0 / float(fan_in) ** 0.5
        return jax.random.uniform(k, shape, jnp.float32, -bound, bound)

    def lstm(k1, k2, k3, in_size, hid):
        wih_t = u(k1, (in_size, 4 * hid), hid)   # W_ih^T  (E, 4H)
        whh_t = u(k2, (hid, 4 * hid), hid)       # W_hh^T  (H, 4H)
        return {
            "wih_t": wih_t,
            "w_t": jnp.concatenate([wih_t, whh_t], axis=0),   # [Wih; Whh]  (E+H, 4H)
            "b": u(k3, (1, 4 * hid), hid),                    # b_ih + b_hh combined
        }

    return {
        "fc_embed_wT": u(ks[0], (fc_feat_size, embed_size), fc_feat_size),
        "fc_embed_b": u(ks[1], (1, embed_size), fc_feat_size),
        "embed": u(ks[2], (vocab_size, embed_size), embed_size),
        "cell_a": lstm(ks[3], ks[4], ks[5], embed_size, hidden_size),
        "cell_f": lstm(ks[6], ks[7], ks[8], embed_size, hidden_size),
        "linear_a_wT": u(ks[9], (hidden_size, hidden_size), hidden_size),
        "linear_a_b": u(ks[10], (1, hidden_size), hidden_size),
        "linear_f_wT": u(ks[11], (hidden_size, hidden_size), hidden_size),
        "linear_f_b": u(ks[12], (1, hidden_size), hidden_size),
        "logit_wT": u(ks[13], (hidden_size, vocab_size), hidden_size),
        "logit_b": u(ks[14], (1, vocab_size), hidden_size),
    }


if __name__ == "__main__":
    # (8,128)-tile aligned small shapes: batch -> sublanes, features -> lanes.
    BATCH = 8
    FC_FEAT = 128
    EMBED = 128
    HIDDEN = 128
    VOCAB = 256

    key = jax.random.PRNGKey(0)
    k_param, k_feat = jax.random.split(key)

    params = init_params(k_param, FC_FEAT, EMBED, HIDDEN, VOCAB)
    feature = jax.random.normal(k_feat, (BATCH, FC_FEAT), jnp.float32)

    tree = build_example_tree(BATCH, VOCAB)
    topology = extract_topology(tree)
    word_idx = jnp.stack([n.word_idx for n in tree.nodes.values()], axis=0)  # (N, B)

    forward = make_tree_forward(topology, HIDDEN)
    output, target = forward(params, feature, word_idx)
    output = jax.block_until_ready(output)
    target = jax.block_until_ready(target)

    n_nodes = len(tree.nodes)
    assert output.shape == (BATCH * n_nodes, VOCAB), output.shape
    assert target.shape == (BATCH * n_nodes,), target.shape
    assert bool(jnp.all(jnp.isfinite(output)))

    print("KERNEL_OK")
</pallas_src>

<mosaic_0001>
module attributes {stable_mosaic.version = 11 : i64} {
  func.func @_root_init_kernel(%arg0: memref<8x128xf32, #tpu.memory_space<vmem>>, %arg1: memref<128x128xf32, #tpu.memory_space<vmem>>, %arg2: memref<1x128xf32, #tpu.memory_space<vmem>>, %arg3: memref<128x512xf32, #tpu.memory_space<vmem>>, %arg4: memref<1x512xf32, #tpu.memory_space<vmem>>, %arg5: memref<128x128xf32, #tpu.memory_space<vmem>>, %arg6: memref<1x128xf32, #tpu.memory_space<vmem>>, %arg7: memref<1x128xf32, #tpu.memory_space<vmem>>, %arg8: memref<8x128xf32, #tpu.memory_space<vmem>>) attributes {dimension_semantics = [], scalar_prefetch = 0 : i64, scratch_operands = 0 : i64, tpu.core_type = #tpu.core_type<tc>} {
    %c0 = arith.constant 0 : index
    %c0_0 = arith.constant 0 : index
    %0 = vector.load %arg0[%c0, %c0_0] : memref<8x128xf32, #tpu.memory_space<vmem>>, vector<8x128xf32>
    %c0_1 = arith.constant 0 : index
    %c0_2 = arith.constant 0 : index
    %1 = vector.load %arg1[%c0_1, %c0_2] : memref<128x128xf32, #tpu.memory_space<vmem>>, vector<128x128xf32>
    %cst = arith.constant dense<0.000000e+00> : vector<8x128xf32>
    %2 = tpu.matmul %0, %1, %cst {dimension_numbers = #tpu.dot_dimension_numbers<[1], [0], [0], [1], [0, 0, 1, 1], [], []>} : vector<8x128xf32>, vector<128x128xf32>, vector<8x128xf32> -> vector<8x128xf32>
    %c0_3 = arith.constant 0 : index
    %c0_4 = arith.constant 0 : index
    %3 = vector.load %arg2[%c0_3, %c0_4] : memref<1x128xf32, #tpu.memory_space<vmem>>, vector<1x128xf32>
    %4 = vector.broadcast %3 : vector<1x128xf32> to vector<8x128xf32>
    %5 = arith.addf %2, %4 : vector<8x128xf32>
    %c0_5 = arith.constant 0 : index
    %c0_6 = arith.constant 0 : index
    %6 = vector.load %arg3[%c0_5, %c0_6] : memref<128x512xf32, #tpu.memory_space<vmem>>, vector<128x512xf32>
    %cst_7 = arith.constant dense<0.000000e+00> : vector<8x512xf32>
    %7 = tpu.matmul %5, %6, %cst_7 {dimension_numbers = #tpu.dot_dimension_numbers<[1], [0], [0], [1], [0, 0, 1, 1], [], []>} : vector<8x128xf32>, vector<128x512xf32>, vector<8x512xf32> -> vector<8x512xf32>
    %c0_8 = arith.constant 0 : index
    %c0_9 = arith.constant 0 : index
    %8 = vector.load %arg4[%c0_8, %c0_9] : memref<1x512xf32, #tpu.memory_space<vmem>>, vector<1x512xf32>
    %9 = vector.broadcast %8 : vector<1x512xf32> to vector<8x512xf32>
    %10 = arith.addf %7, %9 : vector<8x512xf32>
    %11 = vector.extract_strided_slice %10 {offsets = [0, 0], sizes = [8, 128], strides = [1, 1]} : vector<8x512xf32> to vector<8x128xf32>
    %12 = arith.negf %11 : vector<8x128xf32>
    %13 = math.exp %12 : vector<8x128xf32>
    %cst_10 = arith.constant 1.000000e+00 : f32
    %14 = vector.broadcast %cst_10 : f32 to vector<8x128xf32>
    %15 = arith.addf %14, %13 : vector<8x128xf32>
    %16 = arith.divf %14, %15 : vector<8x128xf32>
    %17 = vector.extract_strided_slice %10 {offsets = [0, 256], sizes = [8, 128], strides = [1, 1]} : vector<8x512xf32> to vector<8x128xf32>
    %18 = math.tanh %17 : vector<8x128xf32>
    %19 = vector.extract_strided_slice %10 {offsets = [0, 384], sizes = [8, 128], strides = [1, 1]} : vector<8x512xf32> to vector<8x128xf32>
    %20 = arith.negf %19 : vector<8x128xf32>
    %21 = math.exp %20 : vector<8x128xf32>
    %cst_11 = arith.constant 1.000000e+00 : f32
    %22 = vector.broadcast %cst_11 : f32 to vector<8x128xf32>
    %23 = arith.addf %22, %21 : vector<8x128xf32>
    %24 = arith.divf %22, %23 : vector<8x128xf32>
    %25 = arith.mulf %16, %18 : vector<8x128xf32>
    %26 = math.tanh %25 : vector<8x128xf32>
    %27 = arith.mulf %24, %26 : vector<8x128xf32>
    %c0_12 = arith.constant 0 : index
    %c0_13 = arith.constant 0 : index
    %28 = vector.load %arg5[%c0_12, %c0_13] : memref<128x128xf32, #tpu.memory_space<vmem>>, vector<128x128xf32>
    %cst_14 = arith.constant dense<0.000000e+00> : vector<8x128xf32>
    %29 = tpu.matmul %27, %28, %cst_14 {dimension_numbers = #tpu.dot_dimension_numbers<[1], [0], [0], [1], [0, 0, 1, 1], [], []>} : vector<8x128xf32>, vector<128x128xf32>, vector<8x128xf32> -> vector<8x128xf32>
    %c0_15 = arith.constant 0 : index
    %c0_16 = arith.constant 0 : index
    %30 = vector.load %arg6[%c0_15, %c0_16] : memref<1x128xf32, #tpu.memory_space<vmem>>, vector<1x128xf32>
    %31 = vector.broadcast %30 : vector<1x128xf32> to vector<8x128xf32>
    %32 = arith.addf %29, %31 : vector<8x128xf32>
    %c0_17 = arith.constant 0 : index
    %c0_18 = arith.constant 0 : index
    %33 = vector.load %arg7[%c0_17, %c0_18] : memref<1x128xf32, #tpu.memory_space<vmem>>, vector<1x128xf32>
    %34 = vector.broadcast %33 : vector<1x128xf32> to vector<8x128xf32>
    %35 = arith.addf %32, %34 : vector<8x128xf32>
    %36 = math.tanh %35 : vector<8x128xf32>
    %c0_19 = arith.constant 0 : index
    %c0_20 = arith.constant 0 : index
    %37 = vector.load %arg8[%c0_19, %c0_20] : memref<8x128xf32, #tpu.memory_space<vmem>>, vector<8x128xf32>
    tpu.vector_store %arg8[%c0_19, %c0_20], %36 {strides = array<i32>} : memref<8x128xf32, #tpu.memory_space<vmem>>, vector<8x128xf32>,
    return
  }
}

module attributes {stable_mosaic.version = 11 : i64} {
  func.func @_cell_a_h_kernel(%arg0: memref<8x256xf32, #tpu.memory_space<vmem>>, %arg1: memref<8x128xf32, #tpu.memory_space<vmem>>, %arg2: memref<256x512xf32, #tpu.memory_space<vmem>>, %arg3: memref<1x512xf32, #tpu.memory_space<vmem>>, %arg4: memref<8x128xf32, #tpu.memory_space<vmem>>) attributes {dimension_semantics = [], scalar_prefetch = 0 : i64, scratch_operands = 0 : i64, tpu.core_type = #tpu.core_type<tc>} {
    %c0 = arith.constant 0 : index
    %c0_0 = arith.constant 0 : index
    %0 = vector.load %arg0[%c0, %c0_0] : memref<8x256xf32, #tpu.memory_space<vmem>>, vector<8x256xf32>
    %c0_1 = arith.constant 0 : index
    %c0_2 = arith.constant 0 : index
    %1 = vector.load %arg2[%c0_1, %c0_2] : memref<256x512xf32, #tpu.memory_space<vmem>>, vector<256x512xf32>
    %cst = arith.constant dense<0.000000e+00> : vector<8x512xf32>
    %2 = tpu.matmul %0, %1, %cst {dimension_numbers = #tpu.dot_dimension_numbers<[1], [0], [0], [1], [0, 0, 1, 1], [], []>} : vector<8x256xf32>, vector<256x512xf32>, vector<8x512xf32> -> vector<8x512xf32>
    %c0_3 = arith.constant 0 : index
    %c0_4 = arith.constant 0 : index
    %3 = vector.load %arg3[%c0_3, %c0_4] : memref<1x512xf32, #tpu.memory_space<vmem>>, vector<1x512xf32>
    %4 = vector.broadcast %3 : vector<1x512xf32> to vector<8x512xf32>
    %5 = arith.addf %2, %4 : vector<8x512xf32>
    %6 = vector.extract_strided_slice %5 {offsets = [0, 0], sizes = [8, 128], strides = [1, 1]} : vector<8x512xf32> to vector<8x128xf32>
    %7 = arith.negf %6 : vector<8x128xf32>
    %8 = math.exp %7 : vector<8x128xf32>
    %cst_5 = arith.constant 1.000000e+00 : f32
    %9 = vector.broadcast %cst_5 : f32 to vector<8x128xf32>
    %10 = arith.addf %9, %8 : vector<8x128xf32>
    %11 = arith.divf %9, %10 : vector<8x128xf32>
    %12 = vector.extract_strided_slice %5 {offsets = [0, 128], sizes = [8, 128], strides = [1, 1]} : vector<8x512xf32> to vector<8x128xf32>
    %13 = arith.negf %12 : vector<8x128xf32>
    %14 = math.exp %13 : vector<8x128xf32>
    %cst_6 = arith.constant 1.000000e+00 : f32
    %15 = vector.broadcast %cst_6 : f32 to vector<8x128xf32>
    %16 = arith.addf %15, %14 : vector<8x128xf32>
    %17 = arith.divf %15, %16 : vector<8x128xf32>
    %18 = vector.extract_strided_slice %5 {offsets = [0, 256], sizes = [8, 128], strides = [1, 1]} : vector<8x512xf32> to vector<8x128xf32>
    %19 = math.tanh %18 : vector<8x128xf32>
    %20 = vector.extract_strided_slice %5 {offsets = [0, 384], sizes = [8, 128], strides = [1, 1]} : vector<8x512xf32> to vector<8x128xf32>
    %21 = arith.negf %20 : vector<8x128xf32>
    %22 = math.exp %21 : vector<8x128xf32>
    %cst_7 = arith.constant 1.000000e+00 : f32
    %23 = vector.broadcast %cst_7 : f32 to vector<8x128xf32>
    %24 = arith.addf %23, %22 : vector<8x128xf32>
    %25 = arith.divf %23, %24 : vector<8x128xf32>
    %c0_8 = arith.constant 0 : index
    %c0_9 = arith.constant 0 : index
    %26 = vector.load %arg1[%c0_8, %c0_9] : memref<8x128xf32, #tpu.memory_space<vmem>>, vector<8x128xf32>
    %27 = arith.mulf %17, %26 : vector<8x128xf32>
    %28 = arith.mulf %11, %19 : vector<8x128xf32>
    %29 = arith.addf %27, %28 : vector<8x128xf32>
    %30 = math.tanh %29 : vector<8x128xf32>
    %31 = arith.mulf %25, %30 : vector<8x128xf32>
    %c0_10 = arith.constant 0 : index
    %c0_11 = arith.constant 0 : index
    %32 = vector.load %arg4[%c0_10, %c0_11] : memref<8x128xf32, #tpu.memory_space<vmem>>, vector<8x128xf32>
    tpu.vector_store %arg4[%c0_10, %c0_11], %31 {strides = array<i32>} : memref<8x128xf32, #tpu.memory_space<vmem>>, vector<8x128xf32>,
    return
  }
}

module attributes {stable_mosaic.version = 11 : i64} {
  func.func @_node_no_brother_kernel(%arg0: memref<8x128xf32, #tpu.memory_space<vmem>>, %arg1: memref<128x128xf32, #tpu.memory_space<vmem>>, %arg2: memref<1x128xf32, #tpu.memory_space<vmem>>, %arg3: memref<1x128xf32, #tpu.memory_space<vmem>>, %arg4: memref<8x128xf32, #tpu.memory_space<vmem>>) attributes {dimension_semantics = [], scalar_prefetch = 0 : i64, scratch_operands = 0 : i64, tpu.core_type = #tpu.core_type<tc>} {
    %c0 = arith.constant 0 : index
    %c0_0 = arith.constant 0 : index
    %0 = vector.load %arg0[%c0, %c0_0] : memref<8x128xf32, #tpu.memory_space<vmem>>, vector<8x128xf32>
    %c0_1 = arith.constant 0 : index
    %c0_2 = arith.constant 0 : index
    %1 = vector.load %arg1[%c0_1, %c0_2] : memref<128x128xf32, #tpu.memory_space<vmem>>, vector<128x128xf32>
    %cst = arith.constant dense<0.000000e+00> : vector<8x128xf32>
    %2 = tpu.matmul %0, %1, %cst {dimension_numbers = #tpu.dot_dimension_numbers<[1], [0], [0], [1], [0, 0, 1, 1], [], []>} : vector<8x128xf32>, vector<128x128xf32>, vector<8x128xf32> -> vector<8x128xf32>
    %c0_3 = arith.constant 0 : index
    %c0_4 = arith.constant 0 : index
    %3 = vector.load %arg2[%c0_3, %c0_4] : memref<1x128xf32, #tpu.memory_space<vmem>>, vector<1x128xf32>
    %4 = vector.broadcast %3 : vector<1x128xf32> to vector<8x128xf32>
    %5 = arith.addf %2, %4 : vector<8x128xf32>
    %c0_5 = arith.constant 0 : index
    %c0_6 = arith.constant 0 : index
    %6 = vector.load %arg3[%c0_5, %c0_6] : memref<1x128xf32, #tpu.memory_space<vmem>>, vector<1x128xf32>
    %7 = vector.broadcast %6 : vector<1x128xf32> to vector<8x128xf32>
    %8 = arith.addf %5, %7 : vector<8x128xf32>
    %9 = math.tanh %8 : vector<8x128xf32>
    %c0_7 = arith.constant 0 : index
    %c0_8 = arith.constant 0 : index
    %10 = vector.load %arg4[%c0_7, %c0_8] : memref<8x128xf32, #tpu.memory_space<vmem>>, vector<8x128xf32>
    tpu.vector_store %arg4[%c0_7, %c0_8], %9 {strides = array<i32>} : memref<8x128xf32, #tpu.memory_space<vmem>>, vector<8x128xf32>,
    return
  }
}

module attributes {stable_mosaic.version = 11 : i64} {
  func.func @_node_with_brother_kernel(%arg0: memref<8x128xf32, #tpu.memory_space<vmem>>, %arg1: memref<8x256xf32, #tpu.memory_space<vmem>>, %arg2: memref<8x128xf32, #tpu.memory_space<vmem>>, %arg3: memref<256x512xf32, #tpu.memory_space<vmem>>, %arg4: memref<1x512xf32, #tpu.memory_space<vmem>>, %arg5: memref<128x128xf32, #tpu.memory_space<vmem>>, %arg6: memref<128x128xf32, #tpu.memory_space<vmem>>, %arg7: memref<1x128xf32, #tpu.memory_space<vmem>>, %arg8: memref<1x128xf32, #tpu.memory_space<vmem>>, %arg9: memref<8x128xf32, #tpu.memory_space<vmem>>, %arg10: memref<8x128xf32, #tpu.memory_space<vmem>>) attributes {dimension_semantics = [], scalar_prefetch = 0 : i64, scratch_operands = 0 : i64, tpu.core_type = #tpu.core_type<tc>} {
    %c0 = arith.constant 0 : index
    %c0_0 = arith.constant 0 : index
    %0 = vector.load %arg1[%c0, %c0_0] : memref<8x256xf32, #tpu.memory_space<vmem>>, vector<8x256xf32>
    %c0_1 = arith.constant 0 : index
    %c0_2 = arith.constant 0 : index
    %1 = vector.load %arg3[%c0_1, %c0_2] : memref<256x512xf32, #tpu.memory_space<vmem>>, vector<256x512xf32>
    %cst = arith.constant dense<0.000000e+00> : vector<8x512xf32>
    %2 = tpu.matmul %0, %1, %cst {dimension_numbers = #tpu.dot_dimension_numbers<[1], [0], [0], [1], [0, 0, 1, 1], [], []>} : vector<8x256xf32>, vector<256x512xf32>, vector<8x512xf32> -> vector<8x512xf32>
    %c0_3 = arith.constant 0 : index
    %c0_4 = arith.constant 0 : index
    %3 = vector.load %arg4[%c0_3, %c0_4] : memref<1x512xf32, #tpu.memory_space<vmem>>, vector<1x512xf32>
    %4 = vector.broadcast %3 : vector<1x512xf32> to vector<8x512xf32>
    %5 = arith.addf %2, %4 : vector<8x512xf32>
    %6 = vector.extract_strided_slice %5 {offsets = [0, 0], sizes = [8, 128], strides = [1, 1]} : vector<8x512xf32> to vector<8x128xf32>
    %7 = arith.negf %6 : vector<8x128xf32>
    %8 = math.exp %7 : vector<8x128xf32>
    %cst_5 = arith.constant 1.000000e+00 : f32
    %9 = vector.broadcast %cst_5 : f32 to vector<8x128xf32>
    %10 = arith.addf %9, %8 : vector<8x128xf32>
    %11 = arith.divf %9, %10 : vector<8x128xf32>
    %12 = vector.extract_strided_slice %5 {offsets = [0, 128], sizes = [8, 128], strides = [1, 1]} : vector<8x512xf32> to vector<8x128xf32>
    %13 = arith.negf %12 : vector<8x128xf32>
    %14 = math.exp %13 : vector<8x128xf32>
    %cst_6 = arith.constant 1.000000e+00 : f32
    %15 = vector.broadcast %cst_6 : f32 to vector<8x128xf32>
    %16 = arith.addf %15, %14 : vector<8x128xf32>
    %17 = arith.divf %15, %16 : vector<8x128xf32>
    %18 = vector.extract_strided_slice %5 {offsets = [0, 256], sizes = [8, 128], strides = [1, 1]} : vector<8x512xf32> to vector<8x128xf32>
    %19 = math.tanh %18 : vector<8x128xf32>
    %20 = vector.extract_strided_slice %5 {offsets = [0, 384], sizes = [8, 128], strides = [1, 1]} : vector<8x512xf32> to vector<8x128xf32>
    %21 = arith.negf %20 : vector<8x128xf32>
    %22 = math.exp %21 : vector<8x128xf32>
    %cst_7 = arith.constant 1.000000e+00 : f32
    %23 = vector.broadcast %cst_7 : f32 to vector<8x128xf32>
    %24 = arith.addf %23, %22 : vector<8x128xf32>
    %25 = arith.divf %23, %24 : vector<8x128xf32>
    %c0_8 = arith.constant 0 : index
    %c0_9 = arith.constant 0 : index
    %26 = vector.load %arg2[%c0_8, %c0_9] : memref<8x128xf32, #tpu.memory_space<vmem>>, vector<8x128xf32>
    %27 = arith.mulf %17, %26 : vector<8x128xf32>
    %28 = arith.mulf %11, %19 : vector<8x128xf32>
    %29 = arith.addf %27, %28 : vector<8x128xf32>
    %30 = math.tanh %29 : vector<8x128xf32>
    %31 = arith.mulf %25, %30 : vector<8x128xf32>
    %c0_10 = arith.constant 0 : index
    %c0_11 = arith.constant 0 : index
    %32 = vector.load %arg0[%c0_10, %c0_11] : memref<8x128xf32, #tpu.memory_space<vmem>>, vector<8x128xf32>
    %c0_12 = arith.constant 0 : index
    %c0_13 = arith.constant 0 : index
    %33 = vector.load %arg5[%c0_12, %c0_13] : memref<128x128xf32, #tpu.memory_space<vmem>>, vector<128x128xf32>
    %cst_14 = arith.constant dense<0.000000e+00> : vector<8x128xf32>
    %34 = tpu.matmul %32, %33, %cst_14 {dimension_numbers = #tpu.dot_dimension_numbers<[1], [0], [0], [1], [0, 0, 1, 1], [], []>} : vector<8x128xf32>, vector<128x128xf32>, vector<8x128xf32> -> vector<8x128xf32>
    %c0_15 = arith.constant 0 : index
    %c0_16 = arith.constant 0 : index
    %35 = vector.load %arg7[%c0_15, %c0_16] : memref<1x128xf32, #tpu.memory_space<vmem>>, vector<1x128xf32>
    %36 = vector.broadcast %35 : vector<1x128xf32> to vector<8x128xf32>
    %37 = arith.addf %34, %36 : vector<8x128xf32>
    %c0_17 = arith.constant 0 : index
    %c0_18 = arith.constant 0 : index
    %38 = vector.load %arg6[%c0_17, %c0_18] : memref<128x128xf32, #tpu.memory_space<vmem>>, vector<128x128xf32>
    %cst_19 = arith.constant dense<0.000000e+00> : vector<8x128xf32>
    %39 = tpu.matmul %31, %38, %cst_19 {dimension_numbers = #tpu.dot_dimension_numbers<[1], [0], [0], [1], [0, 0, 1, 1], [], []>} : vector<8x128xf32>, vector<128x128xf32>, vector<8x128xf32> -> vector<8x128xf32>
    %40 = arith.addf %37, %39 : vector<8x128xf32>
    %c0_20 = arith.constant 0 : index
    %c0_21 = arith.constant 0 : index
    %41 = vector.load %arg8[%c0_20, %c0_21] : memref<1x128xf32, #tpu.memory_space<vmem>>, vector<1x128xf32>
    %42 = vector.broadcast %41 : vector<1x128xf32> to vector<8x128xf32>
    %43 = arith.addf %40, %42 : vector<8x128xf32>
    %44 = math.tanh %43 : vector<8x128xf32>
    %c0_22 = arith.constant 0 : index
    %c0_23 = arith.constant 0 : index
    %45 = vector.load %arg9[%c0_22, %c0_23] : memref<8x128xf32, #tpu.memory_space<vmem>>, vector<8x128xf32>
    tpu.vector_store %arg9[%c0_22, %c0_23], %44 {strides = array<i32>} : memref<8x128xf32, #tpu.memory_space<vmem>>, vector<8x128xf32>,
    %c0_24 = arith.constant 0 : index
    %c0_25 = arith.constant 0 : index
    %46 = vector.load %arg10[%c0_24, %c0_25] : memref<8x128xf32, #tpu.memory_space<vmem>>, vector<8x128xf32>
    tpu.vector_store %arg10[%c0_24, %c0_25], %29 {strides = array<i32>} : memref<8x128xf32, #tpu.memory_space<vmem>>, vector<8x128xf32>,
    return
  }
}

module attributes {stable_mosaic.version = 11 : i64} {
  func.func @_node_with_brother_kernel(%arg0: memref<8x128xf32, #tpu.memory_space<vmem>>, %arg1: memref<8x256xf32, #tpu.memory_space<vmem>>, %arg2: memref<8x128xf32, #tpu.memory_space<vmem>>, %arg3: memref<256x512xf32, #tpu.memory_space<vmem>>, %arg4: memref<1x512xf32, #tpu.memory_space<vmem>>, %arg5: memref<128x128xf32, #tpu.memory_space<vmem>>, %arg6: memref<128x128xf32, #tpu.memory_space<vmem>>, %arg7: memref<1x128xf32, #tpu.memory_space<vmem>>, %arg8: memref<1x128xf32, #tpu.memory_space<vmem>>, %arg9: memref<8x128xf32, #tpu.memory_space<vmem>>, %arg10: memref<8x128xf32, #tpu.memory_space<vmem>>) attributes {dimension_semantics = [], scalar_prefetch = 0 : i64, scratch_operands = 0 : i64, tpu.core_type = #tpu.core_type<tc>} {
    %c0 = arith.constant 0 : index
    %c0_0 = arith.constant 0 : index
    %0 = vector.load %arg1[%c0, %c0_0] : memref<8x256xf32, #tpu.memory_space<vmem>>, vector<8x256xf32>
    %c0_1 = arith.constant 0 : index
    %c0_2 = arith.constant 0 : index
    %1 = vector.load %arg3[%c0_1, %c0_2] : memref<256x512xf32, #tpu.memory_space<vmem>>, vector<256x512xf32>
    %cst = arith.constant dense<0.000000e+00> : vector<8x512xf32>
    %2 = tpu.matmul %0, %1, %cst {dimension_numbers = #tpu.dot_dimension_numbers<[1], [0], [0], [1], [0, 0, 1, 1], [], []>} : vector<8x256xf32>, vector<256x512xf32>, vector<8x512xf32> -> vector<8x512xf32>
    %c0_3 = arith.constant 0 : index
    %c0_4 = arith.constant 0 : index
    %3 = vector.load %arg4[%c0_3, %c0_4] : memref<1x512xf32, #tpu.memory_space<vmem>>, vector<1x512xf32>
    %4 = vector.broadcast %3 : vector<1x512xf32> to vector<8x512xf32>
    %5 = arith.addf %2, %4 : vector<8x512xf32>
    %6 = vector.extract_strided_slice %5 {offsets = [0, 0], sizes = [8, 128], strides = [1, 1]} : vector<8x512xf32> to vector<8x128xf32>
    %7 = arith.negf %6 : vector<8x128xf32>
    %8 = math.exp %7 : vector<8x128xf32>
    %cst_5 = arith.constant 1.000000e+00 : f32
    %9 = vector.broadcast %cst_5 : f32 to vector<8x128xf32>
    %10 = arith.addf %9, %8 : vector<8x128xf32>
    %11 = arith.divf %9, %10 : vector<8x128xf32>
    %12 = vector.extract_strided_slice %5 {offsets = [0, 128], sizes = [8, 128], strides = [1, 1]} : vector<8x512xf32> to vector<8x128xf32>
    %13 = arith.negf %12 : vector<8x128xf32>
    %14 = math.exp %13 : vector<8x128xf32>
    %cst_6 = arith.constant 1.000000e+00 : f32
    %15 = vector.broadcast %cst_6 : f32 to vector<8x128xf32>
    %16 = arith.addf %15, %14 : vector<8x128xf32>
    %17 = arith.divf %15, %16 : vector<8x128xf32>
    %18 = vector.extract_strided_slice %5 {offsets = [0, 256], sizes = [8, 128], strides = [1, 1]} : vector<8x512xf32> to vector<8x128xf32>
    %19 = math.tanh %18 : vector<8x128xf32>
    %20 = vector.extract_strided_slice %5 {offsets = [0, 384], sizes = [8, 128], strides = [1, 1]} : vector<8x512xf32> to vector<8x128xf32>
    %21 = arith.negf %20 : vector<8x128xf32>
    %22 = math.exp %21 : vector<8x128xf32>
    %cst_7 = arith.constant 1.000000e+00 : f32
    %23 = vector.broadcast %cst_7 : f32 to vector<8x128xf32>
    %24 = arith.addf %23, %22 : vector<8x128xf32>
    %25 = arith.divf %23, %24 : vector<8x128xf32>
    %c0_8 = arith.constant 0 : index
    %c0_9 = arith.constant 0 : index
    %26 = vector.load %arg2[%c0_8, %c0_9] : memref<8x128xf32, #tpu.memory_space<vmem>>, vector<8x128xf32>
    %27 = arith.mulf %17, %26 : vector<8x128xf32>
    %28 = arith.mulf %11, %19 : vector<8x128xf32>
    %29 = arith.addf %27, %28 : vector<8x128xf32>
    %30 = math.tanh %29 : vector<8x128xf32>
    %31 = arith.mulf %25, %30 : vector<8x128xf32>
    %c0_10 = arith.constant 0 : index
    %c0_11 = arith.constant 0 : index
    %32 = vector.load %arg0[%c0_10, %c0_11] : memref<8x128xf32, #tpu.memory_space<vmem>>, vector<8x128xf32>
    %c0_12 = arith.constant 0 : index
    %c0_13 = arith.constant 0 : index
    %33 = vector.load %arg5[%c0_12, %c0_13] : memref<128x128xf32, #tpu.memory_space<vmem>>, vector<128x128xf32>
    %cst_14 = arith.constant dense<0.000000e+00> : vector<8x128xf32>
    %34 = tpu.matmul %32, %33, %cst_14 {dimension_numbers = #tpu.dot_dimension_numbers<[1], [0], [0], [1], [0, 0, 1, 1], [], []>} : vector<8x128xf32>, vector<128x128xf32>, vector<8x128xf32> -> vector<8x128xf32>
    %c0_15 = arith.constant 0 : index
    %c0_16 = arith.constant 0 : index
    %35 = vector.load %arg7[%c0_15, %c0_16] : memref<1x128xf32, #tpu.memory_space<vmem>>, vector<1x128xf32>
    %36 = vector.broadcast %35 : vector<1x128xf32> to vector<8x128xf32>
    %37 = arith.addf %34, %36 : vector<8x128xf32>
    %c0_17 = arith.constant 0 : index
    %c0_18 = arith.constant 0 : index
    %38 = vector.load %arg6[%c0_17, %c0_18] : memref<128x128xf32, #tpu.memory_space<vmem>>, vector<128x128xf32>
    %cst_19 = arith.constant dense<0.000000e+00> : vector<8x128xf32>
    %39 = tpu.matmul %31, %38, %cst_19 {dimension_numbers = #tpu.dot_dimension_numbers<[1], [0], [0], [1], [0, 0, 1, 1], [], []>} : vector<8x128xf32>, vector<128x128xf32>, vector<8x128xf32> -> vector<8x128xf32>
    %40 = arith.addf %37, %39 : vector<8x128xf32>
    %c0_20 = arith.constant 0 : index
    %c0_21 = arith.constant 0 : index
    %41 = vector.load %arg8[%c0_20, %c0_21] : memref<1x128xf32, #tpu.memory_space<vmem>>, vector<1x128xf32>
    %42 = vector.broadcast %41 : vector<1x128xf32> to vector<8x128xf32>
    %43 = arith.addf %40, %42 : vector<8x128xf32>
    %44 = math.tanh %43 : vector<8x128xf32>
    %c0_22 = arith.constant 0 : index
    %c0_23 = arith.constant 0 : index
    %45 = vector.load %arg9[%c0_22, %c0_23] : memref<8x128xf32, #tpu.memory_space<vmem>>, vector<8x128xf32>
    tpu.vector_store %arg9[%c0_22, %c0_23], %44 {strides = array<i32>} : memref<8x128xf32, #tpu.memory_space<vmem>>, vector<8x128xf32>,
    %c0_24 = arith.constant 0 : index
    %c0_25 = arith.constant 0 : index
    %46 = vector.load %arg10[%c0_24, %c0_25] : memref<8x128xf32, #tpu.memory_space<vmem>>, vector<8x128xf32>
    tpu.vector_store %arg10[%c0_24, %c0_25], %29 {strides = array<i32>} : memref<8x128xf32, #tpu.memory_space<vmem>>, vector<8x128xf32>,
    return
  }
}

module attributes {stable_mosaic.version = 11 : i64} {
  func.func @_cell_a_h_kernel(%arg0: memref<8x256xf32, #tpu.memory_space<vmem>>, %arg1: memref<8x128xf32, #tpu.memory_space<vmem>>, %arg2: memref<256x512xf32, #tpu.memory_space<vmem>>, %arg3: memref<1x512xf32, #tpu.memory_space<vmem>>, %arg4: memref<8x128xf32, #tpu.memory_space<vmem>>) attributes {dimension_semantics = [], scalar_prefetch = 0 : i64, scratch_operands = 0 : i64, tpu.core_type = #tpu.core_type<tc>} {
    %c0 = arith.constant 0 : index
    %c0_0 = arith.constant 0 : index
    %0 = vector.load %arg0[%c0, %c0_0] : memref<8x256xf32, #tpu.memory_space<vmem>>, vector<8x256xf32>
    %c0_1 = arith.constant 0 : index
    %c0_2 = arith.constant 0 : index
    %1 = vector.load %arg2[%c0_1, %c0_2] : memref<256x512xf32, #tpu.memory_space<vmem>>, vector<256x512xf32>
    %cst = arith.constant dense<0.000000e+00> : vector<8x512xf32>
    %2 = tpu.matmul %0, %1, %cst {dimension_numbers = #tpu.dot_dimension_numbers<[1], [0], [0], [1], [0, 0, 1, 1], [], []>} : vector<8x256xf32>, vector<256x512xf32>, vector<8x512xf32> -> vector<8x512xf32>
    %c0_3 = arith.constant 0 : index
    %c0_4 = arith.constant 0 : index
    %3 = vector.load %arg3[%c0_3, %c0_4] : memref<1x512xf32, #tpu.memory_space<vmem>>, vector<1x512xf32>
    %4 = vector.broadcast %3 : vector<1x512xf32> to vector<8x512xf32>
    %5 = arith.addf %2, %4 : vector<8x512xf32>
    %6 = vector.extract_strided_slice %5 {offsets = [0, 0], sizes = [8, 128], strides = [1, 1]} : vector<8x512xf32> to vector<8x128xf32>
    %7 = arith.negf %6 : vector<8x128xf32>
    %8 = math.exp %7 : vector<8x128xf32>
    %cst_5 = arith.constant 1.000000e+00 : f32
    %9 = vector.broadcast %cst_5 : f32 to vector<8x128xf32>
    %10 = arith.addf %9, %8 : vector<8x128xf32>
    %11 = arith.divf %9, %10 : vector<8x128xf32>
    %12 = vector.extract_strided_slice %5 {offsets = [0, 128], sizes = [8, 128], strides = [1, 1]} : vector<8x512xf32> to vector<8x128xf32>
    %13 = arith.negf %12 : vector<8x128xf32>
    %14 = math.exp %13 : vector<8x128xf32>
    %cst_6 = arith.constant 1.000000e+00 : f32
    %15 = vector.broadcast %cst_6 : f32 to vector<8x128xf32>
    %16 = arith.addf %15, %14 : vector<8x128xf32>
    %17 = arith.divf %15, %16 : vector<8x128xf32>
    %18 = vector.extract_strided_slice %5 {offsets = [0, 256], sizes = [8, 128], strides = [1, 1]} : vector<8x512xf32> to vector<8x128xf32>
    %19 = math.tanh %18 : vector<8x128xf32>
    %20 = vector.extract_strided_slice %5 {offsets = [0, 384], sizes = [8, 128], strides = [1, 1]} : vector<8x512xf32> to vector<8x128xf32>
    %21 = arith.negf %20 : vector<8x128xf32>
    %22 = math.exp %21 : vector<8x128xf32>
    %cst_7 = arith.constant 1.000000e+00 : f32
    %23 = vector.broadcast %cst_7 : f32 to vector<8x128xf32>
    %24 = arith.addf %23, %22 : vector<8x128xf32>
    %25 = arith.divf %23, %24 : vector<8x128xf32>
    %c0_8 = arith.constant 0 : index
    %c0_9 = arith.constant 0 : index
    %26 = vector.load %arg1[%c0_8, %c0_9] : memref<8x128xf32, #tpu.memory_space<vmem>>, vector<8x128xf32>
    %27 = arith.mulf %17, %26 : vector<8x128xf32>
    %28 = arith.mulf %11, %19 : vector<8x128xf32>
    %29 = arith.addf %27, %28 : vector<8x128xf32>
    %30 = math.tanh %29 : vector<8x128xf32>
    %31 = arith.mulf %25, %30 : vector<8x128xf32>
    %c0_10 = arith.constant 0 : index
    %c0_11 = arith.constant 0 : index
    %32 = vector.load %arg4[%c0_10, %c0_11] : memref<8x128xf32, #tpu.memory_space<vmem>>, vector<8x128xf32>
    tpu.vector_store %arg4[%c0_10, %c0_11], %31 {strides = array<i32>} : memref<8x128xf32, #tpu.memory_space<vmem>>, vector<8x128xf32>,
    return
  }
}

module attributes {stable_mosaic.version = 11 : i64} {
  func.func @_node_with_brother_kernel(%arg0: memref<8x128xf32, #tpu.memory_space<vmem>>, %arg1: memref<8x256xf32, #tpu.memory_space<vmem>>, %arg2: memref<8x128xf32, #tpu.memory_space<vmem>>, %arg3: memref<256x512xf32, #tpu.memory_space<vmem>>, %arg4: memref<1x512xf32, #tpu.memory_space<vmem>>, %arg5: memref<128x128xf32, #tpu.memory_space<vmem>>, %arg6: memref<128x128xf32, #tpu.memory_space<vmem>>, %arg7: memref<1x128xf32, #tpu.memory_space<vmem>>, %arg8: memref<1x128xf32, #tpu.memory_space<vmem>>, %arg9: memref<8x128xf32, #tpu.memory_space<vmem>>, %arg10: memref<8x128xf32, #tpu.memory_space<vmem>>) attributes {dimension_semantics = [], scalar_prefetch = 0 : i64, scratch_operands = 0 : i64, tpu.core_type = #tpu.core_type<tc>} {
    %c0 = arith.constant 0 : index
    %c0_0 = arith.constant 0 : index
    %0 = vector.load %arg1[%c0, %c0_0] : memref<8x256xf32, #tpu.memory_space<vmem>>, vector<8x256xf32>
    %c0_1 = arith.constant 0 : index
    %c0_2 = arith.constant 0 : index
    %1 = vector.load %arg3[%c0_1, %c0_2] : memref<256x512xf32, #tpu.memory_space<vmem>>, vector<256x512xf32>
    %cst = arith.constant dense<0.000000e+00> : vector<8x512xf32>
    %2 = tpu.matmul %0, %1, %cst {dimension_numbers = #tpu.dot_dimension_numbers<[1], [0], [0], [1], [0, 0, 1, 1], [], []>} : vector<8x256xf32>, vector<256x512xf32>, vector<8x512xf32> -> vector<8x512xf32>
    %c0_3 = arith.constant 0 : index
    %c0_4 = arith.constant 0 : index
    %3 = vector.load %arg4[%c0_3, %c0_4] : memref<1x512xf32, #tpu.memory_space<vmem>>, vector<1x512xf32>
    %4 = vector.broadcast %3 : vector<1x512xf32> to vector<8x512xf32>
    %5 = arith.addf %2, %4 : vector<8x512xf32>
    %6 = vector.extract_strided_slice %5 {offsets = [0, 0], sizes = [8, 128], strides = [1, 1]} : vector<8x512xf32> to vector<8x128xf32>
    %7 = arith.negf %6 : vector<8x128xf32>
    %8 = math.exp %7 : vector<8x128xf32>
    %cst_5 = arith.constant 1.000000e+00 : f32
    %9 = vector.broadcast %cst_5 : f32 to vector<8x128xf32>
    %10 = arith.addf %9, %8 : vector<8x128xf32>
    %11 = arith.divf %9, %10 : vector<8x128xf32>
    %12 = vector.extract_strided_slice %5 {offsets = [0, 128], sizes = [8, 128], strides = [1, 1]} : vector<8x512xf32> to vector<8x128xf32>
    %13 = arith.negf %12 : vector<8x128xf32>
    %14 = math.exp %13 : vector<8x128xf32>
    %cst_6 = arith.constant 1.000000e+00 : f32
    %15 = vector.broadcast %cst_6 : f32 to vector<8x128xf32>
    %16 = arith.addf %15, %14 : vector<8x128xf32>
    %17 = arith.divf %15, %16 : vector<8x128xf32>
    %18 = vector.extract_strided_slice %5 {offsets = [0, 256], sizes = [8, 128], strides = [1, 1]} : vector<8x512xf32> to vector<8x128xf32>
    %19 = math.tanh %18 : vector<8x128xf32>
    %20 = vector.extract_strided_slice %5 {offsets = [0, 384], sizes = [8, 128], strides = [1, 1]} : vector<8x512xf32> to vector<8x128xf32>
    %21 = arith.negf %20 : vector<8x128xf32>
    %22 = math.exp %21 : vector<8x128xf32>
    %cst_7 = arith.constant 1.000000e+00 : f32
    %23 = vector.broadcast %cst_7 : f32 to vector<8x128xf32>
    %24 = arith.addf %23, %22 : vector<8x128xf32>
    %25 = arith.divf %23, %24 : vector<8x128xf32>
    %c0_8 = arith.constant 0 : index
    %c0_9 = arith.constant 0 : index
    %26 = vector.load %arg2[%c0_8, %c0_9] : memref<8x128xf32, #tpu.memory_space<vmem>>, vector<8x128xf32>
    %27 = arith.mulf %17, %26 : vector<8x128xf32>
    %28 = arith.mulf %11, %19 : vector<8x128xf32>
    %29 = arith.addf %27, %28 : vector<8x128xf32>
    %30 = math.tanh %29 : vector<8x128xf32>
    %31 = arith.mulf %25, %30 : vector<8x128xf32>
    %c0_10 = arith.constant 0 : index
    %c0_11 = arith.constant 0 : index
    %32 = vector.load %arg0[%c0_10, %c0_11] : memref<8x128xf32, #tpu.memory_space<vmem>>, vector<8x128xf32>
    %c0_12 = arith.constant 0 : index
    %c0_13 = arith.constant 0 : index
    %33 = vector.load %arg5[%c0_12, %c0_13] : memref<128x128xf32, #tpu.memory_space<vmem>>, vector<128x128xf32>
    %cst_14 = arith.constant dense<0.000000e+00> : vector<8x128xf32>
    %34 = tpu.matmul %32, %33, %cst_14 {dimension_numbers = #tpu.dot_dimension_numbers<[1], [0], [0], [1], [0, 0, 1, 1], [], []>} : vector<8x128xf32>, vector<128x128xf32>, vector<8x128xf32> -> vector<8x128xf32>
    %c0_15 = arith.constant 0 : index
    %c0_16 = arith.constant 0 : index
    %35 = vector.load %arg7[%c0_15, %c0_16] : memref<1x128xf32, #tpu.memory_space<vmem>>, vector<1x128xf32>
    %36 = vector.broadcast %35 : vector<1x128xf32> to vector<8x128xf32>
    %37 = arith.addf %34, %36 : vector<8x128xf32>
    %c0_17 = arith.constant 0 : index
    %c0_18 = arith.constant 0 : index
    %38 = vector.load %arg6[%c0_17, %c0_18] : memref<128x128xf32, #tpu.memory_space<vmem>>, vector<128x128xf32>
    %cst_19 = arith.constant dense<0.000000e+00> : vector<8x128xf32>
    %39 = tpu.matmul %31, %38, %cst_19 {dimension_numbers = #tpu.dot_dimension_numbers<[1], [0], [0], [1], [0, 0, 1, 1], [], []>} : vector<8x128xf32>, vector<128x128xf32>, vector<8x128xf32> -> vector<8x128xf32>
    %40 = arith.addf %37, %39 : vector<8x128xf32>
    %c0_20 = arith.constant 0 : index
    %c0_21 = arith.constant 0 : index
    %41 = vector.load %arg8[%c0_20, %c0_21] : memref<1x128xf32, #tpu.memory_space<vmem>>, vector<1x128xf32>
    %42 = vector.broadcast %41 : vector<1x128xf32> to vector<8x128xf32>
    %43 = arith.addf %40, %42 : vector<8x128xf32>
    %44 = math.tanh %43 : vector<8x128xf32>
    %c0_22 = arith.constant 0 : index
    %c0_23 = arith.constant 0 : index
    %45 = vector.load %arg9[%c0_22, %c0_23] : memref<8x128xf32, #tpu.memory_space<vmem>>, vector<8x128xf32>
    tpu.vector_store %arg9[%c0_22, %c0_23], %44 {strides = array<i32>} : memref<8x128xf32, #tpu.memory_space<vmem>>, vector<8x128xf32>,
    %c0_24 = arith.constant 0 : index
    %c0_25 = arith.constant 0 : index
    %46 = vector.load %arg10[%c0_24, %c0_25] : memref<8x128xf32, #tpu.memory_space<vmem>>, vector<8x128xf32>
    tpu.vector_store %arg10[%c0_24, %c0_25], %29 {strides = array<i32>} : memref<8x128xf32, #tpu.memory_space<vmem>>, vector<8x128xf32>,
    return
  }
}

module attributes {stable_mosaic.version = 11 : i64} {
  func.func @_tiled_linear_kernel(%arg0: i32, %arg1: i32, %arg2: i32, %arg3: memref<48x128xf32, #tpu.memory_space<vmem>>, %arg4: memref<128x128xf32, #tpu.memory_space<vmem>>, %arg5: memref<1x128xf32, #tpu.memory_space<vmem>>, %arg6: memref<48x128xf32, #tpu.memory_space<vmem>>, %arg7: memref<48x128xf32, #tpu.memory_space<vmem>>) attributes {dimension_semantics = [#tpu.dimension_semantics<parallel>, #tpu.dimension_semantics<parallel>, #tpu.dimension_semantics<arbitrary>], iteration_bounds = array<i64: 1, 2, 1>, scalar_prefetch = 0 : i64, scratch_operands = 1 : i64, tpu.core_type = #tpu.core_type<tc>, window_params = [{transform_indices = @transform_0, window_bounds = array<i64: 48, 128>}, {transform_indices = @transform_1, window_bounds = array<i64: 128, 128>}, {transform_indices = @transform_2, window_bounds = array<i64: 1, 128>}, {transform_indices = @transform_3, window_bounds = array<i64: 48, 128>}]} {
    %c0_i32 = arith.constant 0 : i32
    %0 = arith.cmpi eq, %arg2, %c0_i32 : i32
    %1 = arith.extui %0 : i1 to i32
    %c0_i32_0 = arith.constant 0 : i32
    %2 = arith.cmpi ne, %1, %c0_i32_0 : i32
    scf.if %2 {
      %cst_10 = arith.constant 0.000000e+00 : f32
      %12 = vector.broadcast %cst_10 : f32 to vector<48x128xf32>
      %c0_11 = arith.constant 0 : index
      %c0_12 = arith.constant 0 : index
      %13 = vector.load %arg7[%c0_11, %c0_12] : memref<48x128xf32, #tpu.memory_space<vmem>>, vector<48x128xf32>
      tpu.vector_store %arg7[%c0_11, %c0_12], %12 {strides = array<i32>} : memref<48x128xf32, #tpu.memory_space<vmem>>, vector<48x128xf32>,
    } else {
    }
    %c0 = arith.constant 0 : index
    %c0_1 = arith.constant 0 : index
    %3 = vector.load %arg7[%c0, %c0_1] : memref<48x128xf32, #tpu.memory_space<vmem>>, vector<48x128xf32>
    %c0_2 = arith.constant 0 : index
    %c0_3 = arith.constant 0 : index
    %4 = vector.load %arg3[%c0_2, %c0_3] : memref<48x128xf32, #tpu.memory_space<vmem>>, vector<48x128xf32>
    %c0_4 = arith.constant 0 : index
    %c0_5 = arith.constant 0 : index
    %5 = vector.load %arg4[%c0_4, %c0_5] : memref<128x128xf32, #tpu.memory_space<vmem>>, vector<128x128xf32>
    %cst = arith.constant dense<0.000000e+00> : vector<48x128xf32>
    %6 = tpu.matmul %4, %5, %cst {dimension_numbers = #tpu.dot_dimension_numbers<[1], [0], [0], [1], [0, 0, 1, 1], [], []>} : vector<48x128xf32>, vector<128x128xf32>, vector<48x128xf32> -> vector<48x128xf32>
    %7 = arith.addf %3, %6 : vector<48x128xf32>
    %c0_6 = arith.constant 0 : index
    %c0_7 = arith.constant 0 : index
    %8 = vector.load %arg7[%c0_6, %c0_7] : memref<48x128xf32, #tpu.memory_space<vmem>>, vector<48x128xf32>
    tpu.vector_store %arg7[%c0_6, %c0_7], %7 {strides = array<i32>} : memref<48x128xf32, #tpu.memory_space<vmem>>, vector<48x128xf32>,
    %c0_i32_8 = arith.constant 0 : i32
    %9 = arith.cmpi eq, %arg2, %c0_i32_8 : i32
    %10 = arith.extui %9 : i1 to i32
    %c0_i32_9 = arith.constant 0 : i32
    %11 = arith.cmpi ne, %10, %c0_i32_9 : i32
    scf.if %11 {
      %c0_10 = arith.constant 0 : index
      %c0_11 = arith.constant 0 : index
      %12 = vector.load %arg7[%c0_10, %c0_11] : memref<48x128xf32, #tpu.memory_space<vmem>>, vector<48x128xf32>
      %c0_12 = arith.constant 0 : index
      %c0_13 = arith.constant 0 : index
      %13 = vector.load %arg5[%c0_12, %c0_13] : memref<1x128xf32, #tpu.memory_space<vmem>>, vector<1x128xf32>
      %14 = vector.broadcast %13 : vector<1x128xf32> to vector<48x128xf32>
      %15 = arith.addf %12, %14 : vector<48x128xf32>
      %c0_14 = arith.constant 0 : index
      %c0_15 = arith.constant 0 : index
      %16 = vector.load %arg6[%c0_14, %c0_15] : memref<48x128xf32, #tpu.memory_space<vmem>>, vector<48x128xf32>
      tpu.vector_store %arg6[%c0_14, %c0_15], %15 {strides = array<i32>} : memref<48x128xf32, #tpu.memory_space<vmem>>, vector<48x128xf32>,
    } else {
    }
    return
  }
  func.func @transform_0(%arg0: i32, %arg1: i32, %arg2: i32) -> (i32, i32) {
    %c0_i32 = arith.constant 0 : i32
    return %arg0, %arg2 : i32, i32
  }
  func.func @transform_1(%arg0: i32, %arg1: i32, %arg2: i32) -> (i32, i32) {
    %c0_i32 = arith.constant 0 : i32
    return %arg2, %arg1 : i32, i32
  }
  func.func @transform_2(%arg0: i32, %arg1: i32, %arg2: i32) -> (i32, i32) {
    %c0_i32 = arith.constant 0 : i32
    %c0_i32_0 = arith.constant 0 : i32
    return %c0_i32, %arg1 : i32, i32
  }
  func.func @transform_3(%arg0: i32, %arg1: i32, %arg2: i32) -> (i32, i32) {
    %c0_i32 = arith.constant 0 : i32
    return %arg0, %arg1 : i32, i32
  }
}

</mosaic_0001>

<llo_original>
// kernel: fwd.13
$region0: #{fwd.13}
  #allocation0 [shape = 'u32[]', space=smem, size = 0x4, offset = 0x4, fixed_abs, tag = 'smem constant byte address 0x4 - core index']
  #allocation1 [shape = 'u32[144,128]{1,0:T(1,128)}', space=vmem, size = 0x12000, scoped, tag = 'internal scratch']
  %s0 = inlined_call_operand.vmem [shape: f32[8,128], index: 0, kind: input, shape index: {}]
  %s1 = inlined_call_operand.vmem [shape: f32[128,128], index: 1, kind: input, shape index: {}]
  %s2 = inlined_call_operand.vmem [shape: f32[1,128], index: 2, kind: input, shape index: {}]
  %s3 = inlined_call_operand.vmem [shape: f32[1,128], index: 3, kind: input, shape index: {}]
  %s4 = inlined_call_operand.vmem [shape: f32[8,128], index: 4, kind: output, shape index: {}]
  %s5 = sld [smem:[#allocation0]]
  $region26: #{fwd.13} parent=0
    _
  %s7 = ssub.s32 1, %s5
  %s8 = scalar_select 0, %s7, %s5
  // Predicated region
  $region2: #{fwd.13} parent=0 // pred_check
    _
  $region3: #{fwd.13} parent=0 // pred_check_branch
    %10 = sbr.rel (0) target = $region5
  $region4: #{fwd.13} parent=0 // pred_region
    _
  $region5: #{fwd.13} parent=0 // pred_fallthru
    _
  // Predicated region
  $region6: #{fwd.13} parent=0 // pred_check
    _
  $region7: #{fwd.13} parent=0 // pred_check_branch
    %12 = sbr.rel (0) target = $region9
  $region8: #{fwd.13} parent=0 // pred_region
    _
  $region9: #{fwd.13} parent=0 // pred_fallthru
    _
  // Predicated region
  $region10: #{fwd.13} parent=0 // pred_check
    _
  $region11: #{fwd.13} parent=0 // pred_check_branch
    %14 = sbr.rel (0) target = $region13
  $region12: #{fwd.13} parent=0 // pred_region
    _
  $region13: #{fwd.13} parent=0 // pred_fallthru
    _
  // Predicated region
  $region14: #{fwd.13} parent=0 // pred_check
    _
  $region15: #{fwd.13} parent=0 // pred_check_branch
    %16 = sbr.rel (0) target = $region17
  $region16: #{fwd.13} parent=0 // pred_region
    _
  $region17: #{fwd.13} parent=0 // pred_fallthru
    _
  %v17 = vld [vmem:[%s0] sm:$0xff]
  %v18 = vld [vmem:[%s1] sm:$0xff]
  %v19 = vld [vmem:[%s1 + $0x8] sm:$0xff]
  %v20 = vld [vmem:[%s1 + $0x10] sm:$0xff]
  %v21 = vld [vmem:[%s1 + $0x18] sm:$0xff]
  %v22 = vld [vmem:[%s1 + $0x20] sm:$0xff]
  %v23 = vld [vmem:[%s1 + $0x28] sm:$0xff]
  %v24 = vld [vmem:[%s1 + $0x30] sm:$0xff]
  %v25 = vld [vmem:[%s1 + $0x38] sm:$0xff]
  %v26 = vld [vmem:[%s1 + $0x40] sm:$0xff]
  %v27 = vld [vmem:[%s1 + $0x48] sm:$0xff]
  %v28 = vld [vmem:[%s1 + $0x50] sm:$0xff]
  %v29 = vld [vmem:[%s1 + $0x58] sm:$0xff]
  %v30 = vld [vmem:[%s1 + $0x60] sm:$0xff]
  %v31 = vld [vmem:[%s1 + $0x68] sm:$0xff]
  %v32 = vld [vmem:[%s1 + $0x70] sm:$0xff]
  %v33 = vld [vmem:[%s1 + $0x78] sm:$0xff]
  %v34 = vld [vmem:[%s2] sm:$0x1]
  %v36 = vlaneseq
  %v37 = vshrl.u32 %v36, 7
  %v38 = vsub.s32 0, %v37
  %v39 = vrot.slane %v34, %v38
  %41 = vmatprep.subr.mxu0 0.0
  %42 = vmatpush1.msra.mxu0 %v18
  %43 = vmatprep.subr.mxu0 0.0
  %44 = vmatpush1.msra.mxu0 %v19
  %45 = vmatprep.subr.mxu0 0.0
  %46 = vmatpush1.msra.mxu0 %v20
  %47 = vmatprep.subr.mxu0 0.0
  %48 = vmatpush1.msra.mxu0 %v21
  %49 = vmatprep.subr.mxu0 0.0
  %50 = vmatpush1.msra.mxu0 %v22
  %51 = vmatprep.subr.mxu0 0.0
  %52 = vmatpush1.msra.mxu0 %v23
  %53 = vmatprep.subr.mxu0 0.0
  %54 = vmatpush1.msra.mxu0 %v24
  %55 = vmatprep.subr.mxu0 0.0
  %56 = vmatpush1.msra.mxu0 %v25
  %57 = vmatprep.subr.mxu0 0.0
  %58 = vmatpush1.msra.mxu0 %v26
  %59 = vmatprep.subr.mxu0 0.0
  %60 = vmatpush1.msra.mxu0 %v27
  %61 = vmatprep.subr.mxu0 0.0
  %62 = vmatpush1.msra.mxu0 %v28
  %63 = vmatprep.subr.mxu0 0.0
  %64 = vmatpush1.msra.mxu0 %v29
  %65 = vmatprep.subr.mxu0 0.0
  %66 = vmatpush1.msra.mxu0 %v30
  %67 = vmatprep.subr.mxu0 0.0
  %68 = vmatpush1.msra.mxu0 %v31
  %69 = vmatprep.subr.mxu0 0.0
  %70 = vmatpush1.msra.mxu0 %v32
  %71 = vmatprep.subr.mxu0 0.0
  %72 = vmatpush1.msra.mxu0 %v33
  %73 = vmatprep.subr.mxu0 0.0
  %74 = vmatpush1.msra.mxu0 0.0
  %75 = vmatprep.subr.mxu0 0.0
  %76 = vmatpush1.msra.mxu0 0.0
  %77 = vmatprep.subr.mxu0 0.0
  %78 = vmatpush1.msra.mxu0 0.0
  %79 = vmatprep.subr.mxu0 0.0
  %80 = vmatpush1.msra.mxu0 0.0
  %81 = vmatprep.subr.mxu0 0.0
  %82 = vmatpush1.msra.mxu0 0.0
  %83 = vmatprep.subr.mxu0 0.0
  %84 = vmatpush1.msra.mxu0 0.0
  %85 = vmatprep.subr.mxu0 0.0
  %86 = vmatpush1.msra.mxu0 0.0
  %87 = vmatprep.subr.mxu0 0.0
  %88 = vmatpush1.msra.mxu0 0.0
  %89 = vmatprep.subr.mxu0 0.0
  %90 = vmatpush1.msra.mxu0 0.0
  %91 = vmatprep.subr.mxu0 0.0
  %92 = vmatpush1.msra.mxu0 0.0
  %93 = vmatprep.subr.mxu0 0.0
  %94 = vmatpush1.msra.mxu0 0.0
  %95 = vmatprep.subr.mxu0 0.0
  %96 = vmatpush1.msra.mxu0 0.0
  %97 = vmatprep.subr.mxu0 0.0
  %98 = vmatpush1.msra.mxu0 0.0
  %99 = vmatprep.subr.mxu0 0.0
  %100 = vmatpush1.msra.mxu0 0.0
  %101 = vmatprep.subr.mxu0 0.0
  %102 = vmatpush1.msra.mxu0 0.0
  %103 = vmatprep.subr.mxu0 0.0
  %104 = vmatpush1.msra.mxu0 0.0
  %105 = vmatprep.mubr.f32.mxu0 0.0
  %106 = vmatmul.mubr.f32.gmra.mrb[0].mxu0 %v17
  %v107 = vpop.f32.mrb[0].mxu0
  %v108 = vadd.f32 %v39, %v107
  %v109 = vpop.f32.mrb[0].mxu0
  %110 = vdwg.mxu0
  %v111 = vld [vmem:[%s3] sm:$0x1]
  %v113 = vlaneseq
  %v114 = vshrl.u32 %v113, 7
  %v115 = vsub.s32 0, %v114
  %v116 = vrot.slane %v111, %v115
  %v118 = vadd.f32 %v108, %v116
  %v119 = vtanh.pop %v118
  %120 = vst [vmem:[%s4] sm:$0xff] %v119
  // Predicated region
  $region18: #{fwd.13} parent=0 // pred_check
    _
  $region19: #{fwd.13} parent=0 // pred_check_branch
    %122 = sbr.rel (0) target = $region21
  $region20: #{fwd.13} parent=0 // pred_region
    _
  $region21: #{fwd.13} parent=0 // pred_fallthru
    _
  // Predicated region
  $region22: #{fwd.13} parent=0 // pred_check
    _
  $region23: #{fwd.13} parent=0 // pred_check_branch
    %124 = sbr.rel (0) target = $region25
  $region24: #{fwd.13} parent=0 // pred_region
    _
  $region25: #{fwd.13} parent=0 // pred_fallthru
    _

// kernel: fwd.12
$region0: #{fwd.12}
  #allocation0 [shape = 'u32[]', space=smem, size = 0x4, offset = 0x4, fixed_abs, tag = 'smem constant byte address 0x4 - core index']
  #allocation1 [shape = 'u32[144,128]{1,0:T(1,128)}', space=vmem, size = 0x12000, scoped, tag = 'internal scratch']
  %s0 = inlined_call_operand.vmem [shape: f32[8,256], index: 0, kind: input, shape index: {}]
  %s1 = inlined_call_operand.vmem [shape: f32[8,128], index: 1, kind: input, shape index: {}]
  %s2 = inlined_call_operand.hbm [shape: f32[256,512], index: 2, kind: input, shape index: {}]
  %s3 = inlined_call_operand.vmem [shape: f32[1,512], index: 3, kind: input, shape index: {}]
  %s4 = inlined_call_operand.vmem [shape: f32[8,128], index: 4, kind: output, shape index: {}]
  %s5 = sld [smem:[#allocation0]]
  $region30: #{fwd.12} parent=0
    _
  %s7 = ssub.s32 1, %s5
  %s8 = scalar_select 0, %s7, %s5
  $region1: #{fwd.12} parent=0
    #allocation2 [shape = 'u8[524288]{0}', space=vmem, size = 0x80000, scoped, tag = 'input window, operand 2, single buffered']
    #allocation3 [shape = 's32[1]{0}', space=sflag, size = 0x4, scoped, tag = 'scoped memory for fwd.12']
    %9 = vsyncpa [#allocation3], 0
    // Predicated region
    $region2: #{fwd.12} parent=1 // pred_check
      _
    $region3: #{fwd.12} parent=1 // pred_check_branch
      %11 = sbr.rel (0) target = $region5
    $region4: #{fwd.12} parent=1 // pred_region
      _
    $region5: #{fwd.12} parent=1 // pred_fallthru
      _
    // Predicated region
    $region6: #{fwd.12} parent=1 // pred_check
      _
    $region7: #{fwd.12} parent=1 // pred_check_branch
      %13 = sbr.rel (0) target = $region9
    $region8: #{fwd.12} parent=1 // pred_region
      _
    $region9: #{fwd.12} parent=1 // pred_fallthru
      _
    // Predicated region
    $region10: #{fwd.12} parent=1 // pred_check
      _
    $region11: #{fwd.12} parent=1 // pred_check_branch
      %15 = sbr.rel (0) target = $region13
    $region12: #{fwd.12} parent=1 // pred_region
      %s17 = ssub.s32 16384, 16384
      %18 = vsyncadd [#allocation3], %s17
      %s19 = sshll.u32 [#allocation2], 4
      %s20 = int_to_ptr.vmem [resolvable:$true] %s19
      %25 = dma.hbm_to_vmem [thread:$0]  %s2, 16384, %s20, [#allocation3], 512, 512, 32
    $region13: #{fwd.12} parent=1 // pred_fallthru
      _
    // Predicated region
    $region14: #{fwd.12} parent=1 // pred_check
      _
    $region15: #{fwd.12} parent=1 // pred_check_branch
      %27 = sbr.rel (0) target = $region17
    $region16: #{fwd.12} parent=1 // pred_region
      _
    $region17: #{fwd.12} parent=1 // pred_fallthru
      _
    // Predicated region
    $region18: #{fwd.12} parent=1 // pred_check
      _
    $region19: #{fwd.12} parent=1 // pred_check_branch
      %29 = sbr.rel (0) target = $region21
    $region20: #{fwd.12} parent=1 // pred_region
      %30 = dma.done [#allocation3], 16384
    $region21: #{fwd.12} parent=1 // pred_fallthru
      _
    %v31 = vld [vmem:[%s0] sm:$0xff]
    %v32 = vld [vmem:[%s0 + $0x8] sm:$0xff]
    %v33 = vld [vmem:[#allocation2] sm:$0xff]
    %v34 = vld [vmem:[#allocation2 + $0x8] sm:$0xff]
    %v35 = vld [vmem:[#allocation2 + $0x10] sm:$0xff]
    %v36 = vld [vmem:[#allocation2 + $0x18] sm:$0xff]
    %v37 = vld [vmem:[#allocation2 + $0x20] sm:$0xff]
    %v38 = vld [vmem:[#allocation2 + $0x28] sm:$0xff]
    %v39 = vld [vmem:[#allocation2 + $0x30] sm:$0xff]
    %v40 = vld [vmem:[#allocation2 + $0x38] sm:$0xff]
    %v41 = vld [vmem:[#allocation2 + $0x40] sm:$0xff]
    %v42 = vld [vmem:[#allocation2 + $0x48] sm:$0xff]
    %v43 = vld [vmem:[#allocation2 + $0x50] sm:$0xff]
    %v44 = vld [vmem:[#allocation2 + $0x58] sm:$0xff]
    %v45 = vld [vmem:[#allocation2 + $0x60] sm:$0xff]
    %v46 = vld [vmem:[#allocation2 + $0x68] sm:$0xff]
    %v47 = vld [vmem:[#allocation2 + $0x70] sm:$0xff]
    %v48 = vld [vmem:[#allocation2 + $0x78] sm:$0xff]
    %v49 = vld [vmem:[#allocation2 + $0x80] sm:$0xff]
    %v50 = vld [vmem:[#allocation2 + $0x88] sm:$0xff]
    %v51 = vld [vmem:[#allocation2 + $0x90] sm:$0xff]
    %v52 = vld [vmem:[#allocation2 + $0x98] sm:$0xff]
    %v53 = vld [vmem:[#allocation2 + $0xa0] sm:$0xff]
    %v54 = vld [vmem:[#allocation2 + $0xa8] sm:$0xff]
    %v55 = vld [vmem:[#allocation2 + $0xb0] sm:$0xff]
    %v56 = vld [vmem:[#allocation2 + $0xb8] sm:$0xff]
    %v57 = vld [vmem:[#allocation2 + $0xc0] sm:$0xff]
    %v58 = vld [vmem:[#allocation2 + $0xc8] sm:$0xff]
    %v59 = vld [vmem:[#allocation2 + $0xd0] sm:$0xff]
    %v60 = vld [vmem:[#allocation2 + $0xd8] sm:$0xff]
    %v61 = vld [vmem:[#allocation2 + $0xe0] sm:$0xff]
    %v62 = vld [vmem:[#allocation2 + $0xe8] sm:$0xff]
    %v63 = vld [vmem:[#allocation2 + $0xf0] sm:$0xff]
    %v64 = vld [vmem:[#allocation2 + $0xf8] sm:$0xff]
    %v65 = vld [vmem:[#allocation2 + $0x100] sm:$0xff]
    %v66 = vld [vmem:[#allocation2 + $0x108] sm:$0xff]
    %v67 = vld [vmem:[#allocation2 + $0x110] sm:$0xff]
    %v68 = vld [vmem:[#allocation2 + $0x118] sm:$0xff]
    %v69 = vld [vmem:[#allocation2 + $0x120] sm:$0xff]
    %v70 = vld [vmem:[#allocation2 + $0x128] sm:$0xff]
    %v71 = vld [vmem:[#allocation2 + $0x130] sm:$0xff]
    %v72 = vld [vmem:[#allocation2 + $0x138] sm:$0xff]
    %v73 = vld [vmem:[#allocation2 + $0x140] sm:$0xff]
    %v74 = vld [vmem:[#allocation2 + $0x148] sm:$0xff]
    %v75 = vld [vmem:[#allocation2 + $0x150] sm:$0xff]
    %v76 = vld [vmem:[#allocation2 + $0x158] sm:$0xff]
    %v77 = vld [vmem:[#allocation2 + $0x160] sm:$0xff]
    %v78 = vld [vmem:[#allocation2 + $0x168] sm:$0xff]
    %v79 = vld [vmem:[#allocation2 + $0x170] sm:$0xff]
    %v80 = vld [vmem:[#allocation2 + $0x178] sm:$0xff]
    %v81 = vld [vmem:[#allocation2 + $0x180] sm:$0xff]
    %v82 = vld [vmem:[#allocation2 + $0x188] sm:$0xff]
    %v83 = vld [vmem:[#allocation2 + $0x190] sm:$0xff]
    %v84 = vld [vmem:[#allocation2 + $0x198] sm:$0xff]
    %v85 = vld [vmem:[#allocation2 + $0x1a0] sm:$0xff]
    %v86 = vld [vmem:[#allocation2 + $0x1a8] sm:$0xff]
    %v87 = vld [vmem:[#allocation2 + $0x1b0] sm:$0xff]
    %v88 = vld [vmem:[#allocation2 + $0x1b8] sm:$0xff]
    %v89 = vld [vmem:[#allocation2 + $0x1c0] sm:$0xff]
    %v90 = vld [vmem:[#allocation2 + $0x1c8] sm:$0xff]
    %v91 = vld [vmem:[#allocation2 + $0x1d0] sm:$0xff]
    %v92 = vld [vmem:[#allocation2 + $0x1d8] sm:$0xff]
    %v93 = vld [vmem:[#allocation2 + $0x1e0] sm:$0xff]
    %v94 = vld [vmem:[#allocation2 + $0x1e8] sm:$0xff]
    %v95 = vld [vmem:[#allocation2 + $0x1f0] sm:$0xff]
    %v96 = vld [vmem:[#allocation2 + $0x1f8] sm:$0xff]
    %v97 = vld [vmem:[#allocation2 + $0x200] sm:$0xff]
    %v98 = vld [vmem:[#allocation2 + $0x208] sm:$0xff]
    %v99 = vld [vmem:[#allocation2 + $0x210] sm:$0xff]
    %v100 = vld [vmem:[#allocation2 + $0x218] sm:$0xff]
    %v101 = vld [vmem:[#allocation2 + $0x220] sm:$0xff]
    %v102 = vld [vmem:[#allocation2 + $0x228] sm:$0xff]
    %v103 = vld [vmem:[#allocation2 + $0x230] sm:$0xff]
    %v104 = vld [vmem:[#allocation2 + $0x238] sm:$0xff]
    %v105 = vld [vmem:[#allocation2 + $0x240] sm:$0xff]
    %v106 = vld [vmem:[#allocation2 + $0x248] sm:$0xff]
    %v107 = vld [vmem:[#allocation2 + $0x250] sm:$0xff]
    %v108 = vld [vmem:[#allocation2 + $0x258] sm:$0xff]
    %v109 = vld [vmem:[#allocation2 + $0x260] sm:$0xff]
    %v110 = vld [vmem:[#allocation2 + $0x268] sm:$0xff]
    %v111 = vld [vmem:[#allocation2 + $0x270] sm:$0xff]
    %v112 = vld [vmem:[#allocation2 + $0x278] sm:$0xff]
    %v113 = vld [vmem:[#allocation2 + $0x280] sm:$0xff]
    %v114 = vld [vmem:[#allocation2 + $0x288] sm:$0xff]
    %v115 = vld [vmem:[#allocation2 + $0x290] sm:$0xff]
    %v116 = vld [vmem:[#allocation2 + $0x298] sm:$0xff]
    %v117 = vld [vmem:[#allocation2 + $0x2a0] sm:$0xff]
    %v118 = vld [vmem:[#allocation2 + $0x2a8] sm:$0xff]
    %v119 = vld [vmem:[#allocation2 + $0x2b0] sm:$0xff]
    %v120 = vld [vmem:[#allocation2 + $0x2b8] sm:$0xff]
    %v121 = vld [vmem:[#allocation2 + $0x2c0] sm:$0xff]
    %v122 = vld [vmem:[#allocation2 + $0x2c8] sm:$0xff]
    %v123 = vld [vmem:[#allocation2 + $0x2d0] sm:$0xff]
    %v124 = vld [vmem:[#allocation2 + $0x2d8] sm:$0xff]
    %v125 = vld [vmem:[#allocation2 + $0x2e0] sm:$0xff]
    %v126 = vld [vmem:[#allocation2 + $0x2e8] sm:$0xff]
    %v127 = vld [vmem:[#allocation2 + $0x2f0] sm:$0xff]
    %v128 = vld [vmem:[#allocation2 + $0x2f8] sm:$0xff]
    %v129 = vld [vmem:[#allocation2 + $0x300] sm:$0xff]
    %v130 = vld [vmem:[#allocation2 + $0x308] sm:$0xff]
    %v131 = vld [vmem:[#allocation2 + $0x310] sm:$0xff]
    %v132 = vld [vmem:[#allocation2 + $0x318] sm:$0xff]
    %v133 = vld [vmem:[#allocation2 + $0x320] sm:$0xff]
    %v134 = vld [vmem:[#allocation2 + $0x328] sm:$0xff]
    %v135 = vld [vmem:[#allocation2 + $0x330] sm:$0xff]
    %v136 = vld [vmem:[#allocation2 + $0x338] sm:$0xff]
    %v137 = vld [vmem:[#allocation2 + $0x340] sm:$0xff]
    %v138 = vld [vmem:[#allocation2 + $0x348] sm:$0xff]
    %v139 = vld [vmem:[#allocation2 + $0x350] sm:$0xff]
    %v140 = vld [vmem:[#allocation2 + $0x358] sm:$0xff]
    %v141 = vld [vmem:[#allocation2 + $0x360] sm:$0xff]
    %v142 = vld [vmem:[#allocation2 + $0x368] sm:$0xff]
    %v143 = vld [vmem:[#allocation2 + $0x370] sm:$0xff]
    %v144 = vld [vmem:[#allocation2 + $0x378] sm:$0xff]
    %v145 = vld [vmem:[#allocation2 + $0x380] sm:$0xff]
    %v146 = vld [vmem:[#allocation2 + $0x388] sm:$0xff]
    %v147 = vld [vmem:[#allocation2 + $0x390] sm:$0xff]
    %v148 = vld [vmem:[#allocation2 + $0x398] sm:$0xff]
    %v149 = vld [vmem:[#allocation2 + $0x3a0] sm:$0xff]
    %v150 = vld [vmem:[#allocation2 + $0x3a8] sm:$0xff]
    %v151 = vld [vmem:[#allocation2 + $0x3b0] sm:$0xff]
    %v152 = vld [vmem:[#allocation2 + $0x3b8] sm:$0xff]
    %v153 = vld [vmem:[#allocation2 + $0x3c0] sm:$0xff]
    %v154 = vld [vmem:[#allocation2 + $0x3c8] sm:$0xff]
    %v155 = vld [vmem:[#allocation2 + $0x3d0] sm:$0xff]
    %v156 = vld [vmem:[#allocation2 + $0x3d8] sm:$0xff]
    %v157 = vld [vmem:[#allocation2 + $0x3e0] sm:$0xff]
    %v158 = vld [vmem:[#allocation2 + $0x3e8] sm:$0xff]
    %v159 = vld [vmem:[#allocation2 + $0x3f0] sm:$0xff]
    %v160 = vld [vmem:[#allocation2 + $0x3f8] sm:$0xff]
    %v161 = vld [vmem:[%s3] sm:$0xf]
    %v163 = vlaneseq
    %v164 = vshrl.u32 %v163, 7
    %v165 = vsub.s32 0, %v164
    %v166 = vrot.slane %v161, %v165
    %v167 = vlaneseq
    %v168 = vshrl.u32 %v167, 7
    %v169 = vsub.s32 1, %v168
    %v170 = vrot.slane %v161, %v169
    %v171 = vlaneseq
    %v172 = vshrl.u32 %v171, 7
    %v173 = vsub.s32 2, %v172
    %v174 = vrot.slane %v161, %v173
    %v175 = vlaneseq
    %v176 = vshrl.u32 %v175, 7
    %v177 = vsub.s32 3, %v176
    %v178 = vrot.slane %v161, %v177
    %183 = vmatprep.subr.mxu0 %v34
    %184 = vmatpush1.msra.mxu0 %v33
    %185 = vmatprep.subr.mxu0 %v38
    %186 = vmatpush1.msra.mxu0 %v37
    %187 = vmatprep.subr.mxu0 %v42
    %188 = vmatpush1.msra.mxu0 %v41
    %189 = vmatprep.subr.mxu0 %v46
    %190 = vmatpush1.msra.mxu0 %v45
    %191 = vmatprep.subr.mxu0 %v50
    %192 = vmatpush1.msra.mxu0 %v49
    %193 = vmatprep.subr.mxu0 %v54
    %194 = vmatpush1.msra.mxu0 %v53
    %195 = vmatprep.subr.mxu0 %v58
    %196 = vmatpush1.msra.mxu0 %v57
    %197 = vmatprep.subr.mxu0 %v62
    %198 = vmatpush1.msra.mxu0 %v61
    %199 = vmatprep.subr.mxu0 %v66
    %200 = vmatpush1.msra.mxu0 %v65
    %201 = vmatprep.subr.mxu0 %v70
    %202 = vmatpush1.msra.mxu0 %v69
    %203 = vmatprep.subr.mxu0 %v74
    %204 = vmatpush1.msra.mxu0 %v73
    %205 = vmatprep.subr.mxu0 %v78
    %206 = vmatpush1.msra.mxu0 %v77
    %207 = vmatprep.subr.mxu0 %v82
    %208 = vmatpush1.msra.mxu0 %v81
    %209 = vmatprep.subr.mxu0 %v86
    %210 = vmatpush1.msra.mxu0 %v85
    %211 = vmatprep.subr.mxu0 %v90
    %212 = vmatpush1.msra.mxu0 %v89
    %213 = vmatprep.subr.mxu0 %v94
    %214 = vmatpush1.msra.mxu0 %v93
    %215 = vmatprep.subr.mxu0 %v98
    %216 = vmatpush1.msra.mxu0 %v97
    %217 = vmatprep.subr.mxu0 %v102
    %218 = vmatpush1.msra.mxu0 %v101
    %219 = vmatprep.subr.mxu0 %v106
    %220 = vmatpush1.msra.mxu0 %v105
    %221 = vmatprep.subr.mxu0 %v110
    %222 = vmatpush1.msra.mxu0 %v109
    %223 = vmatprep.subr.mxu0 %v114
    %224 = vmatpush1.msra.mxu0 %v113
    %225 = vmatprep.subr.mxu0 %v118
    %226 = vmatpush1.msra.mxu0 %v117
    %227 = vmatprep.subr.mxu0 %v122
    %228 = vmatpush1.msra.mxu0 %v121
    %229 = vmatprep.subr.mxu0 %v126
    %230 = vmatpush1.msra.mxu0 %v125
    %231 = vmatprep.subr.mxu0 %v130
    %232 = vmatpush1.msra.mxu0 %v129
    %233 = vmatprep.subr.mxu0 %v134
    %234 = vmatpush1.msra.mxu0 %v133
    %235 = vmatprep.subr.mxu0 %v138
    %236 = vmatpush1.msra.mxu0 %v137
    %237 = vmatprep.subr.mxu0 %v142
    %238 = vmatpush1.msra.mxu0 %v141
    %239 = vmatprep.subr.mxu0 %v146
    %240 = vmatpush1.msra.mxu0 %v145
    %241 = vmatprep.subr.mxu0 %v150
    %242 = vmatpush1.msra.mxu0 %v149
    %243 = vmatprep.subr.mxu0 %v154
    %244 = vmatpush1.msra.mxu0 %v153
    %245 = vmatprep.subr.mxu0 %v158
    %246 = vmatpush1.msra.mxu0 %v157
    %247 = vmatprep.mubr.f32.mxu0 %v32
    %248 = vmatmul.mubr.f32.gmra.mrb[0].mxu0 %v31
    %v249 = vpop.f32.mrb[0].mxu0
    %v250 = vadd.f32 %v166, %v249
    %v251 = vpop.f32.mrb[0].mxu0
    %v252 = vadd.f32 %v170, %v251
    %253 = vdwg.mxu0
    %254 = vmatprep.subr.mxu0 %v36
    %255 = vmatpush1.msra.mxu0 %v35
    %256 = vmatprep.subr.mxu0 %v40
    %257 = vmatpush1.msra.mxu0 %v39
    %258 = vmatprep.subr.mxu0 %v44
    %259 = vmatpush1.msra.mxu0 %v43
    %260 = vmatprep.subr.mxu0 %v48
    %261 = vmatpush1.msra.mxu0 %v47
    %262 = vmatprep.subr.mxu0 %v52
    %263 = vmatpush1.msra.mxu0 %v51
    %264 = vmatprep.subr.mxu0 %v56
    %265 = vmatpush1.msra.mxu0 %v55
    %266 = vmatprep.subr.mxu0 %v60
    %267 = vmatpush1.msra.mxu0 %v59
    %268 = vmatprep.subr.mxu0 %v64
    %269 = vmatpush1.msra.mxu0 %v63
    %270 = vmatprep.subr.mxu0 %v68
    %271 = vmatpush1.msra.mxu0 %v67
    %272 = vmatprep.subr.mxu0 %v72
    %273 = vmatpush1.msra.mxu0 %v71
    %274 = vmatprep.subr.mxu0 %v76
    %275 = vmatpush1.msra.mxu0 %v75
    %276 = vmatprep.subr.mxu0 %v80
    %277 = vmatpush1.msra.mxu0 %v79
    %278 = vmatprep.subr.mxu0 %v84
    %279 = vmatpush1.msra.mxu0 %v83
    %280 = vmatprep.subr.mxu0 %v88
    %281 = vmatpush1.msra.mxu0 %v87
    %282 = vmatprep.subr.mxu0 %v92
    %283 = vmatpush1.msra.mxu0 %v91
    %284 = vmatprep.subr.mxu0 %v96
    %285 = vmatpush1.msra.mxu0 %v95
    %286 = vmatprep.subr.mxu0 %v100
    %287 = vmatpush1.msra.mxu0 %v99
    %288 = vmatprep.subr.mxu0 %v104
    %289 = vmatpush1.msra.mxu0 %v103
    %290 = vmatprep.subr.mxu0 %v108
    %291 = vmatpush1.msra.mxu0 %v107
    %292 = vmatprep.subr.mxu0 %v112
    %293 = vmatpush1.msra.mxu0 %v111
    %294 = vmatprep.subr.mxu0 %v116
    %295 = vmatpush1.msra.mxu0 %v115
    %296 = vmatprep.subr.mxu0 %v120
    %297 = vmatpush1.msra.mxu0 %v119
    %298 = vmatprep.subr.mxu0 %v124
    %299 = vmatpush1.msra.mxu0 %v123
    %300 = vmatprep.subr.mxu0 %v128
    %301 = vmatpush1.msra.mxu0 %v127
    %302 = vmatprep.subr.mxu0 %v132
    %303 = vmatpush1.msra.mxu0 %v131
    %304 = vmatprep.subr.mxu0 %v136
    %305 = vmatpush1.msra.mxu0 %v135
    %306 = vmatprep.subr.mxu0 %v140
    %307 = vmatpush1.msra.mxu0 %v139
    %308 = vmatprep.subr.mxu0 %v144
    %309 = vmatpush1.msra.mxu0 %v143
    %310 = vmatprep.subr.mxu0 %v148
    %311 = vmatpush1.msra.mxu0 %v147
    %312 = vmatprep.subr.mxu0 %v152
    %313 = vmatpush1.msra.mxu0 %v151
    %314 = vmatprep.subr.mxu0 %v156
    %315 = vmatpush1.msra.mxu0 %v155
    %316 = vmatprep.subr.mxu0 %v160
    %317 = vmatpush1.msra.mxu0 %v159
    %318 = vmatprep.mubr.f32.mxu0 %v32
    %319 = vmatmul.mubr.f32.gmra.mrb[0].mxu0 %v31
    %v320 = vpop.f32.mrb[0].mxu0
    %v321 = vadd.f32 %v174, %v320
    %v322 = vpop.f32.mrb[0].mxu0
    %v323 = vadd.f32 %v178, %v322
    %324 = vdwg.mxu0
    %v325 = vxor.u32 %v250, 2147483648
    %v326 = vmul.f32 %v325, 1.442695
    %v327 = vpow.pop %v326
    %v328 = vadd.f32 %v327, 1.0
    %v329 = vrcp.pop %v328
    %v330 = vmul.f32 1.0, %v329
    %v331 = vxor.u32 %v252, 2147483648
    %v332 = vmul.f32 %v331, 1.442695
    %v333 = vpow.pop %v332
    %v334 = vadd.f32 %v333, 1.0
    %v335 = vrcp.pop %v334
    %v336 = vmul.f32 1.0, %v335
    %v337 = vtanh.pop %v321
    %v338 = vxor.u32 %v323, 2147483648
    %v339 = vmul.f32 %v338, 1.442695
    %v340 = vpow.pop %v339
    %v341 = vadd.f32 %v340, 1.0
    %v342 = vrcp.pop %v341
    %v343 = vmul.f32 1.0, %v342
    %v344 = vld [vmem:[%s1] sm:$0xff]
    %v345 = vmul.f32 %v336, %v344
    %v346 = vmul.f32 %v330, %v337
    %v347 = vadd.f32 %v345, %v346
    %v348 = vtanh.pop %v347
    %v349 = vmul.f32 %v343, %v348
    %350 = vst [vmem:[%s4] sm:$0xff] %v349
    // Predicated region
    $region22: #{fwd.12} parent=1 // pred_check
      _
    $region23: #{fwd.12} parent=1 // pred_check_branch
      %352 = sbr.rel (0) target = $region25
    $region24: #{fwd.12} parent=1 // pred_region
      _
    $region25: #{fwd.12} parent=1 // pred_fallthru
      _
    // Predicated region
    $region26: #{fwd.12} parent=1 // pred_check
      _
    $region27: #{fwd.12} parent=1 // pred_check_branch
      %354 = sbr.rel (0) target = $region29
    $region28: #{fwd.12} parent=1 // pred_region
      _
    $region29: #{fwd.12} parent=1 // pred_fallthru
      _
    %355 = vsyncpa [#allocation3], 1

// kernel: fwd.11
$region0: #{fwd.11}
  #allocation0 [shape = 'u32[]', space=smem, size = 0x4, offset = 0x4, fixed_abs, tag = 'smem constant byte address 0x4 - core index']
  #allocation1 [shape = 'u32[144,128]{1,0:T(1,128)}', space=vmem, size = 0x12000, scoped, tag = 'internal scratch']
  %s0 = inlined_call_operand.vmem [shape: f32[8,128], index: 0, kind: input, shape index: {}]
  %s1 = inlined_call_operand.hbm [shape: f32[128,128], index: 1, kind: input, shape index: {}]
  %s2 = inlined_call_operand.vmem [shape: f32[1,128], index: 2, kind: input, shape index: {}]
  %s3 = inlined_call_operand.hbm [shape: f32[128,512], index: 3, kind: input, shape index: {}]
  %s4 = inlined_call_operand.vmem [shape: f32[1,512], index: 4, kind: input, shape index: {}]
  %s5 = inlined_call_operand.hbm [shape: f32[128,128], index: 5, kind: input, shape index: {}]
  %s6 = inlined_call_operand.vmem [shape: f32[1,128], index: 6, kind: input, shape index: {}]
  %s7 = inlined_call_operand.vmem [shape: f32[1,128], index: 7, kind: input, shape index: {}]
  %s8 = inlined_call_operand.vmem [shape: f32[8,128], index: 8, kind: output, shape index: {}]
  %s9 = sld [smem:[#allocation0]]
  $region54: #{fwd.11} parent=0
    _
  %s11 = ssub.s32 1, %s9
  %s12 = scalar_select 0, %s11, %s9
  $region1: #{fwd.11} parent=0
    #allocation2 [shape = 'u8[65536]{0}', space=vmem, size = 0x10000, scoped, tag = 'input window, operand 1, single buffered']
    #allocation3 [shape = 's32[1]{0}', space=sflag, size = 0x4, scoped, tag = 'scoped memory for fwd.11']
    #allocation4 [shape = 'u8[262144]{0}', space=vmem, size = 0x40000, scoped, tag = 'input window, operand 3, single buffered']
    #allocation5 [shape = 's32[1]{0}', space=sflag, size = 0x4, scoped, tag = 'scoped memory for fwd.11']
    #allocation6 [shape = 'u8[65536]{0}', space=vmem, size = 0x10000, scoped, tag = 'input window, operand 5, single buffered']
    %13 = vsyncpa [#allocation3], 0
    %14 = vsyncpa [#allocation5], 0
    // Predicated region
    $region2: #{fwd.11} parent=1 // pred_check
      _
    $region3: #{fwd.11} parent=1 // pred_check_branch
      %16 = sbr.rel (0) target = $region5
    $region4: #{fwd.11} parent=1 // pred_region
      _
    $region5: #{fwd.11} parent=1 // pred_fallthru
      _
    // Predicated region
    $region6: #{fwd.11} parent=1 // pred_check
      _
    $region7: #{fwd.11} parent=1 // pred_check_branch
      %18 = sbr.rel (0) target = $region9
    $region8: #{fwd.11} parent=1 // pred_region
      %s20 = ssub.s32 2048, 2048
      %21 = vsyncadd [#allocation3], %s20
      %s22 = sshll.u32 [#allocation2], 4
      %s23 = int_to_ptr.vmem [resolvable:$true] %s22
      %28 = dma.hbm_to_vmem [thread:$0]  %s1, 2048, %s23, [#allocation3], 128, 128, 8
    $region9: #{fwd.11} parent=1 // pred_fallthru
      _
    // Predicated region
    $region10: #{fwd.11} parent=1 // pred_check
      _
    $region11: #{fwd.11} parent=1 // pred_check_branch
      %30 = sbr.rel (0) target = $region13
    $region12: #{fwd.11} parent=1 // pred_region
      _
    $region13: #{fwd.11} parent=1 // pred_fallthru
      _
    // Predicated region
    $region14: #{fwd.11} parent=1 // pred_check
      _
    $region15: #{fwd.11} parent=1 // pred_check_branch
      %32 = sbr.rel (0) target = $region17
    $region16: #{fwd.11} parent=1 // pred_region
      %s34 = ssub.s32 8192, 8192
      %35 = vsyncadd [#allocation5], %s34
      %s36 = sshll.u32 [#allocation4], 4
      %s37 = int_to_ptr.vmem [resolvable:$true] %s36
      %42 = dma.hbm_to_vmem [thread:$0]  %s3, 8192, %s37, [#allocation5], 512, 512, 32
    $region17: #{fwd.11} parent=1 // pred_fallthru
      _
    // Predicated region
    $region18: #{fwd.11} parent=1 // pred_check
      _
    $region19: #{fwd.11} parent=1 // pred_check_branch
      %44 = sbr.rel (0) target = $region21
    $region20: #{fwd.11} parent=1 // pred_region
      _
    $region21: #{fwd.11} parent=1 // pred_fallthru
      _
    // Predicated region
    $region22: #{fwd.11} parent=1 // pred_check
      _
    $region23: #{fwd.11} parent=1 // pred_check_branch
      %46 = sbr.rel (0) target = $region25
    $region24: #{fwd.11} parent=1 // pred_region
      %s48 = ssub.s32 2048, 2048
      %49 = vsyncadd [#allocation5], %s48
      %s50 = sshll.u32 [#allocation6], 4
      %s51 = int_to_ptr.vmem [resolvable:$true] %s50
      %56 = dma.hbm_to_vmem [thread:$0]  %s5, 2048, %s51, [#allocation5], 128, 128, 8
    $region25: #{fwd.11} parent=1 // pred_fallthru
      _
    // Predicated region
    $region26: #{fwd.11} parent=1 // pred_check
      _
    $region27: #{fwd.11} parent=1 // pred_check_branch
      %58 = sbr.rel (0) target = $region29
    $region28: #{fwd.11} parent=1 // pred_region
      _
    $region29: #{fwd.11} parent=1 // pred_fallthru
      _
    // Predicated region
    $region30: #{fwd.11} parent=1 // pred_check
      _
    $region31: #{fwd.11} parent=1 // pred_check_branch
      %60 = sbr.rel (0) target = $region33
    $region32: #{fwd.11} parent=1 // pred_region
      _
    $region33: #{fwd.11} parent=1 // pred_fallthru
      _
    // Predicated region
    $region34: #{fwd.11} parent=1 // pred_check
      _
    $region35: #{fwd.11} parent=1 // pred_check_branch
      %62 = sbr.rel (0) target = $region37
    $region36: #{fwd.11} parent=1 // pred_region
      %63 = dma.done [#allocation3], 2048
    $region37: #{fwd.11} parent=1 // pred_fallthru
      _
    // Predicated region
    $region38: #{fwd.11} parent=1 // pred_check
      _
    $region39: #{fwd.11} parent=1 // pred_check_branch
      %65 = sbr.rel (0) target = $region41
    $region40: #{fwd.11} parent=1 // pred_region
      %66 = dma.done [#allocation5], 8192
    $region41: #{fwd.11} parent=1 // pred_fallthru
      _
    // Predicated region
    $region42: #{fwd.11} parent=1 // pred_check
      _
    $region43: #{fwd.11} parent=1 // pred_check_branch
      %68 = sbr.rel (0) target = $region45
    $region44: #{fwd.11} parent=1 // pred_region
      %69 = dma.done [#allocation5], 2048
    $region45: #{fwd.11} parent=1 // pred_fallthru
      _
    %v70 = vld [vmem:[%s0] sm:$0xff]
    %v71 = vld [vmem:[#allocation2] sm:$0xff]
    %v72 = vld [vmem:[#allocation2 + $0x8] sm:$0xff]
    %v73 = vld [vmem:[#allocation2 + $0x10] sm:$0xff]
    %v74 = vld [vmem:[#allocation2 + $0x18] sm:$0xff]
    %v75 = vld [vmem:[#allocation2 + $0x20] sm:$0xff]
    %v76 = vld [vmem:[#allocation2 + $0x28] sm:$0xff]
    %v77 = vld [vmem:[#allocation2 + $0x30] sm:$0xff]
    %v78 = vld [vmem:[#allocation2 + $0x38] sm:$0xff]
    %v79 = vld [vmem:[#allocation2 + $0x40] sm:$0xff]
    %v80 = vld [vmem:[#allocation2 + $0x48] sm:$0xff]
    %v81 = vld [vmem:[#allocation2 + $0x50] sm:$0xff]
    %v82 = vld [vmem:[#allocation2 + $0x58] sm:$0xff]
    %v83 = vld [vmem:[#allocation2 + $0x60] sm:$0xff]
    %v84 = vld [vmem:[#allocation2 + $0x68] sm:$0xff]
    %v85 = vld [vmem:[#allocation2 + $0x70] sm:$0xff]
    %v86 = vld [vmem:[#allocation2 + $0x78] sm:$0xff]
    %v87 = vld [vmem:[%s2] sm:$0x1]
    %v89 = vlaneseq
    %v90 = vshrl.u32 %v89, 7
    %v91 = vsub.s32 0, %v90
    %v92 = vrot.slane %v87, %v91
    %94 = vmatprep.subr.mxu0 0.0
    %95 = vmatpush1.msra.mxu0 %v71
    %96 = vmatprep.subr.mxu0 0.0
    %97 = vmatpush1.msra.mxu0 %v72
    %98 = vmatprep.subr.mxu0 0.0
    %99 = vmatpush1.msra.mxu0 %v73
    %100 = vmatprep.subr.mxu0 0.0
    %101 = vmatpush1.msra.mxu0 %v74
    %102 = vmatprep.subr.mxu0 0.0
    %103 = vmatpush1.msra.mxu0 %v75
    %104 = vmatprep.subr.mxu0 0.0
    %105 = vmatpush1.msra.mxu0 %v76
    %106 = vmatprep.subr.mxu0 0.0
    %107 = vmatpush1.msra.mxu0 %v77
    %108 = vmatprep.subr.mxu0 0.0
    %109 = vmatpush1.msra.mxu0 %v78
    %110 = vmatprep.subr.mxu0 0.0
    %111 = vmatpush1.msra.mxu0 %v79
    %112 = vmatprep.subr.mxu0 0.0
    %113 = vmatpush1.msra.mxu0 %v80
    %114 = vmatprep.subr.mxu0 0.0
    %115 = vmatpush1.msra.mxu0 %v81
    %116 = vmatprep.subr.mxu0 0.0
    %117 = vmatpush1.msra.mxu0 %v82
    %118 = vmatprep.subr.mxu0 0.0
    %119 = vmatpush1.msra.mxu0 %v83
    %120 = vmatprep.subr.mxu0 0.0
    %121 = vmatpush1.msra.mxu0 %v84
    %122 = vmatprep.subr.mxu0 0.0
    %123 = vmatpush1.msra.mxu0 %v85
    %124 = vmatprep.subr.mxu0 0.0
    %125 = vmatpush1.msra.mxu0 %v86
    %126 = vmatprep.subr.mxu0 0.0
    %127 = vmatpush1.msra.mxu0 0.0
    %128 = vmatprep.subr.mxu0 0.0
    %129 = vmatpush1.msra.mxu0 0.0
    %130 = vmatprep.subr.mxu0 0.0
    %131 = vmatpush1.msra.mxu0 0.0
    %132 = vmatprep.subr.mxu0 0.0
    %133 = vmatpush1.msra.mxu0 0.0
    %134 = vmatprep.subr.mxu0 0.0
    %135 = vmatpush1.msra.mxu0 0.0
    %136 = vmatprep.subr.mxu0 0.0
    %137 = vmatpush1.msra.mxu0 0.0
    %138 = vmatprep.subr.mxu0 0.0
    %139 = vmatpush1.msra.mxu0 0.0
    %140 = vmatprep.subr.mxu0 0.0
    %141 = vmatpush1.msra.mxu0 0.0
    %142 = vmatprep.subr.mxu0 0.0
    %143 = vmatpush1.msra.mxu0 0.0
    %144 = vmatprep.subr.mxu0 0.0
    %145 = vmatpush1.msra.mxu0 0.0
    %146 = vmatprep.subr.mxu0 0.0
    %147 = vmatpush1.msra.mxu0 0.0
    %148 = vmatprep.subr.mxu0 0.0
    %149 = vmatpush1.msra.mxu0 0.0
    %150 = vmatprep.subr.mxu0 0.0
    %151 = vmatpush1.msra.mxu0 0.0
    %152 = vmatprep.subr.mxu0 0.0
    %153 = vmatpush1.msra.mxu0 0.0
    %154 = vmatprep.subr.mxu0 0.0
    %155 = vmatpush1.msra.mxu0 0.0
    %156 = vmatprep.subr.mxu0 0.0
    %157 = vmatpush1.msra.mxu0 0.0
    %158 = vmatprep.mubr.f32.mxu0 0.0
    %159 = vmatmul.mubr.f32.gmra.mrb[0].mxu0 %v70
    %v160 = vpop.f32.mrb[0].mxu0
    %v161 = vadd.f32 %v92, %v160
    %v162 = vpop.f32.mrb[0].mxu0
    %163 = vdwg.mxu0
    %v164 = vld [vmem:[#allocation4] sm:$0xff]
    %v165 = vld [vmem:[#allocation4 + $0x8] sm:$0xff]
    %v166 = vld [vmem:[#allocation4 + $0x10] sm:$0xff]
    %v167 = vld [vmem:[#allocation4 + $0x18] sm:$0xff]
    %v168 = vld [vmem:[#allocation4 + $0x20] sm:$0xff]
    %v169 = vld [vmem:[#allocation4 + $0x28] sm:$0xff]
    %v170 = vld [vmem:[#allocation4 + $0x30] sm:$0xff]
    %v171 = vld [vmem:[#allocation4 + $0x38] sm:$0xff]
    %v172 = vld [vmem:[#allocation4 + $0x40] sm:$0xff]
    %v173 = vld [vmem:[#allocation4 + $0x48] sm:$0xff]
    %v174 = vld [vmem:[#allocation4 + $0x50] sm:$0xff]
    %v175 = vld [vmem:[#allocation4 + $0x58] sm:$0xff]
    %v176 = vld [vmem:[#allocation4 + $0x60] sm:$0xff]
    %v177 = vld [vmem:[#allocation4 + $0x68] sm:$0xff]
    %v178 = vld [vmem:[#allocation4 + $0x70] sm:$0xff]
    %v179 = vld [vmem:[#allocation4 + $0x78] sm:$0xff]
    %v180 = vld [vmem:[#allocation4 + $0x80] sm:$0xff]
    %v181 = vld [vmem:[#allocation4 + $0x88] sm:$0xff]
    %v182 = vld [vmem:[#allocation4 + $0x90] sm:$0xff]
    %v183 = vld [vmem:[#allocation4 + $0x98] sm:$0xff]
    %v184 = vld [vmem:[#allocation4 + $0xa0] sm:$0xff]
    %v185 = vld [vmem:[#allocation4 + $0xa8] sm:$0xff]
    %v186 = vld [vmem:[#allocation4 + $0xb0] sm:$0xff]
    %v187 = vld [vmem:[#allocation4 + $0xb8] sm:$0xff]
    %v188 = vld [vmem:[#allocation4 + $0xc0] sm:$0xff]
    %v189 = vld [vmem:[#allocation4 + $0xc8] sm:$0xff]
    %v190 = vld [vmem:[#allocation4 + $0xd0] sm:$0xff]
    %v191 = vld [vmem:[#allocation4 + $0xd8] sm:$0xff]
    %v192 = vld [vmem:[#allocation4 + $0xe0] sm:$0xff]
    %v193 = vld [vmem:[#allocation4 + $0xe8] sm:$0xff]
    %v194 = vld [vmem:[#allocation4 + $0xf0] sm:$0xff]
    %v195 = vld [vmem:[#allocation4 + $0xf8] sm:$0xff]
    %v196 = vld [vmem:[#allocation4 + $0x100] sm:$0xff]
    %v197 = vld [vmem:[#allocation4 + $0x108] sm:$0xff]
    %v198 = vld [vmem:[#allocation4 + $0x110] sm:$0xff]
    %v199 = vld [vmem:[#allocation4 + $0x118] sm:$0xff]
    %v200 = vld [vmem:[#allocation4 + $0x120] sm:$0xff]
    %v201 = vld [vmem:[#allocation4 + $0x128] sm:$0xff]
    %v202 = vld [vmem:[#allocation4 + $0x130] sm:$0xff]
    %v203 = vld [vmem:[#allocation4 + $0x138] sm:$0xff]
    %v204 = vld [vmem:[#allocation4 + $0x140] sm:$0xff]
    %v205 = vld [vmem:[#allocation4 + $0x148] sm:$0xff]
    %v206 = vld [vmem:[#allocation4 + $0x150] sm:$0xff]
    %v207 = vld [vmem:[#allocation4 + $0x158] sm:$0xff]
    %v208 = vld [vmem:[#allocation4 + $0x160] sm:$0xff]
    %v209 = vld [vmem:[#allocation4 + $0x168] sm:$0xff]
    %v210 = vld [vmem:[#allocation4 + $0x170] sm:$0xff]
    %v211 = vld [vmem:[#allocation4 + $0x178] sm:$0xff]
    %v212 = vld [vmem:[#allocation4 + $0x180] sm:$0xff]
    %v213 = vld [vmem:[#allocation4 + $0x188] sm:$0xff]
    %v214 = vld [vmem:[#allocation4 + $0x190] sm:$0xff]
    %v215 = vld [vmem:[#allocation4 + $0x198] sm:$0xff]
    %v216 = vld [vmem:[#allocation4 + $0x1a0] sm:$0xff]
    %v217 = vld [vmem:[#allocation4 + $0x1a8] sm:$0xff]
    %v218 = vld [vmem:[#allocation4 + $0x1b0] sm:$0xff]
    %v219 = vld [vmem:[#allocation4 + $0x1b8] sm:$0xff]
    %v220 = vld [vmem:[#allocation4 + $0x1c0] sm:$0xff]
    %v221 = vld [vmem:[#allocation4 + $0x1c8] sm:$0xff]
    %v222 = vld [vmem:[#allocation4 + $0x1d0] sm:$0xff]
    %v223 = vld [vmem:[#allocation4 + $0x1d8] sm:$0xff]
    %v224 = vld [vmem:[#allocation4 + $0x1e0] sm:$0xff]
    %v225 = vld [vmem:[#allocation4 + $0x1e8] sm:$0xff]
    %v226 = vld [vmem:[#allocation4 + $0x1f0] sm:$0xff]
    %v227 = vld [vmem:[#allocation4 + $0x1f8] sm:$0xff]
    %v228 = vld [vmem:[%s4] sm:$0xf]
    %v230 = vlaneseq
    %v231 = vshrl.u32 %v230, 7
    %v232 = vsub.s32 0, %v231
    %v233 = vrot.slane %v228, %v232
    %v234 = vlaneseq
    %v235 = vshrl.u32 %v234, 7
    %v236 = vsub.s32 2, %v235
    %v237 = vrot.slane %v228, %v236
    %v238 = vlaneseq
    %v239 = vshrl.u32 %v238, 7
    %v240 = vsub.s32 3, %v239
    %v241 = vrot.slane %v228, %v240
    %245 = vmatprep.subr.mxu0 %v165
    %246 = vmatpush1.msra.mxu0 %v164
    %247 = vmatprep.subr.mxu0 %v169
    %248 = vmatpush1.msra.mxu0 %v168
    %249 = vmatprep.subr.mxu0 %v173
    %250 = vmatpush1.msra.mxu0 %v172
    %251 = vmatprep.subr.mxu0 %v177
    %252 = vmatpush1.msra.mxu0 %v176
    %253 = vmatprep.subr.mxu0 %v181
    %254 = vmatpush1.msra.mxu0 %v180
    %255 = vmatprep.subr.mxu0 %v185
    %256 = vmatpush1.msra.mxu0 %v184
    %257 = vmatprep.subr.mxu0 %v189
    %258 = vmatpush1.msra.mxu0 %v188
    %259 = vmatprep.subr.mxu0 %v193
    %260 = vmatpush1.msra.mxu0 %v192
    %261 = vmatprep.subr.mxu0 %v197
    %262 = vmatpush1.msra.mxu0 %v196
    %263 = vmatprep.subr.mxu0 %v201
    %264 = vmatpush1.msra.mxu0 %v200
    %265 = vmatprep.subr.mxu0 %v205
    %266 = vmatpush1.msra.mxu0 %v204
    %267 = vmatprep.subr.mxu0 %v209
    %268 = vmatpush1.msra.mxu0 %v208
    %269 = vmatprep.subr.mxu0 %v213
    %270 = vmatpush1.msra.mxu0 %v212
    %271 = vmatprep.subr.mxu0 %v217
    %272 = vmatpush1.msra.mxu0 %v216
    %273 = vmatprep.subr.mxu0 %v221
    %274 = vmatpush1.msra.mxu0 %v220
    %275 = vmatprep.subr.mxu0 %v225
    %276 = vmatpush1.msra.mxu0 %v224
    %277 = vmatprep.subr.mxu0 0.0
    %278 = vmatpush1.msra.mxu0 0.0
    %279 = vmatprep.subr.mxu0 0.0
    %280 = vmatpush1.msra.mxu0 0.0
    %281 = vmatprep.subr.mxu0 0.0
    %282 = vmatpush1.msra.mxu0 0.0
    %283 = vmatprep.subr.mxu0 0.0
    %284 = vmatpush1.msra.mxu0 0.0
    %285 = vmatprep.subr.mxu0 0.0
    %286 = vmatpush1.msra.mxu0 0.0
    %287 = vmatprep.subr.mxu0 0.0
    %288 = vmatpush1.msra.mxu0 0.0
    %289 = vmatprep.subr.mxu0 0.0
    %290 = vmatpush1.msra.mxu0 0.0
    %291 = vmatprep.subr.mxu0 0.0
    %292 = vmatpush1.msra.mxu0 0.0
    %293 = vmatprep.subr.mxu0 0.0
    %294 = vmatpush1.msra.mxu0 0.0
    %295 = vmatprep.subr.mxu0 0.0
    %296 = vmatpush1.msra.mxu0 0.0
    %297 = vmatprep.subr.mxu0 0.0
    %298 = vmatpush1.msra.mxu0 0.0
    %299 = vmatprep.subr.mxu0 0.0
    %300 = vmatpush1.msra.mxu0 0.0
    %301 = vmatprep.subr.mxu0 0.0
    %302 = vmatpush1.msra.mxu0 0.0
    %303 = vmatprep.subr.mxu0 0.0
    %304 = vmatpush1.msra.mxu0 0.0
    %305 = vmatprep.subr.mxu0 0.0
    %306 = vmatpush1.msra.mxu0 0.0
    %307 = vmatprep.subr.mxu0 0.0
    %308 = vmatpush1.msra.mxu0 0.0
    %309 = vmatprep.mubr.f32.mxu0 0.0
    %310 = vmatmul.mubr.f32.gmra.mrb[0].mxu0 %v161
    %v311 = vpop.f32.mrb[0].mxu0
    %v312 = vadd.f32 %v233, %v311
    %v313 = vpop.f32.mrb[0].mxu0
    %314 = vdwg.mxu0
    %315 = vmatprep.subr.mxu0 %v167
    %316 = vmatpush1.msra.mxu0 %v166
    %317 = vmatprep.subr.mxu0 %v171
    %318 = vmatpush1.msra.mxu0 %v170
    %319 = vmatprep.subr.mxu0 %v175
    %320 = vmatpush1.msra.mxu0 %v174
    %321 = vmatprep.subr.mxu0 %v179
    %322 = vmatpush1.msra.mxu0 %v178
    %323 = vmatprep.subr.mxu0 %v183
    %324 = vmatpush1.msra.mxu0 %v182
    %325 = vmatprep.subr.mxu0 %v187
    %326 = vmatpush1.msra.mxu0 %v186
    %327 = vmatprep.subr.mxu0 %v191
    %328 = vmatpush1.msra.mxu0 %v190
    %329 = vmatprep.subr.mxu0 %v195
    %330 = vmatpush1.msra.mxu0 %v194
    %331 = vmatprep.subr.mxu0 %v199
    %332 = vmatpush1.msra.mxu0 %v198
    %333 = vmatprep.subr.mxu0 %v203
    %334 = vmatpush1.msra.mxu0 %v202
    %335 = vmatprep.subr.mxu0 %v207
    %336 = vmatpush1.msra.mxu0 %v206
    %337 = vmatprep.subr.mxu0 %v211
    %338 = vmatpush1.msra.mxu0 %v210
    %339 = vmatprep.subr.mxu0 %v215
    %340 = vmatpush1.msra.mxu0 %v214
    %341 = vmatprep.subr.mxu0 %v219
    %342 = vmatpush1.msra.mxu0 %v218
    %343 = vmatprep.subr.mxu0 %v223
    %344 = vmatpush1.msra.mxu0 %v222
    %345 = vmatprep.subr.mxu0 %v227
    %346 = vmatpush1.msra.mxu0 %v226
    %347 = vmatprep.subr.mxu0 0.0
    %348 = vmatpush1.msra.mxu0 0.0
    %349 = vmatprep.subr.mxu0 0.0
    %350 = vmatpush1.msra.mxu0 0.0
    %351 = vmatprep.subr.mxu0 0.0
    %352 = vmatpush1.msra.mxu0 0.0
    %353 = vmatprep.subr.mxu0 0.0
    %354 = vmatpush1.msra.mxu0 0.0
    %355 = vmatprep.subr.mxu0 0.0
    %356 = vmatpush1.msra.mxu0 0.0
    %357 = vmatprep.subr.mxu0 0.0
    %358 = vmatpush1.msra.mxu0 0.0
    %359 = vmatprep.subr.mxu0 0.0
    %360 = vmatpush1.msra.mxu0 0.0
    %361 = vmatprep.subr.mxu0 0.0
    %362 = vmatpush1.msra.mxu0 0.0
    %363 = vmatprep.subr.mxu0 0.0
    %364 = vmatpush1.msra.mxu0 0.0
    %365 = vmatprep.subr.mxu0 0.0
    %366 = vmatpush1.msra.mxu0 0.0
    %367 = vmatprep.subr.mxu0 0.0
    %368 = vmatpush1.msra.mxu0 0.0
    %369 = vmatprep.subr.mxu0 0.0
    %370 = vmatpush1.msra.mxu0 0.0
    %371 = vmatprep.subr.mxu0 0.0
    %372 = vmatpush1.msra.mxu0 0.0
    %373 = vmatprep.subr.mxu0 0.0
    %374 = vmatpush1.msra.mxu0 0.0
    %375 = vmatprep.subr.mxu0 0.0
    %376 = vmatpush1.msra.mxu0 0.0
    %377 = vmatprep.subr.mxu0 0.0
    %378 = vmatpush1.msra.mxu0 0.0
    %379 = vmatprep.mubr.f32.mxu0 0.0
    %380 = vmatmul.mubr.f32.gmra.mrb[0].mxu0 %v161
    %v381 = vpop.f32.mrb[0].mxu0
    %v382 = vadd.f32 %v237, %v381
    %v383 = vpop.f32.mrb[0].mxu0
    %v384 = vadd.f32 %v241, %v383
    %385 = vdwg.mxu0
    %v386 = vxor.u32 %v312, 2147483648
    %v387 = vmul.f32 %v386, 1.442695
    %v388 = vpow.pop %v387
    %v389 = vadd.f32 %v388, 1.0
    %v390 = vrcp.pop %v389
    %v391 = vmul.f32 1.0, %v390
    %v392 = vtanh.pop %v382
    %v393 = vxor.u32 %v384, 2147483648
    %v394 = vmul.f32 %v393, 1.442695
    %v395 = vpow.pop %v394
    %v396 = vadd.f32 %v395, 1.0
    %v397 = vrcp.pop %v396
    %v398 = vmul.f32 1.0, %v397
    %v399 = vmul.f32 %v391, %v392
    %v400 = vtanh.pop %v399
    %v401 = vmul.f32 %v398, %v400
    %v402 = vld [vmem:[#allocation6] sm:$0xff]
    %v403 = vld [vmem:[#allocation6 + $0x8] sm:$0xff]
    %v404 = vld [vmem:[#allocation6 + $0x10] sm:$0xff]
    %v405 = vld [vmem:[#allocation6 + $0x18] sm:$0xff]
    %v406 = vld [vmem:[#allocation6 + $0x20] sm:$0xff]
    %v407 = vld [vmem:[#allocation6 + $0x28] sm:$0xff]
    %v408 = vld [vmem:[#allocation6 + $0x30] sm:$0xff]
    %v409 = vld [vmem:[#allocation6 + $0x38] sm:$0xff]
    %v410 = vld [vmem:[#allocation6 + $0x40] sm:$0xff]
    %v411 = vld [vmem:[#allocation6 + $0x48] sm:$0xff]
    %v412 = vld [vmem:[#allocation6 + $0x50] sm:$0xff]
    %v413 = vld [vmem:[#allocation6 + $0x58] sm:$0xff]
    %v414 = vld [vmem:[#allocation6 + $0x60] sm:$0xff]
    %v415 = vld [vmem:[#allocation6 + $0x68] sm:$0xff]
    %v416 = vld [vmem:[#allocation6 + $0x70] sm:$0xff]
    %v417 = vld [vmem:[#allocation6 + $0x78] sm:$0xff]
    %v418 = vld [vmem:[%s6] sm:$0x1]
    %v420 = vlaneseq
    %v421 = vshrl.u32 %v420, 7
    %v422 = vsub.s32 0, %v421
    %v423 = vrot.slane %v418, %v422
    %425 = vmatprep.subr.mxu0 0.0
    %426 = vmatpush1.msra.mxu0 %v402
    %427 = vmatprep.subr.mxu0 0.0
    %428 = vmatpush1.msra.mxu0 %v403
    %429 = vmatprep.subr.mxu0 0.0
    %430 = vmatpush1.msra.mxu0 %v404
    %431 = vmatprep.subr.mxu0 0.0
    %432 = vmatpush1.msra.mxu0 %v405
    %433 = vmatprep.subr.mxu0 0.0
    %434 = vmatpush1.msra.mxu0 %v406
    %435 = vmatprep.subr.mxu0 0.0
    %436 = vmatpush1.msra.mxu0 %v407
    %437 = vmatprep.subr.mxu0 0.0
    %438 = vmatpush1.msra.mxu0 %v408
    %439 = vmatprep.subr.mxu0 0.0
    %440 = vmatpush1.msra.mxu0 %v409
    %441 = vmatprep.subr.mxu0 0.0
    %442 = vmatpush1.msra.mxu0 %v410
    %443 = vmatprep.subr.mxu0 0.0
    %444 = vmatpush1.msra.mxu0 %v411
    %445 = vmatprep.subr.mxu0 0.0
    %446 = vmatpush1.msra.mxu0 %v412
    %447 = vmatprep.subr.mxu0 0.0
    %448 = vmatpush1.msra.mxu0 %v413
    %449 = vmatprep.subr.mxu0 0.0
    %450 = vmatpush1.msra.mxu0 %v414
    %451 = vmatprep.subr.mxu0 0.0
    %452 = vmatpush1.msra.mxu0 %v415
    %453 = vmatprep.subr.mxu0 0.0
    %454 = vmatpush1.msra.mxu0 %v416
    %455 = vmatprep.subr.mxu0 0.0
    %456 = vmatpush1.msra.mxu0 %v417
    %457 = vmatprep.subr.mxu0 0.0
    %458 = vmatpush1.msra.mxu0 0.0
    %459 = vmatprep.subr.mxu0 0.0
    %460 = vmatpush1.msra.mxu0 0.0
    %461 = vmatprep.subr.mxu0 0.0
    %462 = vmatpush1.msra.mxu0 0.0
    %463 = vmatprep.subr.mxu0 0.0
    %464 = vmatpush1.msra.mxu0 0.0
    %465 = vmatprep.subr.mxu0 0.0
    %466 = vmatpush1.msra.mxu0 0.0
    %467 = vmatprep.subr.mxu0 0.0
    %468 = vmatpush1.msra.mxu0 0.0
    %469 = vmatprep.subr.mxu0 0.0
    %470 = vmatpush1.msra.mxu0 0.0
    %471 = vmatprep.subr.mxu0 0.0
    %472 = vmatpush1.msra.mxu0 0.0
    %473 = vmatprep.subr.mxu0 0.0
    %474 = vmatpush1.msra.mxu0 0.0
    %475 = vmatprep.subr.mxu0 0.0
    %476 = vmatpush1.msra.mxu0 0.0
    %477 = vmatprep.subr.mxu0 0.0
    %478 = vmatpush1.msra.mxu0 0.0
    %479 = vmatprep.subr.mxu0 0.0
    %480 = vmatpush1.msra.mxu0 0.0
    %481 = vmatprep.subr.mxu0 0.0
    %482 = vmatpush1.msra.mxu0 0.0
    %483 = vmatprep.subr.mxu0 0.0
    %484 = vmatpush1.msra.mxu0 0.0
    %485 = vmatprep.subr.mxu0 0.0
    %486 = vmatpush1.msra.mxu0 0.0
    %487 = vmatprep.subr.mxu0 0.0
    %488 = vmatpush1.msra.mxu0 0.0
    %489 = vmatprep.mubr.f32.mxu0 0.0
    %490 = vmatmul.mubr.f32.gmra.mrb[0].mxu0 %v401
    %v491 = vpop.f32.mrb[0].mxu0
    %v492 = vadd.f32 %v423, %v491
    %v493 = vpop.f32.mrb[0].mxu0
    %494 = vdwg.mxu0
    %v495 = vld [vmem:[%s7] sm:$0x1]
    %v497 = vlaneseq
    %v498 = vshrl.u32 %v497, 7
    %v499 = vsub.s32 0, %v498
    %v500 = vrot.slane %v495, %v499
    %v502 = vadd.f32 %v492, %v500
    %v503 = vtanh.pop %v502
    %504 = vst [vmem:[%s8] sm:$0xff] %v503
    // Predicated region
    $region46: #{fwd.11} parent=1 // pred_check
      _
    $region47: #{fwd.11} parent=1 // pred_check_branch
      %506 = sbr.rel (0) target = $region49
    $region48: #{fwd.11} parent=1 // pred_region
      _
    $region49: #{fwd.11} parent=1 // pred_fallthru
      _
    // Predicated region
    $region50: #{fwd.11} parent=1 // pred_check
      _
    $region51: #{fwd.11} parent=1 // pred_check_branch
      %508 = sbr.rel (0) target = $region53
    $region52: #{fwd.11} parent=1 // pred_region
      _
    $region53: #{fwd.11} parent=1 // pred_fallthru
      _
    %509 = vsyncpa [#allocation3], 1
    %510 = vsyncpa [#allocation5], 1

// kernel: fwd.16
$region0: #{fwd.16}
  #allocation0 [shape = 'u32[]', space=smem, size = 0x4, offset = 0x4, fixed_abs, tag = 'smem constant byte address 0x4 - core index']
  #allocation1 [shape = 'u32[144,128]{1,0:T(1,128)}', space=vmem, size = 0x12000, scoped, tag = 'internal scratch']
  %s0 = inlined_call_operand.vmem [shape: f32[8,128], index: 0, kind: input, shape index: {}]
  %s1 = inlined_call_operand.vmem [shape: f32[8,256], index: 1, kind: input, shape index: {}]
  %s2 = inlined_call_operand.vmem [shape: f32[8,128], index: 2, kind: input, shape index: {}]
  %s3 = inlined_call_operand.vmem [shape: f32[256,512], index: 3, kind: input, shape index: {}]
  %s4 = inlined_call_operand.vmem [shape: f32[1,512], index: 4, kind: input, shape index: {}]
  %s5 = inlined_call_operand.vmem [shape: f32[128,128], index: 5, kind: input, shape index: {}]
  %s6 = inlined_call_operand.vmem [shape: f32[128,128], index: 6, kind: input, shape index: {}]
  %s7 = inlined_call_operand.vmem [shape: f32[1,128], index: 7, kind: input, shape index: {}]
  %s8 = inlined_call_operand.vmem [shape: f32[1,128], index: 8, kind: input, shape index: {}]
  %s9 = inlined_call_operand.vmem [shape: f32[8,128], index: 9, kind: output, shape index: {0}]
  %s10 = inlined_call_operand.vmem [shape: f32[8,128], index: 10, kind: output, shape index: {1}]
  %11 = xla_tuple %s9, %s10
  %s12 = sld [smem:[#allocation0]]
  $region54: #{fwd.16} parent=0
    _
  %s14 = ssub.s32 1, %s12
  %s15 = scalar_select 0, %s14, %s12
  // Predicated region
  $region2: #{fwd.16} parent=0 // pred_check
    _
  $region3: #{fwd.16} parent=0 // pred_check_branch
    %17 = sbr.rel (0) target = $region5
  $region4: #{fwd.16} parent=0 // pred_region
    _
  $region5: #{fwd.16} parent=0 // pred_fallthru
    _
  // Predicated region
  $region6: #{fwd.16} parent=0 // pred_check
    _
  $region7: #{fwd.16} parent=0 // pred_check_branch
    %19 = sbr.rel (0) target = $region9
  $region8: #{fwd.16} parent=0 // pred_region
    _
  $region9: #{fwd.16} parent=0 // pred_fallthru
    _
  // Predicated region
  $region10: #{fwd.16} parent=0 // pred_check
    _
  $region11: #{fwd.16} parent=0 // pred_check_branch
    %21 = sbr.rel (0) target = $region13
  $region12: #{fwd.16} parent=0 // pred_region
    _
  $region13: #{fwd.16} parent=0 // pred_fallthru
    _
  // Predicated region
  $region14: #{fwd.16} parent=0 // pred_check
    _
  $region15: #{fwd.16} parent=0 // pred_check_branch
    %23 = sbr.rel (0) target = $region17
  $region16: #{fwd.16} parent=0 // pred_region
    _
  $region17: #{fwd.16} parent=0 // pred_fallthru
    _
  // Predicated region
  $region18: #{fwd.16} parent=0 // pred_check
    _
  $region19: #{fwd.16} parent=0 // pred_check_branch
    %25 = sbr.rel (0) target = $region21
  $region20: #{fwd.16} parent=0 // pred_region
    _
  $region21: #{fwd.16} parent=0 // pred_fallthru
    _
  // Predicated region
  $region22: #{fwd.16} parent=0 // pred_check
    _
  $region23: #{fwd.16} parent=0 // pred_check_branch
    %27 = sbr.rel (0) target = $region25
  $region24: #{fwd.16} parent=0 // pred_region
    _
  $region25: #{fwd.16} parent=0 // pred_fallthru
    _
  // Predicated region
  $region26: #{fwd.16} parent=0 // pred_check
    _
  $region27: #{fwd.16} parent=0 // pred_check_branch
    %29 = sbr.rel (0) target = $region29
  $region28: #{fwd.16} parent=0 // pred_region
    _
  $region29: #{fwd.16} parent=0 // pred_fallthru
    _
  // Predicated region
  $region30: #{fwd.16} parent=0 // pred_check
    _
  $region31: #{fwd.16} parent=0 // pred_check_branch
    %31 = sbr.rel (0) target = $region33
  $region32: #{fwd.16} parent=0 // pred_region
    _
  $region33: #{fwd.16} parent=0 // pred_fallthru
    _
  // Predicated region
  $region34: #{fwd.16} parent=0 // pred_check
    _
  $region35: #{fwd.16} parent=0 // pred_check_branch
    %33 = sbr.rel (0) target = $region37
  $region36: #{fwd.16} parent=0 // pred_region
    _
  $region37: #{fwd.16} parent=0 // pred_fallthru
    _
  %v34 = vld [vmem:[%s1] sm:$0xff]
  %v35 = vld [vmem:[%s1 + $0x8] sm:$0xff]
  %v36 = vld [vmem:[%s3] sm:$0xff]
  %v37 = vld [vmem:[%s3 + $0x8] sm:$0xff]
  %v38 = vld [vmem:[%s3 + $0x10] sm:$0xff]
  %v39 = vld [vmem:[%s3 + $0x18] sm:$0xff]
  %v40 = vld [vmem:[%s3 + $0x20] sm:$0xff]
  %v41 = vld [vmem:[%s3 + $0x28] sm:$0xff]
  %v42 = vld [vmem:[%s3 + $0x30] sm:$0xff]
  %v43 = vld [vmem:[%s3 + $0x38] sm:$0xff]
  %v44 = vld [vmem:[%s3 + $0x40] sm:$0xff]
  %v45 = vld [vmem:[%s3 + $0x48] sm:$0xff]
  %v46 = vld [vmem:[%s3 + $0x50] sm:$0xff]
  %v47 = vld [vmem:[%s3 + $0x58] sm:$0xff]
  %v48 = vld [vmem:[%s3 + $0x60] sm:$0xff]
  %v49 = vld [vmem:[%s3 + $0x68] sm:$0xff]
  %v50 = vld [vmem:[%s3 + $0x70] sm:$0xff]
  %v51 = vld [vmem:[%s3 + $0x78] sm:$0xff]
  %v52 = vld [vmem:[%s3 + $0x80] sm:$0xff]
  %v53 = vld [vmem:[%s3 + $0x88] sm:$0xff]
  %v54 = vld [vmem:[%s3 + $0x90] sm:$0xff]
  %v55 = vld [vmem:[%s3 + $0x98] sm:$0xff]
  %v56 = vld [vmem:[%s3 + $0xa0] sm:$0xff]
  %v57 = vld [vmem:[%s3 + $0xa8] sm:$0xff]
  %v58 = vld [vmem:[%s3 + $0xb0] sm:$0xff]
  %v59 = vld [vmem:[%s3 + $0xb8] sm:$0xff]
  %v60 = vld [vmem:[%s3 + $0xc0] sm:$0xff]
  %v61 = vld [vmem:[%s3 + $0xc8] sm:$0xff]
  %v62 = vld [vmem:[%s3 + $0xd0] sm:$0xff]
  %v63 = vld [vmem:[%s3 + $0xd8] sm:$0xff]
  %v64 = vld [vmem:[%s3 + $0xe0] sm:$0xff]
  %v65 = vld [vmem:[%s3 + $0xe8] sm:$0xff]
  %v66 = vld [vmem:[%s3 + $0xf0] sm:$0xff]
  %v67 = vld [vmem:[%s3 + $0xf8] sm:$0xff]
  %v68 = vld [vmem:[%s3 + $0x100] sm:$0xff]
  %v69 = vld [vmem:[%s3 + $0x108] sm:$0xff]
  %v70 = vld [vmem:[%s3 + $0x110] sm:$0xff]
  %v71 = vld [vmem:[%s3 + $0x118] sm:$0xff]
  %v72 = vld [vmem:[%s3 + $0x120] sm:$0xff]
  %v73 = vld [vmem:[%s3 + $0x128] sm:$0xff]
  %v74 = vld [vmem:[%s3 + $0x130] sm:$0xff]
  %v75 = vld [vmem:[%s3 + $0x138] sm:$0xff]
  %v76 = vld [vmem:[%s3 + $0x140] sm:$0xff]
  %v77 = vld [vmem:[%s3 + $0x148] sm:$0xff]
  %v78 = vld [vmem:[%s3 + $0x150] sm:$0xff]
  %v79 = vld [vmem:[%s3 + $0x158] sm:$0xff]
  %v80 = vld [vmem:[%s3 + $0x160] sm:$0xff]
  %v81 = vld [vmem:[%s3 + $0x168] sm:$0xff]
  %v82 = vld [vmem:[%s3 + $0x170] sm:$0xff]
  %v83 = vld [vmem:[%s3 + $0x178] sm:$0xff]
  %v84 = vld [vmem:[%s3 + $0x180] sm:$0xff]
  %v85 = vld [vmem:[%s3 + $0x188] sm:$0xff]
  %v86 = vld [vmem:[%s3 + $0x190] sm:$0xff]
  %v87 = vld [vmem:[%s3 + $0x198] sm:$0xff]
  %v88 = vld [vmem:[%s3 + $0x1a0] sm:$0xff]
  %v89 = vld [vmem:[%s3 + $0x1a8] sm:$0xff]
  %v90 = vld [vmem:[%s3 + $0x1b0] sm:$0xff]
  %v91 = vld [vmem:[%s3 + $0x1b8] sm:$0xff]
  %v92 = vld [vmem:[%s3 + $0x1c0] sm:$0xff]
  %v93 = vld [vmem:[%s3 + $0x1c8] sm:$0xff]
  %v94 = vld [vmem:[%s3 + $0x1d0] sm:$0xff]
  %v95 = vld [vmem:[%s3 + $0x1d8] sm:$0xff]
  %v96 = vld [vmem:[%s3 + $0x1e0] sm:$0xff]
  %v97 = vld [vmem:[%s3 + $0x1e8] sm:$0xff]
  %v98 = vld [vmem:[%s3 + $0x1f0] sm:$0xff]
  %v99 = vld [vmem:[%s3 + $0x1f8] sm:$0xff]
  %v100 = vld [vmem:[%s3 + $0x200] sm:$0xff]
  %v101 = vld [vmem:[%s3 + $0x208] sm:$0xff]
  %v102 = vld [vmem:[%s3 + $0x210] sm:$0xff]
  %v103 = vld [vmem:[%s3 + $0x218] sm:$0xff]
  %v104 = vld [vmem:[%s3 + $0x220] sm:$0xff]
  %v105 = vld [vmem:[%s3 + $0x228] sm:$0xff]
  %v106 = vld [vmem:[%s3 + $0x230] sm:$0xff]
  %v107 = vld [vmem:[%s3 + $0x238] sm:$0xff]
  %v108 = vld [vmem:[%s3 + $0x240] sm:$0xff]
  %v109 = vld [vmem:[%s3 + $0x248] sm:$0xff]
  %v110 = vld [vmem:[%s3 + $0x250] sm:$0xff]
  %v111 = vld [vmem:[%s3 + $0x258] sm:$0xff]
  %v112 = vld [vmem:[%s3 + $0x260] sm:$0xff]
  %v113 = vld [vmem:[%s3 + $0x268] sm:$0xff]
  %v114 = vld [vmem:[%s3 + $0x270] sm:$0xff]
  %v115 = vld [vmem:[%s3 + $0x278] sm:$0xff]
  %v116 = vld [vmem:[%s3 + $0x280] sm:$0xff]
  %v117 = vld [vmem:[%s3 + $0x288] sm:$0xff]
  %v118 = vld [vmem:[%s3 + $0x290] sm:$0xff]
  %v119 = vld [vmem:[%s3 + $0x298] sm:$0xff]
  %v120 = vld [vmem:[%s3 + $0x2a0] sm:$0xff]
  %v121 = vld [vmem:[%s3 + $0x2a8] sm:$0xff]
  %v122 = vld [vmem:[%s3 + $0x2b0] sm:$0xff]
  %v123 = vld [vmem:[%s3 + $0x2b8] sm:$0xff]
  %v124 = vld [vmem:[%s3 + $0x2c0] sm:$0xff]
  %v125 = vld [vmem:[%s3 + $0x2c8] sm:$0xff]
  %v126 = vld [vmem:[%s3 + $0x2d0] sm:$0xff]
  %v127 = vld [vmem:[%s3 + $0x2d8] sm:$0xff]
  %v128 = vld [vmem:[%s3 + $0x2e0] sm:$0xff]
  %v129 = vld [vmem:[%s3 + $0x2e8] sm:$0xff]
  %v130 = vld [vmem:[%s3 + $0x2f0] sm:$0xff]
  %v131 = vld [vmem:[%s3 + $0x2f8] sm:$0xff]
  %v132 = vld [vmem:[%s3 + $0x300] sm:$0xff]
  %v133 = vld [vmem:[%s3 + $0x308] sm:$0xff]
  %v134 = vld [vmem:[%s3 + $0x310] sm:$0xff]
  %v135 = vld [vmem:[%s3 + $0x318] sm:$0xff]
  %v136 = vld [vmem:[%s3 + $0x320] sm:$0xff]
  %v137 = vld [vmem:[%s3 + $0x328] sm:$0xff]
  %v138 = vld [vmem:[%s3 + $0x330] sm:$0xff]
  %v139 = vld [vmem:[%s3 + $0x338] sm:$0xff]
  %v140 = vld [vmem:[%s3 + $0x340] sm:$0xff]
  %v141 = vld [vmem:[%s3 + $0x348] sm:$0xff]
  %v142 = vld [vmem:[%s3 + $0x350] sm:$0xff]
  %v143 = vld [vmem:[%s3 + $0x358] sm:$0xff]
  %v144 = vld [vmem:[%s3 + $0x360] sm:$0xff]
  %v145 = vld [vmem:[%s3 + $0x368] sm:$0xff]
  %v146 = vld [vmem:[%s3 + $0x370] sm:$0xff]
  %v147 = vld [vmem:[%s3 + $0x378] sm:$0xff]
  %v148 = vld [vmem:[%s3 + $0x380] sm:$0xff]
  %v149 = vld [vmem:[%s3 + $0x388] sm:$0xff]
  %v150 = vld [vmem:[%s3 + $0x390] sm:$0xff]
  %v151 = vld [vmem:[%s3 + $0x398] sm:$0xff]
  %v152 = vld [vmem:[%s3 + $0x3a0] sm:$0xff]
  %v153 = vld [vmem:[%s3 + $0x3a8] sm:$0xff]
  %v154 = vld [vmem:[%s3 + $0x3b0] sm:$0xff]
  %v155 = vld [vmem:[%s3 + $0x3b8] sm:$0xff]
  %v156 = vld [vmem:[%s3 + $0x3c0] sm:$0xff]
  %v157 = vld [vmem:[%s3 + $0x3c8] sm:$0xff]
  %v158 = vld [vmem:[%s3 + $0x3d0] sm:$0xff]
  %v159 = vld [vmem:[%s3 + $0x3d8] sm:$0xff]
  %v160 = vld [vmem:[%s3 + $0x3e0] sm:$0xff]
  %v161 = vld [vmem:[%s3 + $0x3e8] sm:$0xff]
  %v162 = vld [vmem:[%s3 + $0x3f0] sm:$0xff]
  %v163 = vld [vmem:[%s3 + $0x3f8] sm:$0xff]
  %v164 = vld [vmem:[%s4] sm:$0xf]
  %v166 = vlaneseq
  %v167 = vshrl.u32 %v166, 7
  %v168 = vsub.s32 0, %v167
  %v169 = vrot.slane %v164, %v168
  %v170 = vlaneseq
  %v171 = vshrl.u32 %v170, 7
  %v172 = vsub.s32 1, %v171
  %v173 = vrot.slane %v164, %v172
  %v174 = vlaneseq
  %v175 = vshrl.u32 %v174, 7
  %v176 = vsub.s32 2, %v175
  %v177 = vrot.slane %v164, %v176
  %v178 = vlaneseq
  %v179 = vshrl.u32 %v178, 7
  %v180 = vsub.s32 3, %v179
  %v181 = vrot.slane %v164, %v180
  %186 = vmatprep.subr.mxu0 %v37
  %187 = vmatpush1.msra.mxu0 %v36
  %188 = vmatprep.subr.mxu0 %v41
  %189 = vmatpush1.msra.mxu0 %v40
  %190 = vmatprep.subr.mxu0 %v45
  %191 = vmatpush1.msra.mxu0 %v44
  %192 = vmatprep.subr.mxu0 %v49
  %193 = vmatpush1.msra.mxu0 %v48
  %194 = vmatprep.subr.mxu0 %v53
  %195 = vmatpush1.msra.mxu0 %v52
  %196 = vmatprep.subr.mxu0 %v57
  %197 = vmatpush1.msra.mxu0 %v56
  %198 = vmatprep.subr.mxu0 %v61
  %199 = vmatpush1.msra.mxu0 %v60
  %200 = vmatprep.subr.mxu0 %v65
  %201 = vmatpush1.msra.mxu0 %v64
  %202 = vmatprep.subr.mxu0 %v69
  %203 = vmatpush1.msra.mxu0 %v68
  %204 = vmatprep.subr.mxu0 %v73
  %205 = vmatpush1.msra.mxu0 %v72
  %206 = vmatprep.subr.mxu0 %v77
  %207 = vmatpush1.msra.mxu0 %v76
  %208 = vmatprep.subr.mxu0 %v81
  %209 = vmatpush1.msra.mxu0 %v80
  %210 = vmatprep.subr.mxu0 %v85
  %211 = vmatpush1.msra.mxu0 %v84
  %212 = vmatprep.subr.mxu0 %v89
  %213 = vmatpush1.msra.mxu0 %v88
  %214 = vmatprep.subr.mxu0 %v93
  %215 = vmatpush1.msra.mxu0 %v92
  %216 = vmatprep.subr.mxu0 %v97
  %217 = vmatpush1.msra.mxu0 %v96
  %218 = vmatprep.subr.mxu0 %v101
  %219 = vmatpush1.msra.mxu0 %v100
  %220 = vmatprep.subr.mxu0 %v105
  %221 = vmatpush1.msra.mxu0 %v104
  %222 = vmatprep.subr.mxu0 %v109
  %223 = vmatpush1.msra.mxu0 %v108
  %224 = vmatprep.subr.mxu0 %v113
  %225 = vmatpush1.msra.mxu0 %v112
  %226 = vmatprep.subr.mxu0 %v117
  %227 = vmatpush1.msra.mxu0 %v116
  %228 = vmatprep.subr.mxu0 %v121
  %229 = vmatpush1.msra.mxu0 %v120
  %230 = vmatprep.subr.mxu0 %v125
  %231 = vmatpush1.msra.mxu0 %v124
  %232 = vmatprep.subr.mxu0 %v129
  %233 = vmatpush1.msra.mxu0 %v128
  %234 = vmatprep.subr.mxu0 %v133
  %235 = vmatpush1.msra.mxu0 %v132
  %236 = vmatprep.subr.mxu0 %v137
  %237 = vmatpush1.msra.mxu0 %v136
  %238 = vmatprep.subr.mxu0 %v141
  %239 = vmatpush1.msra.mxu0 %v140
  %240 = vmatprep.subr.mxu0 %v145
  %241 = vmatpush1.msra.mxu0 %v144
  %242 = vmatprep.subr.mxu0 %v149
  %243 = vmatpush1.msra.mxu0 %v148
  %244 = vmatprep.subr.mxu0 %v153
  %245 = vmatpush1.msra.mxu0 %v152
  %246 = vmatprep.subr.mxu0 %v157
  %247 = vmatpush1.msra.mxu0 %v156
  %248 = vmatprep.subr.mxu0 %v161
  %249 = vmatpush1.msra.mxu0 %v160
  %250 = vmatprep.mubr.f32.mxu0 %v35
  %251 = vmatmul.mubr.f32.gmra.mrb[0].mxu0 %v34
  %v252 = vpop.f32.mrb[0].mxu0
  %v253 = vadd.f32 %v169, %v252
  %v254 = vpop.f32.mrb[0].mxu0
  %v255 = vadd.f32 %v173, %v254
  %256 = vdwg.mxu0
  %257 = vmatprep.subr.mxu0 %v39
  %258 = vmatpush1.msra.mxu0 %v38
  %259 = vmatprep.subr.mxu0 %v43
  %260 = vmatpush1.msra.mxu0 %v42
  %261 = vmatprep.subr.mxu0 %v47
  %262 = vmatpush1.msra.mxu0 %v46
  %263 = vmatprep.subr.mxu0 %v51
  %264 = vmatpush1.msra.mxu0 %v50
  %265 = vmatprep.subr.mxu0 %v55
  %266 = vmatpush1.msra.mxu0 %v54
  %267 = vmatprep.subr.mxu0 %v59
  %268 = vmatpush1.msra.mxu0 %v58
  %269 = vmatprep.subr.mxu0 %v63
  %270 = vmatpush1.msra.mxu0 %v62
  %271 = vmatprep.subr.mxu0 %v67
  %272 = vmatpush1.msra.mxu0 %v66
  %273 = vmatprep.subr.mxu0 %v71
  %274 = vmatpush1.msra.mxu0 %v70
  %275 = vmatprep.subr.mxu0 %v75
  %276 = vmatpush1.msra.mxu0 %v74
  %277 = vmatprep.subr.mxu0 %v79
  %278 = vmatpush1.msra.mxu0 %v78
  %279 = vmatprep.subr.mxu0 %v83
  %280 = vmatpush1.msra.mxu0 %v82
  %281 = vmatprep.subr.mxu0 %v87
  %282 = vmatpush1.msra.mxu0 %v86
  %283 = vmatprep.subr.mxu0 %v91
  %284 = vmatpush1.msra.mxu0 %v90
  %285 = vmatprep.subr.mxu0 %v95
  %286 = vmatpush1.msra.mxu0 %v94
  %287 = vmatprep.subr.mxu0 %v99
  %288 = vmatpush1.msra.mxu0 %v98
  %289 = vmatprep.subr.mxu0 %v103
  %290 = vmatpush1.msra.mxu0 %v102
  %291 = vmatprep.subr.mxu0 %v107
  %292 = vmatpush1.msra.mxu0 %v106
  %293 = vmatprep.subr.mxu0 %v111
  %294 = vmatpush1.msra.mxu0 %v110
  %295 = vmatprep.subr.mxu0 %v115
  %296 = vmatpush1.msra.mxu0 %v114
  %297 = vmatprep.subr.mxu0 %v119
  %298 = vmatpush1.msra.mxu0 %v118
  %299 = vmatprep.subr.mxu0 %v123
  %300 = vmatpush1.msra.mxu0 %v122
  %301 = vmatprep.subr.mxu0 %v127
  %302 = vmatpush1.msra.mxu0 %v126
  %303 = vmatprep.subr.mxu0 %v131
  %304 = vmatpush1.msra.mxu0 %v130
  %305 = vmatprep.subr.mxu0 %v135
  %306 = vmatpush1.msra.mxu0 %v134
  %307 = vmatprep.subr.mxu0 %v139
  %308 = vmatpush1.msra.mxu0 %v138
  %309 = vmatprep.subr.mxu0 %v143
  %310 = vmatpush1.msra.mxu0 %v142
  %311 = vmatprep.subr.mxu0 %v147
  %312 = vmatpush1.msra.mxu0 %v146
  %313 = vmatprep.subr.mxu0 %v151
  %314 = vmatpush1.msra.mxu0 %v150
  %315 = vmatprep.subr.mxu0 %v155
  %316 = vmatpush1.msra.mxu0 %v154
  %317 = vmatprep.subr.mxu0 %v159
  %318 = vmatpush1.msra.mxu0 %v158
  %319 = vmatprep.subr.mxu0 %v163
  %320 = vmatpush1.msra.mxu0 %v162
  %321 = vmatprep.mubr.f32.mxu0 %v35
  %322 = vmatmul.mubr.f32.gmra.mrb[0].mxu0 %v34
  %v323 = vpop.f32.mrb[0].mxu0
  %v324 = vadd.f32 %v177, %v323
  %v325 = vpop.f32.mrb[0].mxu0
  %v326 = vadd.f32 %v181, %v325
  %327 = vdwg.mxu0
  %v328 = vxor.u32 %v253, 2147483648
  %v329 = vmul.f32 %v328, 1.442695
  %v330 = vpow.pop %v329
  %v331 = vadd.f32 %v330, 1.0
  %v332 = vrcp.pop %v331
  %v333 = vmul.f32 1.0, %v332
  %v334 = vxor.u32 %v255, 2147483648
  %v335 = vmul.f32 %v334, 1.442695
  %v336 = vpow.pop %v335
  %v337 = vadd.f32 %v336, 1.0
  %v338 = vrcp.pop %v337
  %v339 = vmul.f32 1.0, %v338
  %v340 = vtanh.pop %v324
  %v341 = vxor.u32 %v326, 2147483648
  %v342 = vmul.f32 %v341, 1.442695
  %v343 = vpow.pop %v342
  %v344 = vadd.f32 %v343, 1.0
  %v345 = vrcp.pop %v344
  %v346 = vmul.f32 1.0, %v345
  %v347 = vld [vmem:[%s2] sm:$0xff]
  %v348 = vmul.f32 %v339, %v347
  %v349 = vmul.f32 %v333, %v340
  %v350 = vadd.f32 %v348, %v349
  %v351 = vtanh.pop %v350
  %v352 = vmul.f32 %v346, %v351
  %v353 = vld [vmem:[%s0] sm:$0xff]
  %v354 = vld [vmem:[%s5] sm:$0xff]
  %v355 = vld [vmem:[%s5 + $0x8] sm:$0xff]
  %v356 = vld [vmem:[%s5 + $0x10] sm:$0xff]
  %v357 = vld [vmem:[%s5 + $0x18] sm:$0xff]
  %v358 = vld [vmem:[%s5 + $0x20] sm:$0xff]
  %v359 = vld [vmem:[%s5 + $0x28] sm:$0xff]
  %v360 = vld [vmem:[%s5 + $0x30] sm:$0xff]
  %v361 = vld [vmem:[%s5 + $0x38] sm:$0xff]
  %v362 = vld [vmem:[%s5 + $0x40] sm:$0xff]
  %v363 = vld [vmem:[%s5 + $0x48] sm:$0xff]
  %v364 = vld [vmem:[%s5 + $0x50] sm:$0xff]
  %v365 = vld [vmem:[%s5 + $0x58] sm:$0xff]
  %v366 = vld [vmem:[%s5 + $0x60] sm:$0xff]
  %v367 = vld [vmem:[%s5 + $0x68] sm:$0xff]
  %v368 = vld [vmem:[%s5 + $0x70] sm:$0xff]
  %v369 = vld [vmem:[%s5 + $0x78] sm:$0xff]
  %v370 = vld [vmem:[%s7] sm:$0x1]
  %v372 = vlaneseq
  %v373 = vshrl.u32 %v372, 7
  %v374 = vsub.s32 0, %v373
  %v375 = vrot.slane %v370, %v374
  %377 = vmatprep.subr.mxu0 0.0
  %378 = vmatpush1.msra.mxu0 %v354
  %379 = vmatprep.subr.mxu0 0.0
  %380 = vmatpush1.msra.mxu0 %v355
  %381 = vmatprep.subr.mxu0 0.0
  %382 = vmatpush1.msra.mxu0 %v356
  %383 = vmatprep.subr.mxu0 0.0
  %384 = vmatpush1.msra.mxu0 %v357
  %385 = vmatprep.subr.mxu0 0.0
  %386 = vmatpush1.msra.mxu0 %v358
  %387 = vmatprep.subr.mxu0 0.0
  %388 = vmatpush1.msra.mxu0 %v359
  %389 = vmatprep.subr.mxu0 0.0
  %390 = vmatpush1.msra.mxu0 %v360
  %391 = vmatprep.subr.mxu0 0.0
  %392 = vmatpush1.msra.mxu0 %v361
  %393 = vmatprep.subr.mxu0 0.0
  %394 = vmatpush1.msra.mxu0 %v362
  %395 = vmatprep.subr.mxu0 0.0
  %396 = vmatpush1.msra.mxu0 %v363
  %397 = vmatprep.subr.mxu0 0.0
  %398 = vmatpush1.msra.mxu0 %v364
  %399 = vmatprep.subr.mxu0 0.0
  %400 = vmatpush1.msra.mxu0 %v365
  %401 = vmatprep.subr.mxu0 0.0
  %402 = vmatpush1.msra.mxu0 %v366
  %403 = vmatprep.subr.mxu0 0.0
  %404 = vmatpush1.msra.mxu0 %v367
  %405 = vmatprep.subr.mxu0 0.0
  %406 = vmatpush1.msra.mxu0 %v368
  %407 = vmatprep.subr.mxu0 0.0
  %408 = vmatpush1.msra.mxu0 %v369
  %409 = vmatprep.subr.mxu0 0.0
  %410 = vmatpush1.msra.mxu0 0.0
  %411 = vmatprep.subr.mxu0 0.0
  %412 = vmatpush1.msra.mxu0 0.0
  %413 = vmatprep.subr.mxu0 0.0
  %414 = vmatpush1.msra.mxu0 0.0
  %415 = vmatprep.subr.mxu0 0.0
  %416 = vmatpush1.msra.mxu0 0.0
  %417 = vmatprep.subr.mxu0 0.0
  %418 = vmatpush1.msra.mxu0 0.0
  %419 = vmatprep.subr.mxu0 0.0
  %420 = vmatpush1.msra.mxu0 0.0
  %421 = vmatprep.subr.mxu0 0.0
  %422 = vmatpush1.msra.mxu0 0.0
  %423 = vmatprep.subr.mxu0 0.0
  %424 = vmatpush1.msra.mxu0 0.0
  %425 = vmatprep.subr.mxu0 0.0
  %426 = vmatpush1.msra.mxu0 0.0
  %427 = vmatprep.subr.mxu0 0.0
  %428 = vmatpush1.msra.mxu0 0.0
  %429 = vmatprep.subr.mxu0 0.0
  %430 = vmatpush1.msra.mxu0 0.0
  %431 = vmatprep.subr.mxu0 0.0
  %432 = vmatpush1.msra.mxu0 0.0
  %433 = vmatprep.subr.mxu0 0.0
  %434 = vmatpush1.msra.mxu0 0.0
  %435 = vmatprep.subr.mxu0 0.0
  %436 = vmatpush1.msra.mxu0 0.0
  %437 = vmatprep.subr.mxu0 0.0
  %438 = vmatpush1.msra.mxu0 0.0
  %439 = vmatprep.subr.mxu0 0.0
  %440 = vmatpush1.msra.mxu0 0.0
  %441 = vmatprep.mubr.f32.mxu0 0.0
  %442 = vmatmul.mubr.f32.gmra.mrb[0].mxu0 %v353
  %v443 = vpop.f32.mrb[0].mxu0
  %v444 = vadd.f32 %v375, %v443
  %v445 = vpop.f32.mrb[0].mxu0
  %446 = vdwg.mxu0
  %v447 = vld [vmem:[%s6] sm:$0xff]
  %v448 = vld [vmem:[%s6 + $0x8] sm:$0xff]
  %v449 = vld [vmem:[%s6 + $0x10] sm:$0xff]
  %v450 = vld [vmem:[%s6 + $0x18] sm:$0xff]
  %v451 = vld [vmem:[%s6 + $0x20] sm:$0xff]
  %v452 = vld [vmem:[%s6 + $0x28] sm:$0xff]
  %v453 = vld [vmem:[%s6 + $0x30] sm:$0xff]
  %v454 = vld [vmem:[%s6 + $0x38] sm:$0xff]
  %v455 = vld [vmem:[%s6 + $0x40] sm:$0xff]
  %v456 = vld [vmem:[%s6 + $0x48] sm:$0xff]
  %v457 = vld [vmem:[%s6 + $0x50] sm:$0xff]
  %v458 = vld [vmem:[%s6 + $0x58] sm:$0xff]
  %v459 = vld [vmem:[%s6 + $0x60] sm:$0xff]
  %v460 = vld [vmem:[%s6 + $0x68] sm:$0xff]
  %v461 = vld [vmem:[%s6 + $0x70] sm:$0xff]
  %v462 = vld [vmem:[%s6 + $0x78] sm:$0xff]
  %463 = vmatprep.subr.mxu0 0.0
  %464 = vmatpush1.msra.mxu0 %v447
  %465 = vmatprep.subr.mxu0 0.0
  %466 = vmatpush1.msra.mxu0 %v448
  %467 = vmatprep.subr.mxu0 0.0
  %468 = vmatpush1.msra.mxu0 %v449
  %469 = vmatprep.subr.mxu0 0.0
  %470 = vmatpush1.msra.mxu0 %v450
  %471 = vmatprep.subr.mxu0 0.0
  %472 = vmatpush1.msra.mxu0 %v451
  %473 = vmatprep.subr.mxu0 0.0
  %474 = vmatpush1.msra.mxu0 %v452
  %475 = vmatprep.subr.mxu0 0.0
  %476 = vmatpush1.msra.mxu0 %v453
  %477 = vmatprep.subr.mxu0 0.0
  %478 = vmatpush1.msra.mxu0 %v454
  %479 = vmatprep.subr.mxu0 0.0
  %480 = vmatpush1.msra.mxu0 %v455
  %481 = vmatprep.subr.mxu0 0.0
  %482 = vmatpush1.msra.mxu0 %v456
  %483 = vmatprep.subr.mxu0 0.0
  %484 = vmatpush1.msra.mxu0 %v457
  %485 = vmatprep.subr.mxu0 0.0
  %486 = vmatpush1.msra.mxu0 %v458
  %487 = vmatprep.subr.mxu0 0.0
  %488 = vmatpush1.msra.mxu0 %v459
  %489 = vmatprep.subr.mxu0 0.0
  %490 = vmatpush1.msra.mxu0 %v460
  %491 = vmatprep.subr.mxu0 0.0
  %492 = vmatpush1.msra.mxu0 %v461
  %493 = vmatprep.subr.mxu0 0.0
  %494 = vmatpush1.msra.mxu0 %v462
  %495 = vmatprep.subr.mxu0 0.0
  %496 = vmatpush1.msra.mxu0 0.0
  %497 = vmatprep.subr.mxu0 0.0
  %498 = vmatpush1.msra.mxu0 0.0
  %499 = vmatprep.subr.mxu0 0.0
  %500 = vmatpush1.msra.mxu0 0.0
  %501 = vmatprep.subr.mxu0 0.0
  %502 = vmatpush1.msra.mxu0 0.0
  %503 = vmatprep.subr.mxu0 0.0
  %504 = vmatpush1.msra.mxu0 0.0
  %505 = vmatprep.subr.mxu0 0.0
  %506 = vmatpush1.msra.mxu0 0.0
  %507 = vmatprep.subr.mxu0 0.0
  %508 = vmatpush1.msra.mxu0 0.0
  %509 = vmatprep.subr.mxu0 0.0
  %510 = vmatpush1.msra.mxu0 0.0
  %511 = vmatprep.subr.mxu0 0.0
  %512 = vmatpush1.msra.mxu0 0.0
  %513 = vmatprep.subr.mxu0 0.0
  %514 = vmatpush1.msra.mxu0 0.0
  %515 = vmatprep.subr.mxu0 0.0
  %516 = vmatpush1.msra.mxu0 0.0
  %517 = vmatprep.subr.mxu0 0.0
  %518 = vmatpush1.msra.mxu0 0.0
  %519 = vmatprep.subr.mxu0 0.0
  %520 = vmatpush1.msra.mxu0 0.0
  %521 = vmatprep.subr.mxu0 0.0
  %522 = vmatpush1.msra.mxu0 0.0
  %523 = vmatprep.subr.mxu0 0.0
  %524 = vmatpush1.msra.mxu0 0.0
  %525 = vmatprep.subr.mxu0 0.0
  %526 = vmatpush1.msra.mxu0 0.0
  %527 = vmatprep.mubr.f32.mxu0 0.0
  %528 = vmatmul.mubr.f32.gmra.mrb[0].mxu0 %v352
  %v529 = vpop.f32.mrb[0].mxu0
  %v530 = vadd.f32 0.0, %v529
  %v531 = vpop.f32.mrb[0].mxu0
  %532 = vdwg.mxu0
  %v533 = vadd.f32 %v444, %v530
  %v534 = vld [vmem:[%s8] sm:$0x1]
  %v536 = vlaneseq
  %v537 = vshrl.u32 %v536, 7
  %v538 = vsub.s32 0, %v537
  %v539 = vrot.slane %v534, %v538
  %v541 = vadd.f32 %v533, %v539
  %v542 = vtanh.pop %v541
  %543 = vst [vmem:[%s9] sm:$0xff] %v542
  %544 = vst [vmem:[%s10] sm:$0xff] %v350
  // Predicated region
  $region38: #{fwd.16} parent=0 // pred_check
    _
  $region39: #{fwd.16} parent=0 // pred_check_branch
    %546 = sbr.rel (0) target = $region41
  $region40: #{fwd.16} parent=0 // pred_region
    _
  $region41: #{fwd.16} parent=0 // pred_fallthru
    _
  // Predicated region
  $region42: #{fwd.16} parent=0 // pred_check
    _
  $region43: #{fwd.16} parent=0 // pred_check_branch
    %548 = sbr.rel (0) target = $region45
  $region44: #{fwd.16} parent=0 // pred_region
    _
  $region45: #{fwd.16} parent=0 // pred_fallthru
    _
  // Predicated region
  $region46: #{fwd.16} parent=0 // pred_check
    _
  $region47: #{fwd.16} parent=0 // pred_check_branch
    %550 = sbr.rel (0) target = $region49
  $region48: #{fwd.16} parent=0 // pred_region
    _
  $region49: #{fwd.16} parent=0 // pred_fallthru
    _
  // Predicated region
  $region50: #{fwd.16} parent=0 // pred_check
    _
  $region51: #{fwd.16} parent=0 // pred_check_branch
    %552 = sbr.rel (0) target = $region53
  $region52: #{fwd.16} parent=0 // pred_region
    _
  $region53: #{fwd.16} parent=0 // pred_fallthru
    _

// kernel: fwd.19
$region0: #{fwd.19}
  #allocation0 [shape = 'u32[]', space=smem, size = 0x4, offset = 0x4, fixed_abs, tag = 'smem constant byte address 0x4 - core index']
  #allocation1 [shape = 'u32[144,128]{1,0:T(1,128)}', space=vmem, size = 0x12000, scoped, tag = 'internal scratch']
  %s0 = inlined_call_operand.vmem [shape: f32[8,6,128], index: 0, kind: input, shape index: {}, may-alias: {0,10}]
  %s1 = inlined_call_operand.vmem [shape: f32[8,128], index: 1, kind: input, shape index: {}]
  %s2 = inlined_call_operand.vmem [shape: f32[8,256], index: 2, kind: input, shape index: {}]
  %s3 = inlined_call_operand.vmem [shape: f32[8,128], index: 3, kind: input, shape index: {}]
  %s4 = inlined_call_operand.vmem [shape: f32[256,512], index: 4, kind: input, shape index: {}]
  %s5 = inlined_call_operand.vmem [shape: f32[1,512], index: 5, kind: input, shape index: {}]
  %s6 = inlined_call_operand.vmem [shape: f32[128,128], index: 6, kind: input, shape index: {}]
  %s7 = inlined_call_operand.vmem [shape: f32[128,128], index: 7, kind: input, shape index: {}]
  %s8 = inlined_call_operand.vmem [shape: f32[1,128], index: 8, kind: input, shape index: {}]
  %s9 = inlined_call_operand.vmem [shape: f32[1,128], index: 9, kind: input, shape index: {}]
  %s10 = inlined_call_operand.vmem [shape: f32[8,6,128], index: 10, kind: output, shape index: {0}, may-alias: {0,10}]
  %s11 = inlined_call_operand.hbm [shape: f32[8,128], index: 11, kind: output, shape index: {1}]
  %12 = xla_tuple %s10, %s11
  %s13 = scalar_lea.vmem %s10, 24
  %s14 = sld [smem:[#allocation0]]
  $region88: #{fwd.19} parent=0
    _
  %s16 = ssub.s32 1, %s14
  %s17 = scalar_select 0, %s16, %s14
  $region1: #{fwd.19} parent=0
    #allocation2 [shape = 'u8[4096]{0}', space=vmem, size = 0x1000, scoped, tag = 'output window, operand 0, single buffered']
    #allocation3 [shape = 'u8[4096]{0}', space=vmem, size = 0x1000, scoped, tag = 'output window, operand 1, single buffered']
    #allocation4 [shape = 's32[1]{0}', space=sflag, size = 0x4, scoped, tag = 'scoped memory for fwd.19']
    %18 = vsyncpa [#allocation4], 0
    // Predicated region
    $region2: #{fwd.19} parent=1 // pred_check
      _
    $region3: #{fwd.19} parent=1 // pred_check_branch
      %20 = sbr.rel (0) target = $region5
    $region4: #{fwd.19} parent=1 // pred_region
      _
    $region5: #{fwd.19} parent=1 // pred_fallthru
      _
    // Predicated region
    $region6: #{fwd.19} parent=1 // pred_check
      _
    $region7: #{fwd.19} parent=1 // pred_check_branch
      %22 = sbr.rel (0) target = $region9
    $region8: #{fwd.19} parent=1 // pred_region
      _
    $region9: #{fwd.19} parent=1 // pred_fallthru
      _
    // Predicated region
    $region10: #{fwd.19} parent=1 // pred_check
      _
    $region11: #{fwd.19} parent=1 // pred_check_branch
      %24 = sbr.rel (0) target = $region13
    $region12: #{fwd.19} parent=1 // pred_region
      _
    $region13: #{fwd.19} parent=1 // pred_fallthru
      _
    // Predicated region
    $region14: #{fwd.19} parent=1 // pred_check
      _
    $region15: #{fwd.19} parent=1 // pred_check_branch
      %26 = sbr.rel (0) target = $region17
    $region16: #{fwd.19} parent=1 // pred_region
      _
    $region17: #{fwd.19} parent=1 // pred_fallthru
      _
    // Predicated region
    $region18: #{fwd.19} parent=1 // pred_check
      _
    $region19: #{fwd.19} parent=1 // pred_check_branch
      %28 = sbr.rel (0) target = $region21
    $region20: #{fwd.19} parent=1 // pred_region
      _
    $region21: #{fwd.19} parent=1 // pred_fallthru
      _
    // Predicated region
    $region22: #{fwd.19} parent=1 // pred_check
      _
    $region23: #{fwd.19} parent=1 // pred_check_branch
      %30 = sbr.rel (0) target = $region25
    $region24: #{fwd.19} parent=1 // pred_region
      _
    $region25: #{fwd.19} parent=1 // pred_fallthru
      _
    // Predicated region
    $region26: #{fwd.19} parent=1 // pred_check
      _
    $region27: #{fwd.19} parent=1 // pred_check_branch
      %32 = sbr.rel (0) target = $region29
    $region28: #{fwd.19} parent=1 // pred_region
      _
    $region29: #{fwd.19} parent=1 // pred_fallthru
      _
    // Predicated region
    $region30: #{fwd.19} parent=1 // pred_check
      _
    $region31: #{fwd.19} parent=1 // pred_check_branch
      %34 = sbr.rel (0) target = $region33
    $region32: #{fwd.19} parent=1 // pred_region
      _
    $region33: #{fwd.19} parent=1 // pred_fallthru
      _
    // Predicated region
    $region34: #{fwd.19} parent=1 // pred_check
      _
    $region35: #{fwd.19} parent=1 // pred_check_branch
      %36 = sbr.rel (0) target = $region37
    $region36: #{fwd.19} parent=1 // pred_region
      _
    $region37: #{fwd.19} parent=1 // pred_fallthru
      _
    %v37 = vld [vmem:[%s2] sm:$0xff]
    %v38 = vld [vmem:[%s2 + $0x8] sm:$0xff]
    %v39 = vld [vmem:[%s4] sm:$0xff]
    %v40 = vld [vmem:[%s4 + $0x8] sm:$0xff]
    %v41 = vld [vmem:[%s4 + $0x10] sm:$0xff]
    %v42 = vld [vmem:[%s4 + $0x18] sm:$0xff]
    %v43 = vld [vmem:[%s4 + $0x20] sm:$0xff]
    %v44 = vld [vmem:[%s4 + $0x28] sm:$0xff]
    %v45 = vld [vmem:[%s4 + $0x30] sm:$0xff]
    %v46 = vld [vmem:[%s4 + $0x38] sm:$0xff]
    %v47 = vld [vmem:[%s4 + $0x40] sm:$0xff]
    %v48 = vld [vmem:[%s4 + $0x48] sm:$0xff]
    %v49 = vld [vmem:[%s4 + $0x50] sm:$0xff]
    %v50 = vld [vmem:[%s4 + $0x58] sm:$0xff]
    %v51 = vld [vmem:[%s4 + $0x60] sm:$0xff]
    %v52 = vld [vmem:[%s4 + $0x68] sm:$0xff]
    %v53 = vld [vmem:[%s4 + $0x70] sm:$0xff]
    %v54 = vld [vmem:[%s4 + $0x78] sm:$0xff]
    %v55 = vld [vmem:[%s4 + $0x80] sm:$0xff]
    %v56 = vld [vmem:[%s4 + $0x88] sm:$0xff]
    %v57 = vld [vmem:[%s4 + $0x90] sm:$0xff]
    %v58 = vld [vmem:[%s4 + $0x98] sm:$0xff]
    %v59 = vld [vmem:[%s4 + $0xa0] sm:$0xff]
    %v60 = vld [vmem:[%s4 + $0xa8] sm:$0xff]
    %v61 = vld [vmem:[%s4 + $0xb0] sm:$0xff]
    %v62 = vld [vmem:[%s4 + $0xb8] sm:$0xff]
    %v63 = vld [vmem:[%s4 + $0xc0] sm:$0xff]
    %v64 = vld [vmem:[%s4 + $0xc8] sm:$0xff]
    %v65 = vld [vmem:[%s4 + $0xd0] sm:$0xff]
    %v66 = vld [vmem:[%s4 + $0xd8] sm:$0xff]
    %v67 = vld [vmem:[%s4 + $0xe0] sm:$0xff]
    %v68 = vld [vmem:[%s4 + $0xe8] sm:$0xff]
    %v69 = vld [vmem:[%s4 + $0xf0] sm:$0xff]
    %v70 = vld [vmem:[%s4 + $0xf8] sm:$0xff]
    %v71 = vld [vmem:[%s4 + $0x100] sm:$0xff]
    %v72 = vld [vmem:[%s4 + $0x108] sm:$0xff]
    %v73 = vld [vmem:[%s4 + $0x110] sm:$0xff]
    %v74 = vld [vmem:[%s4 + $0x118] sm:$0xff]
    %v75 = vld [vmem:[%s4 + $0x120] sm:$0xff]
    %v76 = vld [vmem:[%s4 + $0x128] sm:$0xff]
    %v77 = vld [vmem:[%s4 + $0x130] sm:$0xff]
    %v78 = vld [vmem:[%s4 + $0x138] sm:$0xff]
    %v79 = vld [vmem:[%s4 + $0x140] sm:$0xff]
    %v80 = vld [vmem:[%s4 + $0x148] sm:$0xff]
    %v81 = vld [vmem:[%s4 + $0x150] sm:$0xff]
    %v82 = vld [vmem:[%s4 + $0x158] sm:$0xff]
    %v83 = vld [vmem:[%s4 + $0x160] sm:$0xff]
    %v84 = vld [vmem:[%s4 + $0x168] sm:$0xff]
    %v85 = vld [vmem:[%s4 + $0x170] sm:$0xff]
    %v86 = vld [vmem:[%s4 + $0x178] sm:$0xff]
    %v87 = vld [vmem:[%s4 + $0x180] sm:$0xff]
    %v88 = vld [vmem:[%s4 + $0x188] sm:$0xff]
    %v89 = vld [vmem:[%s4 + $0x190] sm:$0xff]
    %v90 = vld [vmem:[%s4 + $0x198] sm:$0xff]
    %v91 = vld [vmem:[%s4 + $0x1a0] sm:$0xff]
    %v92 = vld [vmem:[%s4 + $0x1a8] sm:$0xff]
    %v93 = vld [vmem:[%s4 + $0x1b0] sm:$0xff]
    %v94 = vld [vmem:[%s4 + $0x1b8] sm:$0xff]
    %v95 = vld [vmem:[%s4 + $0x1c0] sm:$0xff]
    %v96 = vld [vmem:[%s4 + $0x1c8] sm:$0xff]
    %v97 = vld [vmem:[%s4 + $0x1d0] sm:$0xff]
    %v98 = vld [vmem:[%s4 + $0x1d8] sm:$0xff]
    %v99 = vld [vmem:[%s4 + $0x1e0] sm:$0xff]
    %v100 = vld [vmem:[%s4 + $0x1e8] sm:$0xff]
    %v101 = vld [vmem:[%s4 + $0x1f0] sm:$0xff]
    %v102 = vld [vmem:[%s4 + $0x1f8] sm:$0xff]
    %v103 = vld [vmem:[%s4 + $0x200] sm:$0xff]
    %v104 = vld [vmem:[%s4 + $0x208] sm:$0xff]
    %v105 = vld [vmem:[%s4 + $0x210] sm:$0xff]
    %v106 = vld [vmem:[%s4 + $0x218] sm:$0xff]
    %v107 = vld [vmem:[%s4 + $0x220] sm:$0xff]
    %v108 = vld [vmem:[%s4 + $0x228] sm:$0xff]
    %v109 = vld [vmem:[%s4 + $0x230] sm:$0xff]
    %v110 = vld [vmem:[%s4 + $0x238] sm:$0xff]
    %v111 = vld [vmem:[%s4 + $0x240] sm:$0xff]
    %v112 = vld [vmem:[%s4 + $0x248] sm:$0xff]
    %v113 = vld [vmem:[%s4 + $0x250] sm:$0xff]
    %v114 = vld [vmem:[%s4 + $0x258] sm:$0xff]
    %v115 = vld [vmem:[%s4 + $0x260] sm:$0xff]
    %v116 = vld [vmem:[%s4 + $0x268] sm:$0xff]
    %v117 = vld [vmem:[%s4 + $0x270] sm:$0xff]
    %v118 = vld [vmem:[%s4 + $0x278] sm:$0xff]
    %v119 = vld [vmem:[%s4 + $0x280] sm:$0xff]
    %v120 = vld [vmem:[%s4 + $0x288] sm:$0xff]
    %v121 = vld [vmem:[%s4 + $0x290] sm:$0xff]
    %v122 = vld [vmem:[%s4 + $0x298] sm:$0xff]
    %v123 = vld [vmem:[%s4 + $0x2a0] sm:$0xff]
    %v124 = vld [vmem:[%s4 + $0x2a8] sm:$0xff]
    %v125 = vld [vmem:[%s4 + $0x2b0] sm:$0xff]
    %v126 = vld [vmem:[%s4 + $0x2b8] sm:$0xff]
    %v127 = vld [vmem:[%s4 + $0x2c0] sm:$0xff]
    %v128 = vld [vmem:[%s4 + $0x2c8] sm:$0xff]
    %v129 = vld [vmem:[%s4 + $0x2d0] sm:$0xff]
    %v130 = vld [vmem:[%s4 + $0x2d8] sm:$0xff]
    %v131 = vld [vmem:[%s4 + $0x2e0] sm:$0xff]
    %v132 = vld [vmem:[%s4 + $0x2e8] sm:$0xff]
    %v133 = vld [vmem:[%s4 + $0x2f0] sm:$0xff]
    %v134 = vld [vmem:[%s4 + $0x2f8] sm:$0xff]
    %v135 = vld [vmem:[%s4 + $0x300] sm:$0xff]
    %v136 = vld [vmem:[%s4 + $0x308] sm:$0xff]
    %v137 = vld [vmem:[%s4 + $0x310] sm:$0xff]
    %v138 = vld [vmem:[%s4 + $0x318] sm:$0xff]
    %v139 = vld [vmem:[%s4 + $0x320] sm:$0xff]
    %v140 = vld [vmem:[%s4 + $0x328] sm:$0xff]
    %v141 = vld [vmem:[%s4 + $0x330] sm:$0xff]
    %v142 = vld [vmem:[%s4 + $0x338] sm:$0xff]
    %v143 = vld [vmem:[%s4 + $0x340] sm:$0xff]
    %v144 = vld [vmem:[%s4 + $0x348] sm:$0xff]
    %v145 = vld [vmem:[%s4 + $0x350] sm:$0xff]
    %v146 = vld [vmem:[%s4 + $0x358] sm:$0xff]
    %v147 = vld [vmem:[%s4 + $0x360] sm:$0xff]
    %v148 = vld [vmem:[%s4 + $0x368] sm:$0xff]
    %v149 = vld [vmem:[%s4 + $0x370] sm:$0xff]
    %v150 = vld [vmem:[%s4 + $0x378] sm:$0xff]
    %v151 = vld [vmem:[%s4 + $0x380] sm:$0xff]
    %v152 = vld [vmem:[%s4 + $0x388] sm:$0xff]
    %v153 = vld [vmem:[%s4 + $0x390] sm:$0xff]
    %v154 = vld [vmem:[%s4 + $0x398] sm:$0xff]
    %v155 = vld [vmem:[%s4 + $0x3a0] sm:$0xff]
    %v156 = vld [vmem:[%s4 + $0x3a8] sm:$0xff]
    %v157 = vld [vmem:[%s4 + $0x3b0] sm:$0xff]
    %v158 = vld [vmem:[%s4 + $0x3b8] sm:$0xff]
    %v159 = vld [vmem:[%s4 + $0x3c0] sm:$0xff]
    %v160 = vld [vmem:[%s4 + $0x3c8] sm:$0xff]
    %v161 = vld [vmem:[%s4 + $0x3d0] sm:$0xff]
    %v162 = vld [vmem:[%s4 + $0x3d8] sm:$0xff]
    %v163 = vld [vmem:[%s4 + $0x3e0] sm:$0xff]
    %v164 = vld [vmem:[%s4 + $0x3e8] sm:$0xff]
    %v165 = vld [vmem:[%s4 + $0x3f0] sm:$0xff]
    %v166 = vld [vmem:[%s4 + $0x3f8] sm:$0xff]
    %v167 = vld [vmem:[%s5] sm:$0xf]
    %v169 = vlaneseq
    %v170 = vshrl.u32 %v169, 7
    %v171 = vsub.s32 0, %v170
    %v172 = vrot.slane %v167, %v171
    %v173 = vlaneseq
    %v174 = vshrl.u32 %v173, 7
    %v175 = vsub.s32 1, %v174
    %v176 = vrot.slane %v167, %v175
    %v177 = vlaneseq
    %v178 = vshrl.u32 %v177, 7
    %v179 = vsub.s32 2, %v178
    %v180 = vrot.slane %v167, %v179
    %v181 = vlaneseq
    %v182 = vshrl.u32 %v181, 7
    %v183 = vsub.s32 3, %v182
    %v184 = vrot.slane %v167, %v183
    %189 = vmatprep.subr.mxu0 %v40
    %190 = vmatpush1.msra.mxu0 %v39
    %191 = vmatprep.subr.mxu0 %v44
    %192 = vmatpush1.msra.mxu0 %v43
    %193 = vmatprep.subr.mxu0 %v48
    %194 = vmatpush1.msra.mxu0 %v47
    %195 = vmatprep.subr.mxu0 %v52
    %196 = vmatpush1.msra.mxu0 %v51
    %197 = vmatprep.subr.mxu0 %v56
    %198 = vmatpush1.msra.mxu0 %v55
    %199 = vmatprep.subr.mxu0 %v60
    %200 = vmatpush1.msra.mxu0 %v59
    %201 = vmatprep.subr.mxu0 %v64
    %202 = vmatpush1.msra.mxu0 %v63
    %203 = vmatprep.subr.mxu0 %v68
    %204 = vmatpush1.msra.mxu0 %v67
    %205 = vmatprep.subr.mxu0 %v72
    %206 = vmatpush1.msra.mxu0 %v71
    %207 = vmatprep.subr.mxu0 %v76
    %208 = vmatpush1.msra.mxu0 %v75
    %209 = vmatprep.subr.mxu0 %v80
    %210 = vmatpush1.msra.mxu0 %v79
    %211 = vmatprep.subr.mxu0 %v84
    %212 = vmatpush1.msra.mxu0 %v83
    %213 = vmatprep.subr.mxu0 %v88
    %214 = vmatpush1.msra.mxu0 %v87
    %215 = vmatprep.subr.mxu0 %v92
    %216 = vmatpush1.msra.mxu0 %v91
    %217 = vmatprep.subr.mxu0 %v96
    %218 = vmatpush1.msra.mxu0 %v95
    %219 = vmatprep.subr.mxu0 %v100
    %220 = vmatpush1.msra.mxu0 %v99
    %221 = vmatprep.subr.mxu0 %v104
    %222 = vmatpush1.msra.mxu0 %v103
    %223 = vmatprep.subr.mxu0 %v108
    %224 = vmatpush1.msra.mxu0 %v107
    %225 = vmatprep.subr.mxu0 %v112
    %226 = vmatpush1.msra.mxu0 %v111
    %227 = vmatprep.subr.mxu0 %v116
    %228 = vmatpush1.msra.mxu0 %v115
    %229 = vmatprep.subr.mxu0 %v120
    %230 = vmatpush1.msra.mxu0 %v119
    %231 = vmatprep.subr.mxu0 %v124
    %232 = vmatpush1.msra.mxu0 %v123
    %233 = vmatprep.subr.mxu0 %v128
    %234 = vmatpush1.msra.mxu0 %v127
    %235 = vmatprep.subr.mxu0 %v132
    %236 = vmatpush1.msra.mxu0 %v131
    %237 = vmatprep.subr.mxu0 %v136
    %238 = vmatpush1.msra.mxu0 %v135
    %239 = vmatprep.subr.mxu0 %v140
    %240 = vmatpush1.msra.mxu0 %v139
    %241 = vmatprep.subr.mxu0 %v144
    %242 = vmatpush1.msra.mxu0 %v143
    %243 = vmatprep.subr.mxu0 %v148
    %244 = vmatpush1.msra.mxu0 %v147
    %245 = vmatprep.subr.mxu0 %v152
    %246 = vmatpush1.msra.mxu0 %v151
    %247 = vmatprep.subr.mxu0 %v156
    %248 = vmatpush1.msra.mxu0 %v155
    %249 = vmatprep.subr.mxu0 %v160
    %250 = vmatpush1.msra.mxu0 %v159
    %251 = vmatprep.subr.mxu0 %v164
    %252 = vmatpush1.msra.mxu0 %v163
    %253 = vmatprep.mubr.f32.mxu0 %v38
    %254 = vmatmul.mubr.f32.gmra.mrb[0].mxu0 %v37
    %v255 = vpop.f32.mrb[0].mxu0
    %v256 = vadd.f32 %v172, %v255
    %v257 = vpop.f32.mrb[0].mxu0
    %v258 = vadd.f32 %v176, %v257
    %259 = vdwg.mxu0
    %260 = vmatprep.subr.mxu0 %v42
    %261 = vmatpush1.msra.mxu0 %v41
    %262 = vmatprep.subr.mxu0 %v46
    %263 = vmatpush1.msra.mxu0 %v45
    %264 = vmatprep.subr.mxu0 %v50
    %265 = vmatpush1.msra.mxu0 %v49
    %266 = vmatprep.subr.mxu0 %v54
    %267 = vmatpush1.msra.mxu0 %v53
    %268 = vmatprep.subr.mxu0 %v58
    %269 = vmatpush1.msra.mxu0 %v57
    %270 = vmatprep.subr.mxu0 %v62
    %271 = vmatpush1.msra.mxu0 %v61
    %272 = vmatprep.subr.mxu0 %v66
    %273 = vmatpush1.msra.mxu0 %v65
    %274 = vmatprep.subr.mxu0 %v70
    %275 = vmatpush1.msra.mxu0 %v69
    %276 = vmatprep.subr.mxu0 %v74
    %277 = vmatpush1.msra.mxu0 %v73
    %278 = vmatprep.subr.mxu0 %v78
    %279 = vmatpush1.msra.mxu0 %v77
    %280 = vmatprep.subr.mxu0 %v82
    %281 = vmatpush1.msra.mxu0 %v81
    %282 = vmatprep.subr.mxu0 %v86
    %283 = vmatpush1.msra.mxu0 %v85
    %284 = vmatprep.subr.mxu0 %v90
    %285 = vmatpush1.msra.mxu0 %v89
    %286 = vmatprep.subr.mxu0 %v94
    %287 = vmatpush1.msra.mxu0 %v93
    %288 = vmatprep.subr.mxu0 %v98
    %289 = vmatpush1.msra.mxu0 %v97
    %290 = vmatprep.subr.mxu0 %v102
    %291 = vmatpush1.msra.mxu0 %v101
    %292 = vmatprep.subr.mxu0 %v106
    %293 = vmatpush1.msra.mxu0 %v105
    %294 = vmatprep.subr.mxu0 %v110
    %295 = vmatpush1.msra.mxu0 %v109
    %296 = vmatprep.subr.mxu0 %v114
    %297 = vmatpush1.msra.mxu0 %v113
    %298 = vmatprep.subr.mxu0 %v118
    %299 = vmatpush1.msra.mxu0 %v117
    %300 = vmatprep.subr.mxu0 %v122
    %301 = vmatpush1.msra.mxu0 %v121
    %302 = vmatprep.subr.mxu0 %v126
    %303 = vmatpush1.msra.mxu0 %v125
    %304 = vmatprep.subr.mxu0 %v130
    %305 = vmatpush1.msra.mxu0 %v129
    %306 = vmatprep.subr.mxu0 %v134
    %307 = vmatpush1.msra.mxu0 %v133
    %308 = vmatprep.subr.mxu0 %v138
    %309 = vmatpush1.msra.mxu0 %v137
    %310 = vmatprep.subr.mxu0 %v142
    %311 = vmatpush1.msra.mxu0 %v141
    %312 = vmatprep.subr.mxu0 %v146
    %313 = vmatpush1.msra.mxu0 %v145
    %314 = vmatprep.subr.mxu0 %v150
    %315 = vmatpush1.msra.mxu0 %v149
    %316 = vmatprep.subr.mxu0 %v154
    %317 = vmatpush1.msra.mxu0 %v153
    %318 = vmatprep.subr.mxu0 %v158
    %319 = vmatpush1.msra.mxu0 %v157
    %320 = vmatprep.subr.mxu0 %v162
    %321 = vmatpush1.msra.mxu0 %v161
    %322 = vmatprep.subr.mxu0 %v166
    %323 = vmatpush1.msra.mxu0 %v165
    %324 = vmatprep.mubr.f32.mxu0 %v38
    %325 = vmatmul.mubr.f32.gmra.mrb[0].mxu0 %v37
    %v326 = vpop.f32.mrb[0].mxu0
    %v327 = vadd.f32 %v180, %v326
    %v328 = vpop.f32.mrb[0].mxu0
    %v329 = vadd.f32 %v184, %v328
    %330 = vdwg.mxu0
    %v331 = vxor.u32 %v256, 2147483648
    %v332 = vmul.f32 %v331, 1.442695
    %v333 = vpow.pop %v332
    %v334 = vadd.f32 %v333, 1.0
    %v335 = vrcp.pop %v334
    %v336 = vmul.f32 1.0, %v335
    %v337 = vxor.u32 %v258, 2147483648
    %v338 = vmul.f32 %v337, 1.442695
    %v339 = vpow.pop %v338
    %v340 = vadd.f32 %v339, 1.0
    %v341 = vrcp.pop %v340
    %v342 = vmul.f32 1.0, %v341
    %v343 = vtanh.pop %v327
    %v344 = vxor.u32 %v329, 2147483648
    %v345 = vmul.f32 %v344, 1.442695
    %v346 = vpow.pop %v345
    %v347 = vadd.f32 %v346, 1.0
    %v348 = vrcp.pop %v347
    %v349 = vmul.f32 1.0, %v348
    %v350 = vld [vmem:[%s3] sm:$0xff]
    %v351 = vmul.f32 %v342, %v350
    %v352 = vmul.f32 %v336, %v343
    %v353 = vadd.f32 %v351, %v352
    %v354 = vtanh.pop %v353
    %v355 = vmul.f32 %v349, %v354
    %v356 = vld [vmem:[%s1] sm:$0xff]
    %v357 = vld [vmem:[%s6] sm:$0xff]
    %v358 = vld [vmem:[%s6 + $0x8] sm:$0xff]
    %v359 = vld [vmem:[%s6 + $0x10] sm:$0xff]
    %v360 = vld [vmem:[%s6 + $0x18] sm:$0xff]
    %v361 = vld [vmem:[%s6 + $0x20] sm:$0xff]
    %v362 = vld [vmem:[%s6 + $0x28] sm:$0xff]
    %v363 = vld [vmem:[%s6 + $0x30] sm:$0xff]
    %v364 = vld [vmem:[%s6 + $0x38] sm:$0xff]
    %v365 = vld [vmem:[%s6 + $0x40] sm:$0xff]
    %v366 = vld [vmem:[%s6 + $0x48] sm:$0xff]
    %v367 = vld [vmem:[%s6 + $0x50] sm:$0xff]
    %v368 = vld [vmem:[%s6 + $0x58] sm:$0xff]
    %v369 = vld [vmem:[%s6 + $0x60] sm:$0xff]
    %v370 = vld [vmem:[%s6 + $0x68] sm:$0xff]
    %v371 = vld [vmem:[%s6 + $0x70] sm:$0xff]
    %v372 = vld [vmem:[%s6 + $0x78] sm:$0xff]
    %v373 = vld [vmem:[%s8] sm:$0x1]
    %v375 = vlaneseq
    %v376 = vshrl.u32 %v375, 7
    %v377 = vsub.s32 0, %v376
    %v378 = vrot.slane %v373, %v377
    %380 = vmatprep.subr.mxu0 0.0
    %381 = vmatpush1.msra.mxu0 %v357
    %382 = vmatprep.subr.mxu0 0.0
    %383 = vmatpush1.msra.mxu0 %v358
    %384 = vmatprep.subr.mxu0 0.0
    %385 = vmatpush1.msra.mxu0 %v359
    %386 = vmatprep.subr.mxu0 0.0
    %387 = vmatpush1.msra.mxu0 %v360
    %388 = vmatprep.subr.mxu0 0.0
    %389 = vmatpush1.msra.mxu0 %v361
    %390 = vmatprep.subr.mxu0 0.0
    %391 = vmatpush1.msra.mxu0 %v362
    %392 = vmatprep.subr.mxu0 0.0
    %393 = vmatpush1.msra.mxu0 %v363
    %394 = vmatprep.subr.mxu0 0.0
    %395 = vmatpush1.msra.mxu0 %v364
    %396 = vmatprep.subr.mxu0 0.0
    %397 = vmatpush1.msra.mxu0 %v365
    %398 = vmatprep.subr.mxu0 0.0
    %399 = vmatpush1.msra.mxu0 %v366
    %400 = vmatprep.subr.mxu0 0.0
    %401 = vmatpush1.msra.mxu0 %v367
    %402 = vmatprep.subr.mxu0 0.0
    %403 = vmatpush1.msra.mxu0 %v368
    %404 = vmatprep.subr.mxu0 0.0
    %405 = vmatpush1.msra.mxu0 %v369
    %406 = vmatprep.subr.mxu0 0.0
    %407 = vmatpush1.msra.mxu0 %v370
    %408 = vmatprep.subr.mxu0 0.0
    %409 = vmatpush1.msra.mxu0 %v371
    %410 = vmatprep.subr.mxu0 0.0
    %411 = vmatpush1.msra.mxu0 %v372
    %412 = vmatprep.subr.mxu0 0.0
    %413 = vmatpush1.msra.mxu0 0.0
    %414 = vmatprep.subr.mxu0 0.0
    %415 = vmatpush1.msra.mxu0 0.0
    %416 = vmatprep.subr.mxu0 0.0
    %417 = vmatpush1.msra.mxu0 0.0
    %418 = vmatprep.subr.mxu0 0.0
    %419 = vmatpush1.msra.mxu0 0.0
    %420 = vmatprep.subr.mxu0 0.0
    %421 = vmatpush1.msra.mxu0 0.0
    %422 = vmatprep.subr.mxu0 0.0
    %423 = vmatpush1.msra.mxu0 0.0
    %424 = vmatprep.subr.mxu0 0.0
    %425 = vmatpush1.msra.mxu0 0.0
    %426 = vmatprep.subr.mxu0 0.0
    %427 = vmatpush1.msra.mxu0 0.0
    %428 = vmatprep.subr.mxu0 0.0
    %429 = vmatpush1.msra.mxu0 0.0
    %430 = vmatprep.subr.mxu0 0.0
    %431 = vmatpush1.msra.mxu0 0.0
    %432 = vmatprep.subr.mxu0 0.0
    %433 = vmatpush1.msra.mxu0 0.0
    %434 = vmatprep.subr.mxu0 0.0
    %435 = vmatpush1.msra.mxu0 0.0
    %436 = vmatprep.subr.mxu0 0.0
    %437 = vmatpush1.msra.mxu0 0.0
    %438 = vmatprep.subr.mxu0 0.0
    %439 = vmatpush1.msra.mxu0 0.0
    %440 = vmatprep.subr.mxu0 0.0
    %441 = vmatpush1.msra.mxu0 0.0
    %442 = vmatprep.subr.mxu0 0.0
    %443 = vmatpush1.msra.mxu0 0.0
    %444 = vmatprep.mubr.f32.mxu0 0.0
    %445 = vmatmul.mubr.f32.gmra.mrb[0].mxu0 %v356
    %v446 = vpop.f32.mrb[0].mxu0
    %v447 = vadd.f32 %v378, %v446
    %v448 = vpop.f32.mrb[0].mxu0
    %449 = vdwg.mxu0
    %v450 = vld [vmem:[%s7] sm:$0xff]
    %v451 = vld [vmem:[%s7 + $0x8] sm:$0xff]
    %v452 = vld [vmem:[%s7 + $0x10] sm:$0xff]
    %v453 = vld [vmem:[%s7 + $0x18] sm:$0xff]
    %v454 = vld [vmem:[%s7 + $0x20] sm:$0xff]
    %v455 = vld [vmem:[%s7 + $0x28] sm:$0xff]
    %v456 = vld [vmem:[%s7 + $0x30] sm:$0xff]
    %v457 = vld [vmem:[%s7 + $0x38] sm:$0xff]
    %v458 = vld [vmem:[%s7 + $0x40] sm:$0xff]
    %v459 = vld [vmem:[%s7 + $0x48] sm:$0xff]
    %v460 = vld [vmem:[%s7 + $0x50] sm:$0xff]
    %v461 = vld [vmem:[%s7 + $0x58] sm:$0xff]
    %v462 = vld [vmem:[%s7 + $0x60] sm:$0xff]
    %v463 = vld [vmem:[%s7 + $0x68] sm:$0xff]
    %v464 = vld [vmem:[%s7 + $0x70] sm:$0xff]
    %v465 = vld [vmem:[%s7 + $0x78] sm:$0xff]
    %466 = vmatprep.subr.mxu0 0.0
    %467 = vmatpush1.msra.mxu0 %v450
    %468 = vmatprep.subr.mxu0 0.0
    %469 = vmatpush1.msra.mxu0 %v451
    %470 = vmatprep.subr.mxu0 0.0
    %471 = vmatpush1.msra.mxu0 %v452
    %472 = vmatprep.subr.mxu0 0.0
    %473 = vmatpush1.msra.mxu0 %v453
    %474 = vmatprep.subr.mxu0 0.0
    %475 = vmatpush1.msra.mxu0 %v454
    %476 = vmatprep.subr.mxu0 0.0
    %477 = vmatpush1.msra.mxu0 %v455
    %478 = vmatprep.subr.mxu0 0.0
    %479 = vmatpush1.msra.mxu0 %v456
    %480 = vmatprep.subr.mxu0 0.0
    %481 = vmatpush1.msra.mxu0 %v457
    %482 = vmatprep.subr.mxu0 0.0
    %483 = vmatpush1.msra.mxu0 %v458
    %484 = vmatprep.subr.mxu0 0.0
    %485 = vmatpush1.msra.mxu0 %v459
    %486 = vmatprep.subr.mxu0 0.0
    %487 = vmatpush1.msra.mxu0 %v460
    %488 = vmatprep.subr.mxu0 0.0
    %489 = vmatpush1.msra.mxu0 %v461
    %490 = vmatprep.subr.mxu0 0.0
    %491 = vmatpush1.msra.mxu0 %v462
    %492 = vmatprep.subr.mxu0 0.0
    %493 = vmatpush1.msra.mxu0 %v463
    %494 = vmatprep.subr.mxu0 0.0
    %495 = vmatpush1.msra.mxu0 %v464
    %496 = vmatprep.subr.mxu0 0.0
    %497 = vmatpush1.msra.mxu0 %v465
    %498 = vmatprep.subr.mxu0 0.0
    %499 = vmatpush1.msra.mxu0 0.0
    %500 = vmatprep.subr.mxu0 0.0
    %501 = vmatpush1.msra.mxu0 0.0
    %502 = vmatprep.subr.mxu0 0.0
    %503 = vmatpush1.msra.mxu0 0.0
    %504 = vmatprep.subr.mxu0 0.0
    %505 = vmatpush1.msra.mxu0 0.0
    %506 = vmatprep.subr.mxu0 0.0
    %507 = vmatpush1.msra.mxu0 0.0
    %508 = vmatprep.subr.mxu0 0.0
    %509 = vmatpush1.msra.mxu0 0.0
    %510 = vmatprep.subr.mxu0 0.0
    %511 = vmatpush1.msra.mxu0 0.0
    %512 = vmatprep.subr.mxu0 0.0
    %513 = vmatpush1.msra.mxu0 0.0
    %514 = vmatprep.subr.mxu0 0.0
    %515 = vmatpush1.msra.mxu0 0.0
    %516 = vmatprep.subr.mxu0 0.0
    %517 = vmatpush1.msra.mxu0 0.0
    %518 = vmatprep.subr.mxu0 0.0
    %519 = vmatpush1.msra.mxu0 0.0
    %520 = vmatprep.subr.mxu0 0.0
    %521 = vmatpush1.msra.mxu0 0.0
    %522 = vmatprep.subr.mxu0 0.0
    %523 = vmatpush1.msra.mxu0 0.0
    %524 = vmatprep.subr.mxu0 0.0
    %525 = vmatpush1.msra.mxu0 0.0
    %526 = vmatprep.subr.mxu0 0.0
    %527 = vmatpush1.msra.mxu0 0.0
    %528 = vmatprep.subr.mxu0 0.0
    %529 = vmatpush1.msra.mxu0 0.0
    %530 = vmatprep.mubr.f32.mxu0 0.0
    %531 = vmatmul.mubr.f32.gmra.mrb[0].mxu0 %v355
    %v532 = vpop.f32.mrb[0].mxu0
    %v533 = vadd.f32 0.0, %v532
    %v534 = vpop.f32.mrb[0].mxu0
    %535 = vdwg.mxu0
    %v536 = vadd.f32 %v447, %v533
    %v537 = vld [vmem:[%s9] sm:$0x1]
    %v539 = vlaneseq
    %v540 = vshrl.u32 %v539, 7
    %v541 = vsub.s32 0, %v540
    %v542 = vrot.slane %v537, %v541
    %v544 = vadd.f32 %v536, %v542
    %v545 = vtanh.pop %v544
    %546 = vst [vmem:[#allocation2] sm:$0xff] %v545
    %547 = vst [vmem:[#allocation3] sm:$0xff] %v353
    // Predicated region
    $region38: #{fwd.19} parent=1 // pred_check
      _
    $region39: #{fwd.19} parent=1 // pred_check_branch
      %549 = sbr.rel (0) target = $region41
    $region40: #{fwd.19} parent=1 // pred_region
      // Predicated region
      $region42: #{fwd.19} parent=40 // pred_check
        _
      $region43: #{fwd.19} parent=40 // pred_check_branch
        %551 = sbr.rel (0) target = $region45
      $region44: #{fwd.19} parent=40 // pred_region
        // Predicated region
        $region46: #{fwd.19} parent=44 // pred_check
          _
        $region47: #{fwd.19} parent=44 // pred_check_branch
          %553 = sbr.rel (0) target = $region49
        $region48: #{fwd.19} parent=44 // pred_region
          // Predicated region
          $region61: #{fwd.19} parent=48 // pred_check
            _
          $region62: #{fwd.19} parent=48 // pred_check_branch
            %568 = sbr.rel (0) target = $region64
          $region63: #{fwd.19} parent=48 // pred_region
            loop: start=0, step=1, limit=1
            $region65: #{fwd.19} parent=63 // loop_pre_header
              _
            $region66: #{fwd.19} parent=63 // loop_header
              %s570 = sphi 0, %s574
              %p571 = scmp.ge.s32.totalorder %s570, 1
              %s575 = sphi [#allocation2], [#allocation2]
              %s576 = sphi %s13, %s13
            $region67: #{fwd.19} parent=63 // loop_header_branch
              %573 = sbr.rel (%p571) target = $region71
            $region68: #{fwd.19} parent=63 // loop_body
              %v577 = vld [vmem:[%s575] sm:$0xff]
              %578 = vst [vmem:[%s576] sm:$0xff] %v577
            $region69: #{fwd.19} parent=63 // loop_footer
              %s574 = sadd.s32 1, %s570
            $region70: #{fwd.19} parent=63 // loop_footer_branch
              %569 = sbr.rel target = $region66
            $region71: #{fwd.19} parent=63 // loop_exit
              _
          $region64: #{fwd.19} parent=48 // pred_fallthru
            _
          // Predicated region
          $region72: #{fwd.19} parent=48 // pred_check
            _
          $region73: #{fwd.19} parent=48 // pred_check_branch
            %580 = sbr.rel target = $region75
          $region74: #{fwd.19} parent=48 // pred_region
            _
          $region75: #{fwd.19} parent=48 // pred_fallthru
            _
        $region49: #{fwd.19} parent=44 // pred_fallthru
          _
        // Predicated region
        $region50: #{fwd.19} parent=44 // pred_check
          _
        $region51: #{fwd.19} parent=44 // pred_check_branch
          %555 = sbr.rel target = $region53
        $region52: #{fwd.19} parent=44 // pred_region
          loop: start=0, step=1, limit=1
          $region54: #{fwd.19} parent=52 // loop_pre_header
            _
          $region55: #{fwd.19} parent=52 // loop_header
            %s558 = sphi 0, %s562
            %p559 = scmp.ge.s32.totalorder %s558, 1
            %s563 = sphi [#allocation2], [#allocation2]
            %s564 = sphi %s13, %s13
          $region56: #{fwd.19} parent=52 // loop_header_branch
            %561 = sbr.rel (%p559) target = $region60
          $region57: #{fwd.19} parent=52 // loop_body
            %v565 = vld [vmem:[%s563] sm:$0xff]
            %566 = vst [vmem:[%s564] sm:$0xff] %v565
          $region58: #{fwd.19} parent=52 // loop_footer
            %s562 = sadd.s32 1, %s558
          $region59: #{fwd.19} parent=52 // loop_footer_branch
            %557 = sbr.rel target = $region55
          $region60: #{fwd.19} parent=52 // loop_exit
            _
        $region53: #{fwd.19} parent=44 // pred_fallthru
          _
      $region45: #{fwd.19} parent=40 // pred_fallthru
        _
      %581 = vnop
    $region41: #{fwd.19} parent=1 // pred_fallthru
      _
    // Predicated region
    $region76: #{fwd.19} parent=1 // pred_check
      _
    $region77: #{fwd.19} parent=1 // pred_check_branch
      %583 = sbr.rel (0) target = $region79
    $region78: #{fwd.19} parent=1 // pred_region
      %s585 = ssub.s32 128, 128
      %586 = vsyncadd [#allocation4], %s585
      %s588 = sshll.u32 [#allocation3], 4
      %s589 = int_to_ptr.vmem [resolvable:$true] %s588
      %591 = dma.vmem_to_hbm [thread:$0]  %s589, 128, %s11, [#allocation4]
    $region79: #{fwd.19} parent=1 // pred_fallthru
      _
    // Predicated region
    $region80: #{fwd.19} parent=1 // pred_check
      _
    $region81: #{fwd.19} parent=1 // pred_check_branch
      %593 = sbr.rel (0) target = $region83
    $region82: #{fwd.19} parent=1 // pred_region
      _
    $region83: #{fwd.19} parent=1 // pred_fallthru
      _
    // Predicated region
    $region84: #{fwd.19} parent=1 // pred_check
      _
    $region85: #{fwd.19} parent=1 // pred_check_branch
      %595 = sbr.rel (0) target = $region87
    $region86: #{fwd.19} parent=1 // pred_region
      %596 = dma.done [#allocation4], 128
    $region87: #{fwd.19} parent=1 // pred_fallthru
      _
    %597 = vsyncpa [#allocation4], 1

// kernel: fwd.14
$region0: #{fwd.14}
  #allocation0 [shape = 'u32[]', space=smem, size = 0x4, offset = 0x4, fixed_abs, tag = 'smem constant byte address 0x4 - core index']
  #allocation1 [shape = 'u32[144,128]{1,0:T(1,128)}', space=vmem, size = 0x12000, scoped, tag = 'internal scratch']
  %s0 = inlined_call_operand.vmem [shape: f32[8,256], index: 0, kind: input, shape index: {}]
  %s1 = inlined_call_operand.vmem [shape: f32[8,128], index: 1, kind: input, shape index: {}]
  %s2 = inlined_call_operand.vmem [shape: f32[256,512], index: 2, kind: input, shape index: {}]
  %s3 = inlined_call_operand.vmem [shape: f32[1,512], index: 3, kind: input, shape index: {}]
  %s4 = inlined_call_operand.vmem [shape: f32[8,128], index: 4, kind: output, shape index: {}]
  %s5 = sld [smem:[#allocation0]]
  $region26: #{fwd.14} parent=0
    _
  %s7 = ssub.s32 1, %s5
  %s8 = scalar_select 0, %s7, %s5
  // Predicated region
  $region2: #{fwd.14} parent=0 // pred_check
    _
  $region3: #{fwd.14} parent=0 // pred_check_branch
    %10 = sbr.rel (0) target = $region5
  $region4: #{fwd.14} parent=0 // pred_region
    _
  $region5: #{fwd.14} parent=0 // pred_fallthru
    _
  // Predicated region
  $region6: #{fwd.14} parent=0 // pred_check
    _
  $region7: #{fwd.14} parent=0 // pred_check_branch
    %12 = sbr.rel (0) target = $region9
  $region8: #{fwd.14} parent=0 // pred_region
    _
  $region9: #{fwd.14} parent=0 // pred_fallthru
    _
  // Predicated region
  $region10: #{fwd.14} parent=0 // pred_check
    _
  $region11: #{fwd.14} parent=0 // pred_check_branch
    %14 = sbr.rel (0) target = $region13
  $region12: #{fwd.14} parent=0 // pred_region
    _
  $region13: #{fwd.14} parent=0 // pred_fallthru
    _
  // Predicated region
  $region14: #{fwd.14} parent=0 // pred_check
    _
  $region15: #{fwd.14} parent=0 // pred_check_branch
    %16 = sbr.rel (0) target = $region17
  $region16: #{fwd.14} parent=0 // pred_region
    _
  $region17: #{fwd.14} parent=0 // pred_fallthru
    _
  %v17 = vld [vmem:[%s0] sm:$0xff]
  %v18 = vld [vmem:[%s0 + $0x8] sm:$0xff]
  %v19 = vld [vmem:[%s2] sm:$0xff]
  %v20 = vld [vmem:[%s2 + $0x8] sm:$0xff]
  %v21 = vld [vmem:[%s2 + $0x10] sm:$0xff]
  %v22 = vld [vmem:[%s2 + $0x18] sm:$0xff]
  %v23 = vld [vmem:[%s2 + $0x20] sm:$0xff]
  %v24 = vld [vmem:[%s2 + $0x28] sm:$0xff]
  %v25 = vld [vmem:[%s2 + $0x30] sm:$0xff]
  %v26 = vld [vmem:[%s2 + $0x38] sm:$0xff]
  %v27 = vld [vmem:[%s2 + $0x40] sm:$0xff]
  %v28 = vld [vmem:[%s2 + $0x48] sm:$0xff]
  %v29 = vld [vmem:[%s2 + $0x50] sm:$0xff]
  %v30 = vld [vmem:[%s2 + $0x58] sm:$0xff]
  %v31 = vld [vmem:[%s2 + $0x60] sm:$0xff]
  %v32 = vld [vmem:[%s2 + $0x68] sm:$0xff]
  %v33 = vld [vmem:[%s2 + $0x70] sm:$0xff]
  %v34 = vld [vmem:[%s2 + $0x78] sm:$0xff]
  %v35 = vld [vmem:[%s2 + $0x80] sm:$0xff]
  %v36 = vld [vmem:[%s2 + $0x88] sm:$0xff]
  %v37 = vld [vmem:[%s2 + $0x90] sm:$0xff]
  %v38 = vld [vmem:[%s2 + $0x98] sm:$0xff]
  %v39 = vld [vmem:[%s2 + $0xa0] sm:$0xff]
  %v40 = vld [vmem:[%s2 + $0xa8] sm:$0xff]
  %v41 = vld [vmem:[%s2 + $0xb0] sm:$0xff]
  %v42 = vld [vmem:[%s2 + $0xb8] sm:$0xff]
  %v43 = vld [vmem:[%s2 + $0xc0] sm:$0xff]
  %v44 = vld [vmem:[%s2 + $0xc8] sm:$0xff]
  %v45 = vld [vmem:[%s2 + $0xd0] sm:$0xff]
  %v46 = vld [vmem:[%s2 + $0xd8] sm:$0xff]
  %v47 = vld [vmem:[%s2 + $0xe0] sm:$0xff]
  %v48 = vld [vmem:[%s2 + $0xe8] sm:$0xff]
  %v49 = vld [vmem:[%s2 + $0xf0] sm:$0xff]
  %v50 = vld [vmem:[%s2 + $0xf8] sm:$0xff]
  %v51 = vld [vmem:[%s2 + $0x100] sm:$0xff]
  %v52 = vld [vmem:[%s2 + $0x108] sm:$0xff]
  %v53 = vld [vmem:[%s2 + $0x110] sm:$0xff]
  %v54 = vld [vmem:[%s2 + $0x118] sm:$0xff]
  %v55 = vld [vmem:[%s2 + $0x120] sm:$0xff]
  %v56 = vld [vmem:[%s2 + $0x128] sm:$0xff]
  %v57 = vld [vmem:[%s2 + $0x130] sm:$0xff]
  %v58 = vld [vmem:[%s2 + $0x138] sm:$0xff]
  %v59 = vld [vmem:[%s2 + $0x140] sm:$0xff]
  %v60 = vld [vmem:[%s2 + $0x148] sm:$0xff]
  %v61 = vld [vmem:[%s2 + $0x150] sm:$0xff]
  %v62 = vld [vmem:[%s2 + $0x158] sm:$0xff]
  %v63 = vld [vmem:[%s2 + $0x160] sm:$0xff]
  %v64 = vld [vmem:[%s2 + $0x168] sm:$0xff]
  %v65 = vld [vmem:[%s2 + $0x170] sm:$0xff]
  %v66 = vld [vmem:[%s2 + $0x178] sm:$0xff]
  %v67 = vld [vmem:[%s2 + $0x180] sm:$0xff]
  %v68 = vld [vmem:[%s2 + $0x188] sm:$0xff]
  %v69 = vld [vmem:[%s2 + $0x190] sm:$0xff]
  %v70 = vld [vmem:[%s2 + $0x198] sm:$0xff]
  %v71 = vld [vmem:[%s2 + $0x1a0] sm:$0xff]
  %v72 = vld [vmem:[%s2 + $0x1a8] sm:$0xff]
  %v73 = vld [vmem:[%s2 + $0x1b0] sm:$0xff]
  %v74 = vld [vmem:[%s2 + $0x1b8] sm:$0xff]
  %v75 = vld [vmem:[%s2 + $0x1c0] sm:$0xff]
  %v76 = vld [vmem:[%s2 + $0x1c8] sm:$0xff]
  %v77 = vld [vmem:[%s2 + $0x1d0] sm:$0xff]
  %v78 = vld [vmem:[%s2 + $0x1d8] sm:$0xff]
  %v79 = vld [vmem:[%s2 + $0x1e0] sm:$0xff]
  %v80 = vld [vmem:[%s2 + $0x1e8] sm:$0xff]
  %v81 = vld [vmem:[%s2 + $0x1f0] sm:$0xff]
  %v82 = vld [vmem:[%s2 + $0x1f8] sm:$0xff]
  %v83 = vld [vmem:[%s2 + $0x200] sm:$0xff]
  %v84 = vld [vmem:[%s2 + $0x208] sm:$0xff]
  %v85 = vld [vmem:[%s2 + $0x210] sm:$0xff]
  %v86 = vld [vmem:[%s2 + $0x218] sm:$0xff]
  %v87 = vld [vmem:[%s2 + $0x220] sm:$0xff]
  %v88 = vld [vmem:[%s2 + $0x228] sm:$0xff]
  %v89 = vld [vmem:[%s2 + $0x230] sm:$0xff]
  %v90 = vld [vmem:[%s2 + $0x238] sm:$0xff]
  %v91 = vld [vmem:[%s2 + $0x240] sm:$0xff]
  %v92 = vld [vmem:[%s2 + $0x248] sm:$0xff]
  %v93 = vld [vmem:[%s2 + $0x250] sm:$0xff]
  %v94 = vld [vmem:[%s2 + $0x258] sm:$0xff]
  %v95 = vld [vmem:[%s2 + $0x260] sm:$0xff]
  %v96 = vld [vmem:[%s2 + $0x268] sm:$0xff]
  %v97 = vld [vmem:[%s2 + $0x270] sm:$0xff]
  %v98 = vld [vmem:[%s2 + $0x278] sm:$0xff]
  %v99 = vld [vmem:[%s2 + $0x280] sm:$0xff]
  %v100 = vld [vmem:[%s2 + $0x288] sm:$0xff]
  %v101 = vld [vmem:[%s2 + $0x290] sm:$0xff]
  %v102 = vld [vmem:[%s2 + $0x298] sm:$0xff]
  %v103 = vld [vmem:[%s2 + $0x2a0] sm:$0xff]
  %v104 = vld [vmem:[%s2 + $0x2a8] sm:$0xff]
  %v105 = vld [vmem:[%s2 + $0x2b0] sm:$0xff]
  %v106 = vld [vmem:[%s2 + $0x2b8] sm:$0xff]
  %v107 = vld [vmem:[%s2 + $0x2c0] sm:$0xff]
  %v108 = vld [vmem:[%s2 + $0x2c8] sm:$0xff]
  %v109 = vld [vmem:[%s2 + $0x2d0] sm:$0xff]
  %v110 = vld [vmem:[%s2 + $0x2d8] sm:$0xff]
  %v111 = vld [vmem:[%s2 + $0x2e0] sm:$0xff]
  %v112 = vld [vmem:[%s2 + $0x2e8] sm:$0xff]
  %v113 = vld [vmem:[%s2 + $0x2f0] sm:$0xff]
  %v114 = vld [vmem:[%s2 + $0x2f8] sm:$0xff]
  %v115 = vld [vmem:[%s2 + $0x300] sm:$0xff]
  %v116 = vld [vmem:[%s2 + $0x308] sm:$0xff]
  %v117 = vld [vmem:[%s2 + $0x310] sm:$0xff]
  %v118 = vld [vmem:[%s2 + $0x318] sm:$0xff]
  %v119 = vld [vmem:[%s2 + $0x320] sm:$0xff]
  %v120 = vld [vmem:[%s2 + $0x328] sm:$0xff]
  %v121 = vld [vmem:[%s2 + $0x330] sm:$0xff]
  %v122 = vld [vmem:[%s2 + $0x338] sm:$0xff]
  %v123 = vld [vmem:[%s2 + $0x340] sm:$0xff]
  %v124 = vld [vmem:[%s2 + $0x348] sm:$0xff]
  %v125 = vld [vmem:[%s2 + $0x350] sm:$0xff]
  %v126 = vld [vmem:[%s2 + $0x358] sm:$0xff]
  %v127 = vld [vmem:[%s2 + $0x360] sm:$0xff]
  %v128 = vld [vmem:[%s2 + $0x368] sm:$0xff]
  %v129 = vld [vmem:[%s2 + $0x370] sm:$0xff]
  %v130 = vld [vmem:[%s2 + $0x378] sm:$0xff]
  %v131 = vld [vmem:[%s2 + $0x380] sm:$0xff]
  %v132 = vld [vmem:[%s2 + $0x388] sm:$0xff]
  %v133 = vld [vmem:[%s2 + $0x390] sm:$0xff]
  %v134 = vld [vmem:[%s2 + $0x398] sm:$0xff]
  %v135 = vld [vmem:[%s2 + $0x3a0] sm:$0xff]
  %v136 = vld [vmem:[%s2 + $0x3a8] sm:$0xff]
  %v137 = vld [vmem:[%s2 + $0x3b0] sm:$0xff]
  %v138 = vld [vmem:[%s2 + $0x3b8] sm:$0xff]
  %v139 = vld [vmem:[%s2 + $0x3c0] sm:$0xff]
  %v140 = vld [vmem:[%s2 + $0x3c8] sm:$0xff]
  %v141 = vld [vmem:[%s2 + $0x3d0] sm:$0xff]
  %v142 = vld [vmem:[%s2 + $0x3d8] sm:$0xff]
  %v143 = vld [vmem:[%s2 + $0x3e0] sm:$0xff]
  %v144 = vld [vmem:[%s2 + $0x3e8] sm:$0xff]
  %v145 = vld [vmem:[%s2 + $0x3f0] sm:$0xff]
  %v146 = vld [vmem:[%s2 + $0x3f8] sm:$0xff]
  %v147 = vld [vmem:[%s3] sm:$0xf]
  %v149 = vlaneseq
  %v150 = vshrl.u32 %v149, 7
  %v151 = vsub.s32 0, %v150
  %v152 = vrot.slane %v147, %v151
  %v153 = vlaneseq
  %v154 = vshrl.u32 %v153, 7
  %v155 = vsub.s32 1, %v154
  %v156 = vrot.slane %v147, %v155
  %v157 = vlaneseq
  %v158 = vshrl.u32 %v157, 7
  %v159 = vsub.s32 2, %v158
  %v160 = vrot.slane %v147, %v159
  %v161 = vlaneseq
  %v162 = vshrl.u32 %v161, 7
  %v163 = vsub.s32 3, %v162
  %v164 = vrot.slane %v147, %v163
  %169 = vmatprep.subr.mxu0 %v20
  %170 = vmatpush1.msra.mxu0 %v19
  %171 = vmatprep.subr.mxu0 %v24
  %172 = vmatpush1.msra.mxu0 %v23
  %173 = vmatprep.subr.mxu0 %v28
  %174 = vmatpush1.msra.mxu0 %v27
  %175 = vmatprep.subr.mxu0 %v32
  %176 = vmatpush1.msra.mxu0 %v31
  %177 = vmatprep.subr.mxu0 %v36
  %178 = vmatpush1.msra.mxu0 %v35
  %179 = vmatprep.subr.mxu0 %v40
  %180 = vmatpush1.msra.mxu0 %v39
  %181 = vmatprep.subr.mxu0 %v44
  %182 = vmatpush1.msra.mxu0 %v43
  %183 = vmatprep.subr.mxu0 %v48
  %184 = vmatpush1.msra.mxu0 %v47
  %185 = vmatprep.subr.mxu0 %v52
  %186 = vmatpush1.msra.mxu0 %v51
  %187 = vmatprep.subr.mxu0 %v56
  %188 = vmatpush1.msra.mxu0 %v55
  %189 = vmatprep.subr.mxu0 %v60
  %190 = vmatpush1.msra.mxu0 %v59
  %191 = vmatprep.subr.mxu0 %v64
  %192 = vmatpush1.msra.mxu0 %v63
  %193 = vmatprep.subr.mxu0 %v68
  %194 = vmatpush1.msra.mxu0 %v67
  %195 = vmatprep.subr.mxu0 %v72
  %196 = vmatpush1.msra.mxu0 %v71
  %197 = vmatprep.subr.mxu0 %v76
  %198 = vmatpush1.msra.mxu0 %v75
  %199 = vmatprep.subr.mxu0 %v80
  %200 = vmatpush1.msra.mxu0 %v79
  %201 = vmatprep.subr.mxu0 %v84
  %202 = vmatpush1.msra.mxu0 %v83
  %203 = vmatprep.subr.mxu0 %v88
  %204 = vmatpush1.msra.mxu0 %v87
  %205 = vmatprep.subr.mxu0 %v92
  %206 = vmatpush1.msra.mxu0 %v91
  %207 = vmatprep.subr.mxu0 %v96
  %208 = vmatpush1.msra.mxu0 %v95
  %209 = vmatprep.subr.mxu0 %v100
  %210 = vmatpush1.msra.mxu0 %v99
  %211 = vmatprep.subr.mxu0 %v104
  %212 = vmatpush1.msra.mxu0 %v103
  %213 = vmatprep.subr.mxu0 %v108
  %214 = vmatpush1.msra.mxu0 %v107
  %215 = vmatprep.subr.mxu0 %v112
  %216 = vmatpush1.msra.mxu0 %v111
  %217 = vmatprep.subr.mxu0 %v116
  %218 = vmatpush1.msra.mxu0 %v115
  %219 = vmatprep.subr.mxu0 %v120
  %220 = vmatpush1.msra.mxu0 %v119
  %221 = vmatprep.subr.mxu0 %v124
  %222 = vmatpush1.msra.mxu0 %v123
  %223 = vmatprep.subr.mxu0 %v128
  %224 = vmatpush1.msra.mxu0 %v127
  %225 = vmatprep.subr.mxu0 %v132
  %226 = vmatpush1.msra.mxu0 %v131
  %227 = vmatprep.subr.mxu0 %v136
  %228 = vmatpush1.msra.mxu0 %v135
  %229 = vmatprep.subr.mxu0 %v140
  %230 = vmatpush1.msra.mxu0 %v139
  %231 = vmatprep.subr.mxu0 %v144
  %232 = vmatpush1.msra.mxu0 %v143
  %233 = vmatprep.mubr.f32.mxu0 %v18
  %234 = vmatmul.mubr.f32.gmra.mrb[0].mxu0 %v17
  %v235 = vpop.f32.mrb[0].mxu0
  %v236 = vadd.f32 %v152, %v235
  %v237 = vpop.f32.mrb[0].mxu0
  %v238 = vadd.f32 %v156, %v237
  %239 = vdwg.mxu0
  %240 = vmatprep.subr.mxu0 %v22
  %241 = vmatpush1.msra.mxu0 %v21
  %242 = vmatprep.subr.mxu0 %v26
  %243 = vmatpush1.msra.mxu0 %v25
  %244 = vmatprep.subr.mxu0 %v30
  %245 = vmatpush1.msra.mxu0 %v29
  %246 = vmatprep.subr.mxu0 %v34
  %247 = vmatpush1.msra.mxu0 %v33
  %248 = vmatprep.subr.mxu0 %v38
  %249 = vmatpush1.msra.mxu0 %v37
  %250 = vmatprep.subr.mxu0 %v42
  %251 = vmatpush1.msra.mxu0 %v41
  %252 = vmatprep.subr.mxu0 %v46
  %253 = vmatpush1.msra.mxu0 %v45
  %254 = vmatprep.subr.mxu0 %v50
  %255 = vmatpush1.msra.mxu0 %v49
  %256 = vmatprep.subr.mxu0 %v54
  %257 = vmatpush1.msra.mxu0 %v53
  %258 = vmatprep.subr.mxu0 %v58
  %259 = vmatpush1.msra.mxu0 %v57
  %260 = vmatprep.subr.mxu0 %v62
  %261 = vmatpush1.msra.mxu0 %v61
  %262 = vmatprep.subr.mxu0 %v66
  %263 = vmatpush1.msra.mxu0 %v65
  %264 = vmatprep.subr.mxu0 %v70
  %265 = vmatpush1.msra.mxu0 %v69
  %266 = vmatprep.subr.mxu0 %v74
  %267 = vmatpush1.msra.mxu0 %v73
  %268 = vmatprep.subr.mxu0 %v78
  %269 = vmatpush1.msra.mxu0 %v77
  %270 = vmatprep.subr.mxu0 %v82
  %271 = vmatpush1.msra.mxu0 %v81
  %272 = vmatprep.subr.mxu0 %v86
  %273 = vmatpush1.msra.mxu0 %v85
  %274 = vmatprep.subr.mxu0 %v90
  %275 = vmatpush1.msra.mxu0 %v89
  %276 = vmatprep.subr.mxu0 %v94
  %277 = vmatpush1.msra.mxu0 %v93
  %278 = vmatprep.subr.mxu0 %v98
  %279 = vmatpush1.msra.mxu0 %v97
  %280 = vmatprep.subr.mxu0 %v102
  %281 = vmatpush1.msra.mxu0 %v101
  %282 = vmatprep.subr.mxu0 %v106
  %283 = vmatpush1.msra.mxu0 %v105
  %284 = vmatprep.subr.mxu0 %v110
  %285 = vmatpush1.msra.mxu0 %v109
  %286 = vmatprep.subr.mxu0 %v114
  %287 = vmatpush1.msra.mxu0 %v113
  %288 = vmatprep.subr.mxu0 %v118
  %289 = vmatpush1.msra.mxu0 %v117
  %290 = vmatprep.subr.mxu0 %v122
  %291 = vmatpush1.msra.mxu0 %v121
  %292 = vmatprep.subr.mxu0 %v126
  %293 = vmatpush1.msra.mxu0 %v125
  %294 = vmatprep.subr.mxu0 %v130
  %295 = vmatpush1.msra.mxu0 %v129
  %296 = vmatprep.subr.mxu0 %v134
  %297 = vmatpush1.msra.mxu0 %v133
  %298 = vmatprep.subr.mxu0 %v138
  %299 = vmatpush1.msra.mxu0 %v137
  %300 = vmatprep.subr.mxu0 %v142
  %301 = vmatpush1.msra.mxu0 %v141
  %302 = vmatprep.subr.mxu0 %v146
  %303 = vmatpush1.msra.mxu0 %v145
  %304 = vmatprep.mubr.f32.mxu0 %v18
  %305 = vmatmul.mubr.f32.gmra.mrb[0].mxu0 %v17
  %v306 = vpop.f32.mrb[0].mxu0
  %v307 = vadd.f32 %v160, %v306
  %v308 = vpop.f32.mrb[0].mxu0
  %v309 = vadd.f32 %v164, %v308
  %310 = vdwg.mxu0
  %v311 = vxor.u32 %v236, 2147483648
  %v312 = vmul.f32 %v311, 1.442695
  %v313 = vpow.pop %v312
  %v314 = vadd.f32 %v313, 1.0
  %v315 = vrcp.pop %v314
  %v316 = vmul.f32 1.0, %v315
  %v317 = vxor.u32 %v238, 2147483648
  %v318 = vmul.f32 %v317, 1.442695
  %v319 = vpow.pop %v318
  %v320 = vadd.f32 %v319, 1.0
  %v321 = vrcp.pop %v320
  %v322 = vmul.f32 1.0, %v321
  %v323 = vtanh.pop %v307
  %v324 = vxor.u32 %v309, 2147483648
  %v325 = vmul.f32 %v324, 1.442695
  %v326 = vpow.pop %v325
  %v327 = vadd.f32 %v326, 1.0
  %v328 = vrcp.pop %v327
  %v329 = vmul.f32 1.0, %v328
  %v330 = vld [vmem:[%s1] sm:$0xff]
  %v331 = vmul.f32 %v322, %v330
  %v332 = vmul.f32 %v316, %v323
  %v333 = vadd.f32 %v331, %v332
  %v334 = vtanh.pop %v333
  %v335 = vmul.f32 %v329, %v334
  %336 = vst [vmem:[%s4] sm:$0xff] %v335
  // Predicated region
  $region18: #{fwd.14} parent=0 // pred_check
    _
  $region19: #{fwd.14} parent=0 // pred_check_branch
    %338 = sbr.rel (0) target = $region21
  $region20: #{fwd.14} parent=0 // pred_region
    _
  $region21: #{fwd.14} parent=0 // pred_fallthru
    _
  // Predicated region
  $region22: #{fwd.14} parent=0 // pred_check
    _
  $region23: #{fwd.14} parent=0 // pred_check_branch
    %340 = sbr.rel (0) target = $region25
  $region24: #{fwd.14} parent=0 // pred_region
    _
  $region25: #{fwd.14} parent=0 // pred_fallthru
    _

// kernel: fwd.18
$region0: #{fwd.18}
  #allocation0 [shape = 'u32[]', space=smem, size = 0x4, offset = 0x4, fixed_abs, tag = 'smem constant byte address 0x4 - core index']
  #allocation1 [shape = 'u32[144,128]{1,0:T(1,128)}', space=vmem, size = 0x12000, scoped, tag = 'internal scratch']
  %s0 = inlined_call_operand.vmem [shape: f32[8,6,128], index: 0, kind: input, shape index: {}, may-alias: {0,10}]
  %s1 = inlined_call_operand.vmem [shape: f32[8,128], index: 1, kind: input, shape index: {}]
  %s2 = inlined_call_operand.vmem [shape: f32[8,256], index: 2, kind: input, shape index: {}]
  %s3 = inlined_call_operand.vmem [shape: f32[8,128], index: 3, kind: input, shape index: {}]
  %s4 = inlined_call_operand.vmem [shape: f32[256,512], index: 4, kind: input, shape index: {}]
  %s5 = inlined_call_operand.vmem [shape: f32[1,512], index: 5, kind: input, shape index: {}]
  %s6 = inlined_call_operand.vmem [shape: f32[128,128], index: 6, kind: input, shape index: {}]
  %s7 = inlined_call_operand.vmem [shape: f32[128,128], index: 7, kind: input, shape index: {}]
  %s8 = inlined_call_operand.vmem [shape: f32[1,128], index: 8, kind: input, shape index: {}]
  %s9 = inlined_call_operand.vmem [shape: f32[1,128], index: 9, kind: input, shape index: {}]
  %s10 = inlined_call_operand.vmem [shape: f32[8,6,128], index: 10, kind: output, shape index: {0}, may-alias: {0,10}]
  %s11 = inlined_call_operand.hbm [shape: f32[8,128], index: 11, kind: output, shape index: {1}]
  %12 = xla_tuple %s10, %s11
  %s13 = scalar_lea.vmem %s10, 40
  %s14 = sld [smem:[#allocation0]]
  $region88: #{fwd.18} parent=0
    _
  %s16 = ssub.s32 1, %s14
  %s17 = scalar_select 0, %s16, %s14
  $region1: #{fwd.18} parent=0
    #allocation2 [shape = 'u8[4096]{0}', space=vmem, size = 0x1000, scoped, tag = 'output window, operand 0, single buffered']
    #allocation3 [shape = 'u8[4096]{0}', space=vmem, size = 0x1000, scoped, tag = 'output window, operand 1, single buffered']
    #allocation4 [shape = 's32[1]{0}', space=sflag, size = 0x4, scoped, tag = 'scoped memory for fwd.18']
    %18 = vsyncpa [#allocation4], 0
    // Predicated region
    $region2: #{fwd.18} parent=1 // pred_check
      _
    $region3: #{fwd.18} parent=1 // pred_check_branch
      %20 = sbr.rel (0) target = $region5
    $region4: #{fwd.18} parent=1 // pred_region
      _
    $region5: #{fwd.18} parent=1 // pred_fallthru
      _
    // Predicated region
    $region6: #{fwd.18} parent=1 // pred_check
      _
    $region7: #{fwd.18} parent=1 // pred_check_branch
      %22 = sbr.rel (0) target = $region9
    $region8: #{fwd.18} parent=1 // pred_region
      _
    $region9: #{fwd.18} parent=1 // pred_fallthru
      _
    // Predicated region
    $region10: #{fwd.18} parent=1 // pred_check
      _
    $region11: #{fwd.18} parent=1 // pred_check_branch
      %24 = sbr.rel (0) target = $region13
    $region12: #{fwd.18} parent=1 // pred_region
      _
    $region13: #{fwd.18} parent=1 // pred_fallthru
      _
    // Predicated region
    $region14: #{fwd.18} parent=1 // pred_check
      _
    $region15: #{fwd.18} parent=1 // pred_check_branch
      %26 = sbr.rel (0) target = $region17
    $region16: #{fwd.18} parent=1 // pred_region
      _
    $region17: #{fwd.18} parent=1 // pred_fallthru
      _
    // Predicated region
    $region18: #{fwd.18} parent=1 // pred_check
      _
    $region19: #{fwd.18} parent=1 // pred_check_branch
      %28 = sbr.rel (0) target = $region21
    $region20: #{fwd.18} parent=1 // pred_region
      _
    $region21: #{fwd.18} parent=1 // pred_fallthru
      _
    // Predicated region
    $region22: #{fwd.18} parent=1 // pred_check
      _
    $region23: #{fwd.18} parent=1 // pred_check_branch
      %30 = sbr.rel (0) target = $region25
    $region24: #{fwd.18} parent=1 // pred_region
      _
    $region25: #{fwd.18} parent=1 // pred_fallthru
      _
    // Predicated region
    $region26: #{fwd.18} parent=1 // pred_check
      _
    $region27: #{fwd.18} parent=1 // pred_check_branch
      %32 = sbr.rel (0) target = $region29
    $region28: #{fwd.18} parent=1 // pred_region
      _
    $region29: #{fwd.18} parent=1 // pred_fallthru
      _
    // Predicated region
    $region30: #{fwd.18} parent=1 // pred_check
      _
    $region31: #{fwd.18} parent=1 // pred_check_branch
      %34 = sbr.rel (0) target = $region33
    $region32: #{fwd.18} parent=1 // pred_region
      _
    $region33: #{fwd.18} parent=1 // pred_fallthru
      _
    // Predicated region
    $region34: #{fwd.18} parent=1 // pred_check
      _
    $region35: #{fwd.18} parent=1 // pred_check_branch
      %36 = sbr.rel (0) target = $region37
    $region36: #{fwd.18} parent=1 // pred_region
      _
    $region37: #{fwd.18} parent=1 // pred_fallthru
      _
    %v37 = vld [vmem:[%s2] sm:$0xff]
    %v38 = vld [vmem:[%s2 + $0x8] sm:$0xff]
    %v39 = vld [vmem:[%s4] sm:$0xff]
    %v40 = vld [vmem:[%s4 + $0x8] sm:$0xff]
    %v41 = vld [vmem:[%s4 + $0x10] sm:$0xff]
    %v42 = vld [vmem:[%s4 + $0x18] sm:$0xff]
    %v43 = vld [vmem:[%s4 + $0x20] sm:$0xff]
    %v44 = vld [vmem:[%s4 + $0x28] sm:$0xff]
    %v45 = vld [vmem:[%s4 + $0x30] sm:$0xff]
    %v46 = vld [vmem:[%s4 + $0x38] sm:$0xff]
    %v47 = vld [vmem:[%s4 + $0x40] sm:$0xff]
    %v48 = vld [vmem:[%s4 + $0x48] sm:$0xff]
    %v49 = vld [vmem:[%s4 + $0x50] sm:$0xff]
    %v50 = vld [vmem:[%s4 + $0x58] sm:$0xff]
    %v51 = vld [vmem:[%s4 + $0x60] sm:$0xff]
    %v52 = vld [vmem:[%s4 + $0x68] sm:$0xff]
    %v53 = vld [vmem:[%s4 + $0x70] sm:$0xff]
    %v54 = vld [vmem:[%s4 + $0x78] sm:$0xff]
    %v55 = vld [vmem:[%s4 + $0x80] sm:$0xff]
    %v56 = vld [vmem:[%s4 + $0x88] sm:$0xff]
    %v57 = vld [vmem:[%s4 + $0x90] sm:$0xff]
    %v58 = vld [vmem:[%s4 + $0x98] sm:$0xff]
    %v59 = vld [vmem:[%s4 + $0xa0] sm:$0xff]
    %v60 = vld [vmem:[%s4 + $0xa8] sm:$0xff]
    %v61 = vld [vmem:[%s4 + $0xb0] sm:$0xff]
    %v62 = vld [vmem:[%s4 + $0xb8] sm:$0xff]
    %v63 = vld [vmem:[%s4 + $0xc0] sm:$0xff]
    %v64 = vld [vmem:[%s4 + $0xc8] sm:$0xff]
    %v65 = vld [vmem:[%s4 + $0xd0] sm:$0xff]
    %v66 = vld [vmem:[%s4 + $0xd8] sm:$0xff]
    %v67 = vld [vmem:[%s4 + $0xe0] sm:$0xff]
    %v68 = vld [vmem:[%s4 + $0xe8] sm:$0xff]
    %v69 = vld [vmem:[%s4 + $0xf0] sm:$0xff]
    %v70 = vld [vmem:[%s4 + $0xf8] sm:$0xff]
    %v71 = vld [vmem:[%s4 + $0x100] sm:$0xff]
    %v72 = vld [vmem:[%s4 + $0x108] sm:$0xff]
    %v73 = vld [vmem:[%s4 + $0x110] sm:$0xff]
    %v74 = vld [vmem:[%s4 + $0x118] sm:$0xff]
    %v75 = vld [vmem:[%s4 + $0x120] sm:$0xff]
    %v76 = vld [vmem:[%s4 + $0x128] sm:$0xff]
    %v77 = vld [vmem:[%s4 + $0x130] sm:$0xff]
    %v78 = vld [vmem:[%s4 + $0x138] sm:$0xff]
    %v79 = vld [vmem:[%s4 + $0x140] sm:$0xff]
    %v80 = vld [vmem:[%s4 + $0x148] sm:$0xff]
    %v81 = vld [vmem:[%s4 + $0x150] sm:$0xff]
    %v82 = vld [vmem:[%s4 + $0x158] sm:$0xff]
    %v83 = vld [vmem:[%s4 + $0x160] sm:$0xff]
    %v84 = vld [vmem:[%s4 + $0x168] sm:$0xff]
    %v85 = vld [vmem:[%s4 + $0x170] sm:$0xff]
    %v86 = vld [vmem:[%s4 + $0x178] sm:$0xff]
    %v87 = vld [vmem:[%s4 + $0x180] sm:$0xff]
    %v88 = vld [vmem:[%s4 + $0x188] sm:$0xff]
    %v89 = vld [vmem:[%s4 + $0x190] sm:$0xff]
    %v90 = vld [vmem:[%s4 + $0x198] sm:$0xff]
    %v91 = vld [vmem:[%s4 + $0x1a0] sm:$0xff]
    %v92 = vld [vmem:[%s4 + $0x1a8] sm:$0xff]
    %v93 = vld [vmem:[%s4 + $0x1b0] sm:$0xff]
    %v94 = vld [vmem:[%s4 + $0x1b8] sm:$0xff]
    %v95 = vld [vmem:[%s4 + $0x1c0] sm:$0xff]
    %v96 = vld [vmem:[%s4 + $0x1c8] sm:$0xff]
    %v97 = vld [vmem:[%s4 + $0x1d0] sm:$0xff]
    %v98 = vld [vmem:[%s4 + $0x1d8] sm:$0xff]
    %v99 = vld [vmem:[%s4 + $0x1e0] sm:$0xff]
    %v100 = vld [vmem:[%s4 + $0x1e8] sm:$0xff]
    %v101 = vld [vmem:[%s4 + $0x1f0] sm:$0xff]
    %v102 = vld [vmem:[%s4 + $0x1f8] sm:$0xff]
    %v103 = vld [vmem:[%s4 + $0x200] sm:$0xff]
    %v104 = vld [vmem:[%s4 + $0x208] sm:$0xff]
    %v105 = vld [vmem:[%s4 + $0x210] sm:$0xff]
    %v106 = vld [vmem:[%s4 + $0x218] sm:$0xff]
    %v107 = vld [vmem:[%s4 + $0x220] sm:$0xff]
    %v108 = vld [vmem:[%s4 + $0x228] sm:$0xff]
    %v109 = vld [vmem:[%s4 + $0x230] sm:$0xff]
    %v110 = vld [vmem:[%s4 + $0x238] sm:$0xff]
    %v111 = vld [vmem:[%s4 + $0x240] sm:$0xff]
    %v112 = vld [vmem:[%s4 + $0x248] sm:$0xff]
    %v113 = vld [vmem:[%s4 + $0x250] sm:$0xff]
    %v114 = vld [vmem:[%s4 + $0x258] sm:$0xff]
    %v115 = vld [vmem:[%s4 + $0x260] sm:$0xff]
    %v116 = vld [vmem:[%s4 + $0x268] sm:$0xff]
    %v117 = vld [vmem:[%s4 + $0x270] sm:$0xff]
    %v118 = vld [vmem:[%s4 + $0x278] sm:$0xff]
    %v119 = vld [vmem:[%s4 + $0x280] sm:$0xff]
    %v120 = vld [vmem:[%s4 + $0x288] sm:$0xff]
    %v121 = vld [vmem:[%s4 + $0x290] sm:$0xff]
    %v122 = vld [vmem:[%s4 + $0x298] sm:$0xff]
    %v123 = vld [vmem:[%s4 + $0x2a0] sm:$0xff]
    %v124 = vld [vmem:[%s4 + $0x2a8] sm:$0xff]
    %v125 = vld [vmem:[%s4 + $0x2b0] sm:$0xff]
    %v126 = vld [vmem:[%s4 + $0x2b8] sm:$0xff]
    %v127 = vld [vmem:[%s4 + $0x2c0] sm:$0xff]
    %v128 = vld [vmem:[%s4 + $0x2c8] sm:$0xff]
    %v129 = vld [vmem:[%s4 + $0x2d0] sm:$0xff]
    %v130 = vld [vmem:[%s4 + $0x2d8] sm:$0xff]
    %v131 = vld [vmem:[%s4 + $0x2e0] sm:$0xff]
    %v132 = vld [vmem:[%s4 + $0x2e8] sm:$0xff]
    %v133 = vld [vmem:[%s4 + $0x2f0] sm:$0xff]
    %v134 = vld [vmem:[%s4 + $0x2f8] sm:$0xff]
    %v135 = vld [vmem:[%s4 + $0x300] sm:$0xff]
    %v136 = vld [vmem:[%s4 + $0x308] sm:$0xff]
    %v137 = vld [vmem:[%s4 + $0x310] sm:$0xff]
    %v138 = vld [vmem:[%s4 + $0x318] sm:$0xff]
    %v139 = vld [vmem:[%s4 + $0x320] sm:$0xff]
    %v140 = vld [vmem:[%s4 + $0x328] sm:$0xff]
    %v141 = vld [vmem:[%s4 + $0x330] sm:$0xff]
    %v142 = vld [vmem:[%s4 + $0x338] sm:$0xff]
    %v143 = vld [vmem:[%s4 + $0x340] sm:$0xff]
    %v144 = vld [vmem:[%s4 + $0x348] sm:$0xff]
    %v145 = vld [vmem:[%s4 + $0x350] sm:$0xff]
    %v146 = vld [vmem:[%s4 + $0x358] sm:$0xff]
    %v147 = vld [vmem:[%s4 + $0x360] sm:$0xff]
    %v148 = vld [vmem:[%s4 + $0x368] sm:$0xff]
    %v149 = vld [vmem:[%s4 + $0x370] sm:$0xff]
    %v150 = vld [vmem:[%s4 + $0x378] sm:$0xff]
    %v151 = vld [vmem:[%s4 + $0x380] sm:$0xff]
    %v152 = vld [vmem:[%s4 + $0x388] sm:$0xff]
    %v153 = vld [vmem:[%s4 + $0x390] sm:$0xff]
    %v154 = vld [vmem:[%s4 + $0x398] sm:$0xff]
    %v155 = vld [vmem:[%s4 + $0x3a0] sm:$0xff]
    %v156 = vld [vmem:[%s4 + $0x3a8] sm:$0xff]
    %v157 = vld [vmem:[%s4 + $0x3b0] sm:$0xff]
    %v158 = vld [vmem:[%s4 + $0x3b8] sm:$0xff]
    %v159 = vld [vmem:[%s4 + $0x3c0] sm:$0xff]
    %v160 = vld [vmem:[%s4 + $0x3c8] sm:$0xff]
    %v161 = vld [vmem:[%s4 + $0x3d0] sm:$0xff]
    %v162 = vld [vmem:[%s4 + $0x3d8] sm:$0xff]
    %v163 = vld [vmem:[%s4 + $0x3e0] sm:$0xff]
    %v164 = vld [vmem:[%s4 + $0x3e8] sm:$0xff]
    %v165 = vld [vmem:[%s4 + $0x3f0] sm:$0xff]
    %v166 = vld [vmem:[%s4 + $0x3f8] sm:$0xff]
    %v167 = vld [vmem:[%s5] sm:$0xf]
    %v169 = vlaneseq
    %v170 = vshrl.u32 %v169, 7
    %v171 = vsub.s32 0, %v170
    %v172 = vrot.slane %v167, %v171
    %v173 = vlaneseq
    %v174 = vshrl.u32 %v173, 7
    %v175 = vsub.s32 1, %v174
    %v176 = vrot.slane %v167, %v175
    %v177 = vlaneseq
    %v178 = vshrl.u32 %v177, 7
    %v179 = vsub.s32 2, %v178
    %v180 = vrot.slane %v167, %v179
    %v181 = vlaneseq
    %v182 = vshrl.u32 %v181, 7
    %v183 = vsub.s32 3, %v182
    %v184 = vrot.slane %v167, %v183
    %189 = vmatprep.subr.mxu0 %v40
    %190 = vmatpush1.msra.mxu0 %v39
    %191 = vmatprep.subr.mxu0 %v44
    %192 = vmatpush1.msra.mxu0 %v43
    %193 = vmatprep.subr.mxu0 %v48
    %194 = vmatpush1.msra.mxu0 %v47
    %195 = vmatprep.subr.mxu0 %v52
    %196 = vmatpush1.msra.mxu0 %v51
    %197 = vmatprep.subr.mxu0 %v56
    %198 = vmatpush1.msra.mxu0 %v55
    %199 = vmatprep.subr.mxu0 %v60
    %200 = vmatpush1.msra.mxu0 %v59
    %201 = vmatprep.subr.mxu0 %v64
    %202 = vmatpush1.msra.mxu0 %v63
    %203 = vmatprep.subr.mxu0 %v68
    %204 = vmatpush1.msra.mxu0 %v67
    %205 = vmatprep.subr.mxu0 %v72
    %206 = vmatpush1.msra.mxu0 %v71
    %207 = vmatprep.subr.mxu0 %v76
    %208 = vmatpush1.msra.mxu0 %v75
    %209 = vmatprep.subr.mxu0 %v80
    %210 = vmatpush1.msra.mxu0 %v79
    %211 = vmatprep.subr.mxu0 %v84
    %212 = vmatpush1.msra.mxu0 %v83
    %213 = vmatprep.subr.mxu0 %v88
    %214 = vmatpush1.msra.mxu0 %v87
    %215 = vmatprep.subr.mxu0 %v92
    %216 = vmatpush1.msra.mxu0 %v91
    %217 = vmatprep.subr.mxu0 %v96
    %218 = vmatpush1.msra.mxu0 %v95
    %219 = vmatprep.subr.mxu0 %v100
    %220 = vmatpush1.msra.mxu0 %v99
    %221 = vmatprep.subr.mxu0 %v104
    %222 = vmatpush1.msra.mxu0 %v103
    %223 = vmatprep.subr.mxu0 %v108
    %224 = vmatpush1.msra.mxu0 %v107
    %225 = vmatprep.subr.mxu0 %v112
    %226 = vmatpush1.msra.mxu0 %v111
    %227 = vmatprep.subr.mxu0 %v116
    %228 = vmatpush1.msra.mxu0 %v115
    %229 = vmatprep.subr.mxu0 %v120
    %230 = vmatpush1.msra.mxu0 %v119
    %231 = vmatprep.subr.mxu0 %v124
    %232 = vmatpush1.msra.mxu0 %v123
    %233 = vmatprep.subr.mxu0 %v128
    %234 = vmatpush1.msra.mxu0 %v127
    %235 = vmatprep.subr.mxu0 %v132
    %236 = vmatpush1.msra.mxu0 %v131
    %237 = vmatprep.subr.mxu0 %v136
    %238 = vmatpush1.msra.mxu0 %v135
    %239 = vmatprep.subr.mxu0 %v140
    %240 = vmatpush1.msra.mxu0 %v139
    %241 = vmatprep.subr.mxu0 %v144
    %242 = vmatpush1.msra.mxu0 %v143
    %243 = vmatprep.subr.mxu0 %v148
    %244 = vmatpush1.msra.mxu0 %v147
    %245 = vmatprep.subr.mxu0 %v152
    %246 = vmatpush1.msra.mxu0 %v151
    %247 = vmatprep.subr.mxu0 %v156
    %248 = vmatpush1.msra.mxu0 %v155
    %249 = vmatprep.subr.mxu0 %v160
    %250 = vmatpush1.msra.mxu0 %v159
    %251 = vmatprep.subr.mxu0 %v164
    %252 = vmatpush1.msra.mxu0 %v163
    %253 = vmatprep.mubr.f32.mxu0 %v38
    %254 = vmatmul.mubr.f32.gmra.mrb[0].mxu0 %v37
    %v255 = vpop.f32.mrb[0].mxu0
    %v256 = vadd.f32 %v172, %v255
    %v257 = vpop.f32.mrb[0].mxu0
    %v258 = vadd.f32 %v176, %v257
    %259 = vdwg.mxu0
    %260 = vmatprep.subr.mxu0 %v42
    %261 = vmatpush1.msra.mxu0 %v41
    %262 = vmatprep.subr.mxu0 %v46
    %263 = vmatpush1.msra.mxu0 %v45
    %264 = vmatprep.subr.mxu0 %v50
    %265 = vmatpush1.msra.mxu0 %v49
    %266 = vmatprep.subr.mxu0 %v54
    %267 = vmatpush1.msra.mxu0 %v53
    %268 = vmatprep.subr.mxu0 %v58
    %269 = vmatpush1.msra.mxu0 %v57
    %270 = vmatprep.subr.mxu0 %v62
    %271 = vmatpush1.msra.mxu0 %v61
    %272 = vmatprep.subr.mxu0 %v66
    %273 = vmatpush1.msra.mxu0 %v65
    %274 = vmatprep.subr.mxu0 %v70
    %275 = vmatpush1.msra.mxu0 %v69
    %276 = vmatprep.subr.mxu0 %v74
    %277 = vmatpush1.msra.mxu0 %v73
    %278 = vmatprep.subr.mxu0 %v78
    %279 = vmatpush1.msra.mxu0 %v77
    %280 = vmatprep.subr.mxu0 %v82
    %281 = vmatpush1.msra.mxu0 %v81
    %282 = vmatprep.subr.mxu0 %v86
    %283 = vmatpush1.msra.mxu0 %v85
    %284 = vmatprep.subr.mxu0 %v90
    %285 = vmatpush1.msra.mxu0 %v89
    %286 = vmatprep.subr.mxu0 %v94
    %287 = vmatpush1.msra.mxu0 %v93
    %288 = vmatprep.subr.mxu0 %v98
    %289 = vmatpush1.msra.mxu0 %v97
    %290 = vmatprep.subr.mxu0 %v102
    %291 = vmatpush1.msra.mxu0 %v101
    %292 = vmatprep.subr.mxu0 %v106
    %293 = vmatpush1.msra.mxu0 %v105
    %294 = vmatprep.subr.mxu0 %v110
    %295 = vmatpush1.msra.mxu0 %v109
    %296 = vmatprep.subr.mxu0 %v114
    %297 = vmatpush1.msra.mxu0 %v113
    %298 = vmatprep.subr.mxu0 %v118
    %299 = vmatpush1.msra.mxu0 %v117
    %300 = vmatprep.subr.mxu0 %v122
    %301 = vmatpush1.msra.mxu0 %v121
    %302 = vmatprep.subr.mxu0 %v126
    %303 = vmatpush1.msra.mxu0 %v125
    %304 = vmatprep.subr.mxu0 %v130
    %305 = vmatpush1.msra.mxu0 %v129
    %306 = vmatprep.subr.mxu0 %v134
    %307 = vmatpush1.msra.mxu0 %v133
    %308 = vmatprep.subr.mxu0 %v138
    %309 = vmatpush1.msra.mxu0 %v137
    %310 = vmatprep.subr.mxu0 %v142
    %311 = vmatpush1.msra.mxu0 %v141
    %312 = vmatprep.subr.mxu0 %v146
    %313 = vmatpush1.msra.mxu0 %v145
    %314 = vmatprep.subr.mxu0 %v150
    %315 = vmatpush1.msra.mxu0 %v149
    %316 = vmatprep.subr.mxu0 %v154
    %317 = vmatpush1.msra.mxu0 %v153
    %318 = vmatprep.subr.mxu0 %v158
    %319 = vmatpush1.msra.mxu0 %v157
    %320 = vmatprep.subr.mxu0 %v162
    %321 = vmatpush1.msra.mxu0 %v161
    %322 = vmatprep.subr.mxu0 %v166
    %323 = vmatpush1.msra.mxu0 %v165
    %324 = vmatprep.mubr.f32.mxu0 %v38
    %325 = vmatmul.mubr.f32.gmra.mrb[0].mxu0 %v37
    %v326 = vpop.f32.mrb[0].mxu0
    %v327 = vadd.f32 %v180, %v326
    %v328 = vpop.f32.mrb[0].mxu0
    %v329 = vadd.f32 %v184, %v328
    %330 = vdwg.mxu0
    %v331 = vxor.u32 %v256, 2147483648
    %v332 = vmul.f32 %v331, 1.442695
    %v333 = vpow.pop %v332
    %v334 = vadd.f32 %v333, 1.0
    %v335 = vrcp.pop %v334
    %v336 = vmul.f32 1.0, %v335
    %v337 = vxor.u32 %v258, 2147483648
    %v338 = vmul.f32 %v337, 1.442695
    %v339 = vpow.pop %v338
    %v340 = vadd.f32 %v339, 1.0
    %v341 = vrcp.pop %v340
    %v342 = vmul.f32 1.0, %v341
    %v343 = vtanh.pop %v327
    %v344 = vxor.u32 %v329, 2147483648
    %v345 = vmul.f32 %v344, 1.442695
    %v346 = vpow.pop %v345
    %v347 = vadd.f32 %v346, 1.0
    %v348 = vrcp.pop %v347
    %v349 = vmul.f32 1.0, %v348
    %v350 = vld [vmem:[%s3] sm:$0xff]
    %v351 = vmul.f32 %v342, %v350
    %v352 = vmul.f32 %v336, %v343
    %v353 = vadd.f32 %v351, %v352
    %v354 = vtanh.pop %v353
    %v355 = vmul.f32 %v349, %v354
    %v356 = vld [vmem:[%s1] sm:$0xff]
    %v357 = vld [vmem:[%s6] sm:$0xff]
    %v358 = vld [vmem:[%s6 + $0x8] sm:$0xff]
    %v359 = vld [vmem:[%s6 + $0x10] sm:$0xff]
    %v360 = vld [vmem:[%s6 + $0x18] sm:$0xff]
    %v361 = vld [vmem:[%s6 + $0x20] sm:$0xff]
    %v362 = vld [vmem:[%s6 + $0x28] sm:$0xff]
    %v363 = vld [vmem:[%s6 + $0x30] sm:$0xff]
    %v364 = vld [vmem:[%s6 + $0x38] sm:$0xff]
    %v365 = vld [vmem:[%s6 + $0x40] sm:$0xff]
    %v366 = vld [vmem:[%s6 + $0x48] sm:$0xff]
    %v367 = vld [vmem:[%s6 + $0x50] sm:$0xff]
    %v368 = vld [vmem:[%s6 + $0x58] sm:$0xff]
    %v369 = vld [vmem:[%s6 + $0x60] sm:$0xff]
    %v370 = vld [vmem:[%s6 + $0x68] sm:$0xff]
    %v371 = vld [vmem:[%s6 + $0x70] sm:$0xff]
    %v372 = vld [vmem:[%s6 + $0x78] sm:$0xff]
    %v373 = vld [vmem:[%s8] sm:$0x1]
    %v375 = vlaneseq
    %v376 = vshrl.u32 %v375, 7
    %v377 = vsub.s32 0, %v376
    %v378 = vrot.slane %v373, %v377
    %380 = vmatprep.subr.mxu0 0.0
    %381 = vmatpush1.msra.mxu0 %v357
    %382 = vmatprep.subr.mxu0 0.0
    %383 = vmatpush1.msra.mxu0 %v358
    %384 = vmatprep.subr.mxu0 0.0
    %385 = vmatpush1.msra.mxu0 %v359
    %386 = vmatprep.subr.mxu0 0.0
    %387 = vmatpush1.msra.mxu0 %v360
    %388 = vmatprep.subr.mxu0 0.0
    %389 = vmatpush1.msra.mxu0 %v361
    %390 = vmatprep.subr.mxu0 0.0
    %391 = vmatpush1.msra.mxu0 %v362
    %392 = vmatprep.subr.mxu0 0.0
    %393 = vmatpush1.msra.mxu0 %v363
    %394 = vmatprep.subr.mxu0 0.0
    %395 = vmatpush1.msra.mxu0 %v364
    %396 = vmatprep.subr.mxu0 0.0
    %397 = vmatpush1.msra.mxu0 %v365
    %398 = vmatprep.subr.mxu0 0.0
    %399 = vmatpush1.msra.mxu0 %v366
    %400 = vmatprep.subr.mxu0 0.0
    %401 = vmatpush1.msra.mxu0 %v367
    %402 = vmatprep.subr.mxu0 0.0
    %403 = vmatpush1.msra.mxu0 %v368
    %404 = vmatprep.subr.mxu0 0.0
    %405 = vmatpush1.msra.mxu0 %v369
    %406 = vmatprep.subr.mxu0 0.0
    %407 = vmatpush1.msra.mxu0 %v370
    %408 = vmatprep.subr.mxu0 0.0
    %409 = vmatpush1.msra.mxu0 %v371
    %410 = vmatprep.subr.mxu0 0.0
    %411 = vmatpush1.msra.mxu0 %v372
    %412 = vmatprep.subr.mxu0 0.0
    %413 = vmatpush1.msra.mxu0 0.0
    %414 = vmatprep.subr.mxu0 0.0
    %415 = vmatpush1.msra.mxu0 0.0
    %416 = vmatprep.subr.mxu0 0.0
    %417 = vmatpush1.msra.mxu0 0.0
    %418 = vmatprep.subr.mxu0 0.0
    %419 = vmatpush1.msra.mxu0 0.0
    %420 = vmatprep.subr.mxu0 0.0
    %421 = vmatpush1.msra.mxu0 0.0
    %422 = vmatprep.subr.mxu0 0.0
    %423 = vmatpush1.msra.mxu0 0.0
    %424 = vmatprep.subr.mxu0 0.0
    %425 = vmatpush1.msra.mxu0 0.0
    %426 = vmatprep.subr.mxu0 0.0
    %427 = vmatpush1.msra.mxu0 0.0
    %428 = vmatprep.subr.mxu0 0.0
    %429 = vmatpush1.msra.mxu0 0.0
    %430 = vmatprep.subr.mxu0 0.0
    %431 = vmatpush1.msra.mxu0 0.0
    %432 = vmatprep.subr.mxu0 0.0
    %433 = vmatpush1.msra.mxu0 0.0
    %434 = vmatprep.subr.mxu0 0.0
    %435 = vmatpush1.msra.mxu0 0.0
    %436 = vmatprep.subr.mxu0 0.0
    %437 = vmatpush1.msra.mxu0 0.0
    %438 = vmatprep.subr.mxu0 0.0
    %439 = vmatpush1.msra.mxu0 0.0
    %440 = vmatprep.subr.mxu0 0.0
    %441 = vmatpush1.msra.mxu0 0.0
    %442 = vmatprep.subr.mxu0 0.0
    %443 = vmatpush1.msra.mxu0 0.0
    %444 = vmatprep.mubr.f32.mxu0 0.0
    %445 = vmatmul.mubr.f32.gmra.mrb[0].mxu0 %v356
    %v446 = vpop.f32.mrb[0].mxu0
    %v447 = vadd.f32 %v378, %v446
    %v448 = vpop.f32.mrb[0].mxu0
    %449 = vdwg.mxu0
    %v450 = vld [vmem:[%s7] sm:$0xff]
    %v451 = vld [vmem:[%s7 + $0x8] sm:$0xff]
    %v452 = vld [vmem:[%s7 + $0x10] sm:$0xff]
    %v453 = vld [vmem:[%s7 + $0x18] sm:$0xff]
    %v454 = vld [vmem:[%s7 + $0x20] sm:$0xff]
    %v455 = vld [vmem:[%s7 + $0x28] sm:$0xff]
    %v456 = vld [vmem:[%s7 + $0x30] sm:$0xff]
    %v457 = vld [vmem:[%s7 + $0x38] sm:$0xff]
    %v458 = vld [vmem:[%s7 + $0x40] sm:$0xff]
    %v459 = vld [vmem:[%s7 + $0x48] sm:$0xff]
    %v460 = vld [vmem:[%s7 + $0x50] sm:$0xff]
    %v461 = vld [vmem:[%s7 + $0x58] sm:$0xff]
    %v462 = vld [vmem:[%s7 + $0x60] sm:$0xff]
    %v463 = vld [vmem:[%s7 + $0x68] sm:$0xff]
    %v464 = vld [vmem:[%s7 + $0x70] sm:$0xff]
    %v465 = vld [vmem:[%s7 + $0x78] sm:$0xff]
    %466 = vmatprep.subr.mxu0 0.0
    %467 = vmatpush1.msra.mxu0 %v450
    %468 = vmatprep.subr.mxu0 0.0
    %469 = vmatpush1.msra.mxu0 %v451
    %470 = vmatprep.subr.mxu0 0.0
    %471 = vmatpush1.msra.mxu0 %v452
    %472 = vmatprep.subr.mxu0 0.0
    %473 = vmatpush1.msra.mxu0 %v453
    %474 = vmatprep.subr.mxu0 0.0
    %475 = vmatpush1.msra.mxu0 %v454
    %476 = vmatprep.subr.mxu0 0.0
    %477 = vmatpush1.msra.mxu0 %v455
    %478 = vmatprep.subr.mxu0 0.0
    %479 = vmatpush1.msra.mxu0 %v456
    %480 = vmatprep.subr.mxu0 0.0
    %481 = vmatpush1.msra.mxu0 %v457
    %482 = vmatprep.subr.mxu0 0.0
    %483 = vmatpush1.msra.mxu0 %v458
    %484 = vmatprep.subr.mxu0 0.0
    %485 = vmatpush1.msra.mxu0 %v459
    %486 = vmatprep.subr.mxu0 0.0
    %487 = vmatpush1.msra.mxu0 %v460
    %488 = vmatprep.subr.mxu0 0.0
    %489 = vmatpush1.msra.mxu0 %v461
    %490 = vmatprep.subr.mxu0 0.0
    %491 = vmatpush1.msra.mxu0 %v462
    %492 = vmatprep.subr.mxu0 0.0
    %493 = vmatpush1.msra.mxu0 %v463
    %494 = vmatprep.subr.mxu0 0.0
    %495 = vmatpush1.msra.mxu0 %v464
    %496 = vmatprep.subr.mxu0 0.0
    %497 = vmatpush1.msra.mxu0 %v465
    %498 = vmatprep.subr.mxu0 0.0
    %499 = vmatpush1.msra.mxu0 0.0
    %500 = vmatprep.subr.mxu0 0.0
    %501 = vmatpush1.msra.mxu0 0.0
    %502 = vmatprep.subr.mxu0 0.0
    %503 = vmatpush1.msra.mxu0 0.0
    %504 = vmatprep.subr.mxu0 0.0
    %505 = vmatpush1.msra.mxu0 0.0
    %506 = vmatprep.subr.mxu0 0.0
    %507 = vmatpush1.msra.mxu0 0.0
    %508 = vmatprep.subr.mxu0 0.0
    %509 = vmatpush1.msra.mxu0 0.0
    %510 = vmatprep.subr.mxu0 0.0
    %511 = vmatpush1.msra.mxu0 0.0
    %512 = vmatprep.subr.mxu0 0.0
    %513 = vmatpush1.msra.mxu0 0.0
    %514 = vmatprep.subr.mxu0 0.0
    %515 = vmatpush1.msra.mxu0 0.0
    %516 = vmatprep.subr.mxu0 0.0
    %517 = vmatpush1.msra.mxu0 0.0
    %518 = vmatprep.subr.mxu0 0.0
    %519 = vmatpush1.msra.mxu0 0.0
    %520 = vmatprep.subr.mxu0 0.0
    %521 = vmatpush1.msra.mxu0 0.0
    %522 = vmatprep.subr.mxu0 0.0
    %523 = vmatpush1.msra.mxu0 0.0
    %524 = vmatprep.subr.mxu0 0.0
    %525 = vmatpush1.msra.mxu0 0.0
    %526 = vmatprep.subr.mxu0 0.0
    %527 = vmatpush1.msra.mxu0 0.0
    %528 = vmatprep.subr.mxu0 0.0
    %529 = vmatpush1.msra.mxu0 0.0
    %530 = vmatprep.mubr.f32.mxu0 0.0
    %531 = vmatmul.mubr.f32.gmra.mrb[0].mxu0 %v355
    %v532 = vpop.f32.mrb[0].mxu0
    %v533 = vadd.f32 0.0, %v532
    %v534 = vpop.f32.mrb[0].mxu0
    %535 = vdwg.mxu0
    %v536 = vadd.f32 %v447, %v533
    %v537 = vld [vmem:[%s9] sm:$0x1]
    %v539 = vlaneseq
    %v540 = vshrl.u32 %v539, 7
    %v541 = vsub.s32 0, %v540
    %v542 = vrot.slane %v537, %v541
    %v544 = vadd.f32 %v536, %v542
    %v545 = vtanh.pop %v544
    %546 = vst [vmem:[#allocation2] sm:$0xff] %v545
    %547 = vst [vmem:[#allocation3] sm:$0xff] %v353
    // Predicated region
    $region38: #{fwd.18} parent=1 // pred_check
      _
    $region39: #{fwd.18} parent=1 // pred_check_branch
      %549 = sbr.rel (0) target = $region41
    $region40: #{fwd.18} parent=1 // pred_region
      // Predicated region
      $region42: #{fwd.18} parent=40 // pred_check
        _
      $region43: #{fwd.18} parent=40 // pred_check_branch
        %551 = sbr.rel (0) target = $region45
      $region44: #{fwd.18} parent=40 // pred_region
        // Predicated region
        $region46: #{fwd.18} parent=44 // pred_check
          _
        $region47: #{fwd.18} parent=44 // pred_check_branch
          %553 = sbr.rel (0) target = $region49
        $region48: #{fwd.18} parent=44 // pred_region
          // Predicated region
          $region61: #{fwd.18} parent=48 // pred_check
            _
          $region62: #{fwd.18} parent=48 // pred_check_branch
            %568 = sbr.rel (0) target = $region64
          $region63: #{fwd.18} parent=48 // pred_region
            loop: start=0, step=1, limit=1
            $region65: #{fwd.18} parent=63 // loop_pre_header
              _
            $region66: #{fwd.18} parent=63 // loop_header
              %s570 = sphi 0, %s574
              %p571 = scmp.ge.s32.totalorder %s570, 1
              %s575 = sphi [#allocation2], [#allocation2]
              %s576 = sphi %s13, %s13
            $region67: #{fwd.18} parent=63 // loop_header_branch
              %573 = sbr.rel (%p571) target = $region71
            $region68: #{fwd.18} parent=63 // loop_body
              %v577 = vld [vmem:[%s575] sm:$0xff]
              %578 = vst [vmem:[%s576] sm:$0xff] %v577
            $region69: #{fwd.18} parent=63 // loop_footer
              %s574 = sadd.s32 1, %s570
            $region70: #{fwd.18} parent=63 // loop_footer_branch
              %569 = sbr.rel target = $region66
            $region71: #{fwd.18} parent=63 // loop_exit
              _
          $region64: #{fwd.18} parent=48 // pred_fallthru
            _
          // Predicated region
          $region72: #{fwd.18} parent=48 // pred_check
            _
          $region73: #{fwd.18} parent=48 // pred_check_branch
            %580 = sbr.rel target = $region75
          $region74: #{fwd.18} parent=48 // pred_region
            _
          $region75: #{fwd.18} parent=48 // pred_fallthru
            _
        $region49: #{fwd.18} parent=44 // pred_fallthru
          _
        // Predicated region
        $region50: #{fwd.18} parent=44 // pred_check
          _
        $region51: #{fwd.18} parent=44 // pred_check_branch
          %555 = sbr.rel target = $region53
        $region52: #{fwd.18} parent=44 // pred_region
          loop: start=0, step=1, limit=1
          $region54: #{fwd.18} parent=52 // loop_pre_header
            _
          $region55: #{fwd.18} parent=52 // loop_header
            %s558 = sphi 0, %s562
            %p559 = scmp.ge.s32.totalorder %s558, 1
            %s563 = sphi [#allocation2], [#allocation2]
            %s564 = sphi %s13, %s13
          $region56: #{fwd.18} parent=52 // loop_header_branch
            %561 = sbr.rel (%p559) target = $region60
          $region57: #{fwd.18} parent=52 // loop_body
            %v565 = vld [vmem:[%s563] sm:$0xff]
            %566 = vst [vmem:[%s564] sm:$0xff] %v565
          $region58: #{fwd.18} parent=52 // loop_footer
            %s562 = sadd.s32 1, %s558
          $region59: #{fwd.18} parent=52 // loop_footer_branch
            %557 = sbr.rel target = $region55
          $region60: #{fwd.18} parent=52 // loop_exit
            _
        $region53: #{fwd.18} parent=44 // pred_fallthru
          _
      $region45: #{fwd.18} parent=40 // pred_fallthru
        _
      %581 = vnop
    $region41: #{fwd.18} parent=1 // pred_fallthru
      _
    // Predicated region
    $region76: #{fwd.18} parent=1 // pred_check
      _
    $region77: #{fwd.18} parent=1 // pred_check_branch
      %583 = sbr.rel (0) target = $region79
    $region78: #{fwd.18} parent=1 // pred_region
      %s585 = ssub.s32 128, 128
      %586 = vsyncadd [#allocation4], %s585
      %s588 = sshll.u32 [#allocation3], 4
      %s589 = int_to_ptr.vmem [resolvable:$true] %s588
      %591 = dma.vmem_to_hbm [thread:$0]  %s589, 128, %s11, [#allocation4]
    $region79: #{fwd.18} parent=1 // pred_fallthru
      _
    // Predicated region
    $region80: #{fwd.18} parent=1 // pred_check
      _
    $region81: #{fwd.18} parent=1 // pred_check_branch
      %593 = sbr.rel (0) target = $region83
    $region82: #{fwd.18} parent=1 // pred_region
      _
    $region83: #{fwd.18} parent=1 // pred_fallthru
      _
    // Predicated region
    $region84: #{fwd.18} parent=1 // pred_check
      _
    $region85: #{fwd.18} parent=1 // pred_check_branch
      %595 = sbr.rel (0) target = $region87
    $region86: #{fwd.18} parent=1 // pred_region
      %596 = dma.done [#allocation4], 128
    $region87: #{fwd.18} parent=1 // pred_fallthru
      _
    %597 = vsyncpa [#allocation4], 1

// kernel: fwd.17
$region0: #{fwd.17}
  #allocation0 [shape = 'u32[]', space=smem, size = 0x4, offset = 0x4, fixed_abs, tag = 'smem constant byte address 0x4 - core index']
  #allocation1 [shape = 'u32[144,128]{1,0:T(1,128)}', space=vmem, size = 0x12000, scoped, tag = 'internal scratch']
  #allocation2 [shape = 'f32[48,128]{1,0:T(8,128)}', space=vmem, size = 0x6000, scoped, tag = 'scratch operand']
  %s0 = inlined_call_operand.vmem [shape: f32[48,128], index: 0, kind: input, shape index: {}]
  %s1 = inlined_call_operand.vmem [shape: f32[128,256], index: 1, kind: input, shape index: {}]
  %s2 = inlined_call_operand.vmem [shape: f32[1,256], index: 2, kind: input, shape index: {}]
  %s3 = inlined_call_operand.hbm [shape: f32[48,256], index: 3, kind: output, shape index: {}]
  %s4 = sld [smem:[#allocation0]]
  $region91: #{fwd.17} parent=0
    _
  %s6 = ssub.s32 1, %s4
  %s7 = scalar_select 0, %s6, %s4
  $region1: #{fwd.17} parent=0
    #allocation3 [shape = 'u8[131072]{0}', space=vmem, size = 0x20000, scoped, tag = 'input window, operand 1']
    #allocation4 [shape = 'u8[49152]{0}', space=vmem, size = 0xc000, scoped, tag = 'output window, operand 0']
    #allocation5 [shape = 's32[2]{0}', space=sflag, size = 0x8, scoped, tag = 'scoped memory for fwd.17']
    %8 = vsyncpa [#allocation5], 0
    %s9 = scalar_lea.sflag [#allocation5], 1
    %10 = vsyncpa %s9, 0
    loop: start=0, step=1, limit=4
    $region2: #{fwd.17} parent=1 // loop_pre_header
      _
    $region3: #{fwd.17} parent=1 // loop_header
      %s12 = sphi 0, %s16
      %p13 = scmp.ge.s32.totalorder %s12, 4
      %s19 = sphi 0, %s38
      %s20 = sphi 0, %s34
      %s21 = sphi 0, %s30
      %s22 = sphi 0, %s19
      %s23 = sphi 0, %s20
      %s24 = sphi 0, %s21
      %s25 = sphi 0, %s22
      %s26 = sphi 0, %s23
      %s27 = sphi 0, %s24
      %s43 = sphi 0, %s45
      %s46 = sphi 0, %s43
      %s47 = sphi 0, %s46
      %s63 = sphi 0, %s47
      %s71 = sphi 0, %s73
      %s74 = sphi 0, %s71
      %s75 = sphi 0, %s74
      %s91 = sphi 0, %s75
      %s97 = sphi 0, %s99
      %s100 = sphi 0, %s97
      %s101 = sphi 0, %s100
      %s117 = sphi 0, %s101
      %s125 = sphi 0, %s127
      %s128 = sphi 0, %s125
      %s129 = sphi 0, %s128
      %s145 = sphi 0, %s129
    $region4: #{fwd.17} parent=1 // loop_header_branch
      %15 = sbr.rel (%p13) target = $region8
    $region5: #{fwd.17} parent=1 // loop_body
      %s17 = ssub.s32 %s12, 1
      %s18 = ssub.s32 %s12, 2
      %s28 = sadd.s32 1, %s21
      %p29 = scmp.ge.s32.totalorder %s28, 1
      %s30 = scalar_select %p29, 0, %s28
      %s31 = sadd.s32 1, %s20
      %s32 = scalar_select %p29, %s31, %s20
      %p33 = scmp.ge.s32.totalorder %s32, 2
      %s34 = scalar_select %p33, 0, %s32
      %s35 = sadd.s32 1, %s19
      %s36 = scalar_select %p33, %s35, %s19
      %p37 = scmp.ge.s32.totalorder %s36, 1
      %s38 = scalar_select %p37, 0, %s36
      %s39 = ssub.s32 %s19, %s38
      %s40 = ssub.s32 %s21, %s30
      %s41 = sor.u32 %s39, %s40
      %p42 = scmp.eq.s32.totalorder %s41, 0
      %s44 = sadd.s32 %s43, 1
      %s45 = scalar_select %p42, %s43, %s44
      %p48 = pneg %p42
      %p49 = scmp.eq.s32.totalorder %s12, 1
      %p50 = por %p48, %p49
      %p51 = scmp.ne.s32.totalorder %s43, %s46
      %p52 = scmp.eq.s32.totalorder %s12, 0
      %p53 = por %p51, %p52
      %p54 = scmp.ne.s32.totalorder %s43, %s46
      %p55 = scmp.eq.s32.totalorder %s17, 1
      %p56 = por %p54, %p55
      %p57 = scmp.ne.s32.totalorder %s46, %s47
      %p58 = scmp.eq.s32.totalorder %s17, 0
      %p59 = por %p57, %p58
      %p60 = scmp.ne.s32.totalorder %s46, %s47
      %p61 = scmp.eq.s32.totalorder %s18, 1
      %p62 = por %p60, %p61
      %p64 = scmp.ne.s32.totalorder %s47, %s63
      %p65 = scmp.eq.s32.totalorder %s18, 0
      %p66 = por %p64, %p65
      %s67 = ssub.s32 %s21, %s30
      %s68 = ssub.s32 %s20, %s34
      %s69 = sor.u32 %s67, %s68
      %p70 = scmp.eq.s32.totalorder %s69, 0
      %s72 = sadd.s32 %s71, 1
      %s73 = scalar_select %p70, %s71, %s72
      %p76 = pneg %p70
      %p77 = scmp.eq.s32.totalorder %s12, 1
      %p78 = por %p76, %p77
      %p79 = scmp.ne.s32.totalorder %s71, %s74
      %p80 = scmp.eq.s32.totalorder %s12, 0
      %p81 = por %p79, %p80
      %p82 = scmp.ne.s32.totalorder %s71, %s74
      %p83 = scmp.eq.s32.totalorder %s17, 1
      %p84 = por %p82, %p83
      %p85 = scmp.ne.s32.totalorder %s74, %s75
      %p86 = scmp.eq.s32.totalorder %s17, 0
      %p87 = por %p85, %p86
      %p88 = scmp.ne.s32.totalorder %s74, %s75
      %p89 = scmp.eq.s32.totalorder %s18, 1
      %p90 = por %p88, %p89
      %p92 = scmp.ne.s32.totalorder %s75, %s91
      %p93 = scmp.eq.s32.totalorder %s18, 0
      %p94 = por %p92, %p93
      %s95 = ssub.s32 %s20, %s34
      %p96 = scmp.eq.s32.totalorder %s95, 0
      %s98 = sadd.s32 %s97, 1
      %s99 = scalar_select %p96, %s97, %s98
      %p102 = pneg %p96
      %p103 = scmp.eq.s32.totalorder %s12, 1
      %p104 = por %p102, %p103
      %p105 = scmp.ne.s32.totalorder %s97, %s100
      %p106 = scmp.eq.s32.totalorder %s12, 0
      %p107 = por %p105, %p106
      %p108 = scmp.ne.s32.totalorder %s97, %s100
      %p109 = scmp.eq.s32.totalorder %s17, 1
      %p110 = por %p108, %p109
      %p111 = scmp.ne.s32.totalorder %s100, %s101
      %p112 = scmp.eq.s32.totalorder %s17, 0
      %p113 = por %p111, %p112
      %p114 = scmp.ne.s32.totalorder %s100, %s101
      %p115 = scmp.eq.s32.totalorder %s18, 1
      %p116 = por %p114, %p115
      %p118 = scmp.ne.s32.totalorder %s101, %s117
      %p119 = scmp.eq.s32.totalorder %s18, 0
      %p120 = por %p118, %p119
      %s121 = ssub.s32 %s19, %s38
      %s122 = ssub.s32 %s20, %s34
      %s123 = sor.u32 %s121, %s122
      %p124 = scmp.eq.s32.totalorder %s123, 0
      %s126 = sadd.s32 %s125, 1
      %s127 = scalar_select %p124, %s125, %s126
      %p130 = pneg %p124
      %p131 = scmp.eq.s32.totalorder %s12, 1
      %p132 = por %p130, %p131
      %p133 = scmp.ne.s32.totalorder %s125, %s128
      %p134 = scmp.eq.s32.totalorder %s12, 0
      %p135 = por %p133, %p134
      %p136 = scmp.ne.s32.totalorder %s125, %s128
      %p137 = scmp.eq.s32.totalorder %s17, 1
      %p138 = por %p136, %p137
      %p139 = scmp.ne.s32.totalorder %s128, %s129
      %p140 = scmp.eq.s32.totalorder %s17, 0
      %p141 = por %p139, %p140
      %p142 = scmp.ne.s32.totalorder %s128, %s129
      %p143 = scmp.eq.s32.totalorder %s18, 1
      %p144 = por %p142, %p143
      %p146 = scmp.ne.s32.totalorder %s129, %s145
      %p147 = scmp.eq.s32.totalorder %s18, 0
      %p148 = por %p146, %p147
      %p149 = scmp.le.s32.totalorder 1, %s12
      %p150 = scmp.lt.s32.totalorder %s12, 3
      %p151 = pnand %p149, %p150
      %p152 = pneg %p151
      // Predicated region
      $region9: #{fwd.17} parent=5 // pred_check
        _
      $region10: #{fwd.17} parent=5 // pred_check_branch
        %154 = sbr.rel (%p151) target = $region12
      $region11: #{fwd.17} parent=5 // pred_region
        %s155 = ssub.s32 %s12, 1
        // Predicated region
        $region13: #{fwd.17} parent=11 // pred_check
          %p156 = pneg %p59
        $region14: #{fwd.17} parent=11 // pred_check_branch
          %158 = sbr.rel (%p156) target = $region16
        $region15: #{fwd.17} parent=11 // pred_region
          %s159 = smul.u32 6, %s22
          %p160 = scmp.lt.s32.totalorder %s159, 5
          %s161 = scalar_select %p160, %s159, 5
          %p162 = scmp.lt.s32.totalorder %s24, 0
          %s163 = scalar_select %p162, %s24, 0
          %s164 = sadd.s32 %s163, %s161
          %s165 = smul.addr %s164, 8
          %s166 = scalar_lea.vmem %s0, %s165
          %s167 = smul.u32 6, %s22
        $region16: #{fwd.17} parent=11 // pred_fallthru
          _
      $region12: #{fwd.17} parent=5 // pred_fallthru
        _
      %p168 = scmp.lt.s32.totalorder %s12, 2
      // Predicated region
      $region17: #{fwd.17} parent=5 // pred_check
        %p169 = pneg %p168
      $region18: #{fwd.17} parent=5 // pred_check_branch
        %171 = sbr.rel (%p169) target = $region20
      $region19: #{fwd.17} parent=5 // pred_region
        // Predicated region
        $region21: #{fwd.17} parent=19 // pred_check
          %p172 = pneg %p81
        $region22: #{fwd.17} parent=19 // pred_check_branch
          %174 = sbr.rel (%p172) target = $region24
        $region23: #{fwd.17} parent=19 // pred_region
          %s175 = sand.u32 %s71, 1
          %s176 = sand.u32 %s71, 1
          %s177 = smul.addr %s176, 128
          %s178 = scalar_lea.vmem [#allocation3], %s177
          %s179 = smul.u32 16, %s21
          %s180 = smul.addr %s179, 2
          %s181 = sadd.s32 %s20, %s180
          %s182 = smul.addr %s181, 8
          %s183 = scalar_lea.vmem %s1, %s182
          // Predicated region
          $region25: #{fwd.17} parent=23 // pred_check
            _
          $region26: #{fwd.17} parent=23 // pred_check_branch
            %185 = sbr.rel (0) target = $region28
          $region27: #{fwd.17} parent=23 // pred_region
            // Predicated region
            $region29: #{fwd.17} parent=27 // pred_check
              _
            $region30: #{fwd.17} parent=27 // pred_check_branch
              %187 = sbr.rel (0) target = $region32
            $region31: #{fwd.17} parent=27 // pred_region
              // Predicated region
              $region44: #{fwd.17} parent=31 // pred_check
                _
              $region45: #{fwd.17} parent=31 // pred_check_branch
                %232 = sbr.rel (0) target = $region47
              $region46: #{fwd.17} parent=31 // pred_region
                loop: start=0, step=1, limit=1
                $region48: #{fwd.17} parent=46 // loop_pre_header
                  _
                $region49: #{fwd.17} parent=46 // loop_header
                  %s234 = sphi 0, %s238
                  %p235 = scmp.ge.s32.totalorder %s234, 1
                  %s239 = sphi %s183, %s183
                  %s240 = sphi %s178, %s178
                $region50: #{fwd.17} parent=46 // loop_header_branch
                  %237 = sbr.rel (%p235) target = $region54
                $region51: #{fwd.17} parent=46 // loop_body
                  %v241 = vld [vmem:[%s239] sm:$0xff]
                  %242 = vst [vmem:[%s240] sm:$0xff] %v241
                  %v243 = vld [vmem:[%s239 + $0x10] sm:$0xff]
                  %244 = vst [vmem:[%s240 + $0x8] sm:$0xff] %v243
                  %v245 = vld [vmem:[%s239 + $0x20] sm:$0xff]
                  %246 = vst [vmem:[%s240 + $0x10] sm:$0xff] %v245
                  %v247 = vld [vmem:[%s239 + $0x30] sm:$0xff]
                  %248 = vst [vmem:[%s240 + $0x18] sm:$0xff] %v247
                  %v249 = vld [vmem:[%s239 + $0x40] sm:$0xff]
                  %250 = vst [vmem:[%s240 + $0x20] sm:$0xff] %v249
                  %v251 = vld [vmem:[%s239 + $0x50] sm:$0xff]
                  %252 = vst [vmem:[%s240 + $0x28] sm:$0xff] %v251
                  %v253 = vld [vmem:[%s239 + $0x60] sm:$0xff]
                  %254 = vst [vmem:[%s240 + $0x30] sm:$0xff] %v253
                  %v255 = vld [vmem:[%s239 + $0x70] sm:$0xff]
                  %256 = vst [vmem:[%s240 + $0x38] sm:$0xff] %v255
                  %v257 = vld [vmem:[%s239 + $0x80] sm:$0xff]
                  %258 = vst [vmem:[%s240 + $0x40] sm:$0xff] %v257
                  %v259 = vld [vmem:[%s239 + $0x90] sm:$0xff]
                  %260 = vst [vmem:[%s240 + $0x48] sm:$0xff] %v259
                  %v261 = vld [vmem:[%s239 + $0xa0] sm:$0xff]
                  %262 = vst [vmem:[%s240 + $0x50] sm:$0xff] %v261
                  %v263 = vld [vmem:[%s239 + $0xb0] sm:$0xff]
                  %264 = vst [vmem:[%s240 + $0x58] sm:$0xff] %v263
                  %v265 = vld [vmem:[%s239 + $0xc0] sm:$0xff]
                  %266 = vst [vmem:[%s240 + $0x60] sm:$0xff] %v265
                  %v267 = vld [vmem:[%s239 + $0xd0] sm:$0xff]
                  %268 = vst [vmem:[%s240 + $0x68] sm:$0xff] %v267
                  %v269 = vld [vmem:[%s239 + $0xe0] sm:$0xff]
                  %270 = vst [vmem:[%s240 + $0x70] sm:$0xff] %v269
                  %v271 = vld [vmem:[%s239 + $0xf0] sm:$0xff]
                  %272 = vst [vmem:[%s240 + $0x78] sm:$0xff] %v271
                $region52: #{fwd.17} parent=46 // loop_footer
                  %s238 = sadd.s32 1, %s234
                $region53: #{fwd.17} parent=46 // loop_footer_branch
                  %233 = sbr.rel target = $region49
                $region54: #{fwd.17} parent=46 // loop_exit
                  _
              $region47: #{fwd.17} parent=31 // pred_fallthru
                _
              // Predicated region
              $region55: #{fwd.17} parent=31 // pred_check
                _
              $region56: #{fwd.17} parent=31 // pred_check_branch
                %274 = sbr.rel target = $region58
              $region57: #{fwd.17} parent=31 // pred_region
                _
              $region58: #{fwd.17} parent=31 // pred_fallthru
                _
            $region32: #{fwd.17} parent=27 // pred_fallthru
              _
            // Predicated region
            $region33: #{fwd.17} parent=27 // pred_check
              _
            $region34: #{fwd.17} parent=27 // pred_check_branch
              %189 = sbr.rel target = $region36
            $region35: #{fwd.17} parent=27 // pred_region
              loop: start=0, step=1, limit=1
              $region37: #{fwd.17} parent=35 // loop_pre_header
                _
              $region38: #{fwd.17} parent=35 // loop_header
                %s192 = sphi 0, %s196
                %p193 = scmp.ge.s32.totalorder %s192, 1
                %s197 = sphi %s183, %s183
                %s198 = sphi %s178, %s178
              $region39: #{fwd.17} parent=35 // loop_header_branch
                %195 = sbr.rel (%p193) target = $region43
              $region40: #{fwd.17} parent=35 // loop_body
                %v199 = vld [vmem:[%s197] sm:$0xff]
                %200 = vst [vmem:[%s198] sm:$0xff] %v199
                %v201 = vld [vmem:[%s197 + $0x10] sm:$0xff]
                %202 = vst [vmem:[%s198 + $0x8] sm:$0xff] %v201
                %v203 = vld [vmem:[%s197 + $0x20] sm:$0xff]
                %204 = vst [vmem:[%s198 + $0x10] sm:$0xff] %v203
                %v205 = vld [vmem:[%s197 + $0x30] sm:$0xff]
                %206 = vst [vmem:[%s198 + $0x18] sm:$0xff] %v205
                %v207 = vld [vmem:[%s197 + $0x40] sm:$0xff]
                %208 = vst [vmem:[%s198 + $0x20] sm:$0xff] %v207
                %v209 = vld [vmem:[%s197 + $0x50] sm:$0xff]
                %210 = vst [vmem:[%s198 + $0x28] sm:$0xff] %v209
                %v211 = vld [vmem:[%s197 + $0x60] sm:$0xff]
                %212 = vst [vmem:[%s198 + $0x30] sm:$0xff] %v211
                %v213 = vld [vmem:[%s197 + $0x70] sm:$0xff]
                %214 = vst [vmem:[%s198 + $0x38] sm:$0xff] %v213
                %v215 = vld [vmem:[%s197 + $0x80] sm:$0xff]
                %216 = vst [vmem:[%s198 + $0x40] sm:$0xff] %v215
                %v217 = vld [vmem:[%s197 + $0x90] sm:$0xff]
                %218 = vst [vmem:[%s198 + $0x48] sm:$0xff] %v217
                %v219 = vld [vmem:[%s197 + $0xa0] sm:$0xff]
                %220 = vst [vmem:[%s198 + $0x50] sm:$0xff] %v219
                %v221 = vld [vmem:[%s197 + $0xb0] sm:$0xff]
                %222 = vst [vmem:[%s198 + $0x58] sm:$0xff] %v221
                %v223 = vld [vmem:[%s197 + $0xc0] sm:$0xff]
                %224 = vst [vmem:[%s198 + $0x60] sm:$0xff] %v223
                %v225 = vld [vmem:[%s197 + $0xd0] sm:$0xff]
                %226 = vst [vmem:[%s198 + $0x68] sm:$0xff] %v225
                %v227 = vld [vmem:[%s197 + $0xe0] sm:$0xff]
                %228 = vst [vmem:[%s198 + $0x70] sm:$0xff] %v227
                %v229 = vld [vmem:[%s197 + $0xf0] sm:$0xff]
                %230 = vst [vmem:[%s198 + $0x78] sm:$0xff] %v229
              $region41: #{fwd.17} parent=35 // loop_footer
                %s196 = sadd.s32 1, %s192
              $region42: #{fwd.17} parent=35 // loop_footer_branch
                %191 = sbr.rel target = $region38
              $region43: #{fwd.17} parent=35 // loop_exit
                _
            $region36: #{fwd.17} parent=27 // pred_fallthru
              _
          $region28: #{fwd.17} parent=23 // pred_fallthru
            _
          %275 = vnop
        $region24: #{fwd.17} parent=19 // pred_fallthru
          _
        // Predicated region
        $region59: #{fwd.17} parent=19 // pred_check
          %p276 = pneg %p107
        $region60: #{fwd.17} parent=19 // pred_check_branch
          %278 = sbr.rel (%p276) target = $region62
        $region61: #{fwd.17} parent=19 // pred_region
          %p279 = scmp.lt.s32.totalorder %s20, 1
          %s280 = scalar_select %p279, %s20, 1
          %s281 = scalar_lea.vmem %s2, %s280
        $region62: #{fwd.17} parent=19 // pred_fallthru
          _
      $region20: #{fwd.17} parent=5 // pred_fallthru
        _
      %p282 = scmp.le.s32.totalorder 1, %s12
      %p283 = scmp.lt.s32.totalorder %s12, 3
      %p284 = pnand %p282, %p283
      %p285 = pneg %p284
      // Predicated region
      $region63: #{fwd.17} parent=5 // pred_check
        _
      $region64: #{fwd.17} parent=5 // pred_check_branch
        %287 = sbr.rel (%p284) target = $region66
      $region65: #{fwd.17} parent=5 // pred_region
        %s288 = ssub.s32 %s12, 1
        %s289 = sand.u32 %s74, 1
        %s290 = sand.u32 %s74, 1
        %s291 = smul.addr %s290, 128
        %s292 = scalar_lea.vmem [#allocation3], %s291
        // Predicated region
        $region67: #{fwd.17} parent=65 // pred_check
          %p293 = pneg %p87
        $region68: #{fwd.17} parent=65 // pred_check_branch
          %295 = sbr.rel (%p293) target = $region70
        $region69: #{fwd.17} parent=65 // pred_region
          _
        $region70: #{fwd.17} parent=65 // pred_fallthru
          _
        %s296 = smul.u32 6, %s22
        %p297 = scmp.lt.s32.totalorder %s296, 5
        %s298 = scalar_select %p297, %s296, 5
        %p299 = scmp.lt.s32.totalorder %s24, 0
        %s300 = scalar_select %p299, %s24, 0
        %s301 = sadd.s32 %s300, %s298
        %s302 = smul.addr %s301, 8
        %s303 = scalar_lea.vmem %s0, %s302
        %p304 = pneg %p59
        %p305 = pneg %p56
        %s306 = sand.u32 %s74, 1
        %s307 = sand.u32 %s74, 1
        %s308 = smul.addr %s307, 128
        %s309 = scalar_lea.vmem [#allocation3], %s308
        %p310 = pneg %p87
        %p311 = pneg %p84
        %p312 = scmp.lt.s32.totalorder %s23, 1
        %s313 = scalar_select %p312, %s23, 1
        %s314 = scalar_lea.vmem %s2, %s313
        %p315 = pneg %p113
        %p316 = pneg %p110
        %p317 = pneg %p141
        %p318 = pneg %p138
        %s319 = sand.u32 %s128, 1
        %s320 = scalar_lea.sflag [#allocation5], %s319
        %s321 = sand.u32 %s128, 1
        %s322 = smul.addr %s321, 48
        %s323 = scalar_lea.vmem [#allocation4], %s322
        %s324 = smul.u32 6, %s22
        %p325 = scmp.lt.s32.totalorder %s324, 5
        %s326 = scalar_select %p325, %s324, 5
        %p327 = scmp.lt.s32.totalorder %s24, 0
        %s328 = scalar_select %p327, %s24, 0
        %s329 = sadd.s32 %s328, %s326
        %s330 = smul.addr %s329, 8
        %s331 = scalar_lea.vmem %s0, %s330
        %s332 = smul.u32 6, %s22
        %s333 = smul.u32 16, %s24
        %p334 = scmp.lt.s32.totalorder %s23, 1
        %s335 = scalar_select %p334, %s23, 1
        %s336 = scalar_lea.vmem %s2, %s335
        %s337 = smul.u32 6, %s22
        %p338 = scmp.eq.s32.totalorder %s24, 0
        // Predicated region
        $region71: #{fwd.17} parent=65 // pred_check
          %p339 = pneg %p338
        $region72: #{fwd.17} parent=65 // pred_check_branch
          %341 = sbr.rel (%p339) target = $region74
        $region73: #{fwd.17} parent=65 // pred_region
          %342 = vst [vmem:[#allocation2] sm:$0xff] 0.0
          %343 = vst [vmem:[#allocation2 + $0x8] sm:$0xff] 0.0
          %344 = vst [vmem:[#allocation2 + $0x10] sm:$0xff] 0.0
          %345 = vst [vmem:[#allocation2 + $0x18] sm:$0xff] 0.0
          %346 = vst [vmem:[#allocation2 + $0x20] sm:$0xff] 0.0
          %347 = vst [vmem:[#allocation2 + $0x28] sm:$0xff] 0.0
        $region74: #{fwd.17} parent=65 // pred_fallthru
          _
        %v348 = vld [vmem:[#allocation2] sm:$0xff]
        %v349 = vld [vmem:[#allocation2 + $0x8] sm:$0xff]
        %v350 = vld [vmem:[#allocation2 + $0x10] sm:$0xff]
        %v351 = vld [vmem:[#allocation2 + $0x18] sm:$0xff]
        %v352 = vld [vmem:[#allocation2 + $0x20] sm:$0xff]
        %v353 = vld [vmem:[#allocation2 + $0x28] sm:$0xff]
        %v354 = vld [vmem:[%s331] sm:$0xff]
        %v355 = vld [vmem:[%s331 + $0x8] sm:$0xff]
        %v356 = vld [vmem:[%s331 + $0x10] sm:$0xff]
        %v357 = vld [vmem:[%s331 + $0x18] sm:$0xff]
        %v358 = vld [vmem:[%s331 + $0x20] sm:$0xff]
        %v359 = vld [vmem:[%s331 + $0x28] sm:$0xff]
        %v360 = vld [vmem:[%s292] sm:$0xff]
        %v361 = vld [vmem:[%s292 + $0x8] sm:$0xff]
        %v362 = vld [vmem:[%s292 + $0x10] sm:$0xff]
        %v363 = vld [vmem:[%s292 + $0x18] sm:$0xff]
        %v364 = vld [vmem:[%s292 + $0x20] sm:$0xff]
        %v365 = vld [vmem:[%s292 + $0x28] sm:$0xff]
        %v366 = vld [vmem:[%s292 + $0x30] sm:$0xff]
        %v367 = vld [vmem:[%s292 + $0x38] sm:$0xff]
        %v368 = vld [vmem:[%s292 + $0x40] sm:$0xff]
        %v369 = vld [vmem:[%s292 + $0x48] sm:$0xff]
        %v370 = vld [vmem:[%s292 + $0x50] sm:$0xff]
        %v371 = vld [vmem:[%s292 + $0x58] sm:$0xff]
        %v372 = vld [vmem:[%s292 + $0x60] sm:$0xff]
        %v373 = vld [vmem:[%s292 + $0x68] sm:$0xff]
        %v374 = vld [vmem:[%s292 + $0x70] sm:$0xff]
        %v375 = vld [vmem:[%s292 + $0x78] sm:$0xff]
        %376 = vmatprep.subr.mxu0 0.0
        %377 = vmatpush1.msra.mxu0 %v360
        %378 = vmatprep.subr.mxu0 0.0
        %379 = vmatpush1.msra.mxu0 %v361
        %380 = vmatprep.subr.mxu0 0.0
        %381 = vmatpush1.msra.mxu0 %v362
        %382 = vmatprep.subr.mxu0 0.0
        %383 = vmatpush1.msra.mxu0 %v363
        %384 = vmatprep.subr.mxu0 0.0
        %385 = vmatpush1.msra.mxu0 %v364
        %386 = vmatprep.subr.mxu0 0.0
        %387 = vmatpush1.msra.mxu0 %v365
        %388 = vmatprep.subr.mxu0 0.0
        %389 = vmatpush1.msra.mxu0 %v366
        %390 = vmatprep.subr.mxu0 0.0
        %391 = vmatpush1.msra.mxu0 %v367
        %392 = vmatprep.subr.mxu0 0.0
        %393 = vmatpush1.msra.mxu0 %v368
        %394 = vmatprep.subr.mxu0 0.0
        %395 = vmatpush1.msra.mxu0 %v369
        %396 = vmatprep.subr.mxu0 0.0
        %397 = vmatpush1.msra.mxu0 %v370
        %398 = vmatprep.subr.mxu0 0.0
        %399 = vmatpush1.msra.mxu0 %v371
        %400 = vmatprep.subr.mxu0 0.0
        %401 = vmatpush1.msra.mxu0 %v372
        %402 = vmatprep.subr.mxu0 0.0
        %403 = vmatpush1.msra.mxu0 %v373
        %404 = vmatprep.subr.mxu0 0.0
        %405 = vmatpush1.msra.mxu0 %v374
        %406 = vmatprep.subr.mxu0 0.0
        %407 = vmatpush1.msra.mxu0 %v375
        %408 = vmatprep.subr.mxu0 0.0
        %409 = vmatpush1.msra.mxu0 0.0
        %410 = vmatprep.subr.mxu0 0.0
        %411 = vmatpush1.msra.mxu0 0.0
        %412 = vmatprep.subr.mxu0 0.0
        %413 = vmatpush1.msra.mxu0 0.0
        %414 = vmatprep.subr.mxu0 0.0
        %415 = vmatpush1.msra.mxu0 0.0
        %416 = vmatprep.subr.mxu0 0.0
        %417 = vmatpush1.msra.mxu0 0.0
        %418 = vmatprep.subr.mxu0 0.0
        %419 = vmatpush1.msra.mxu0 0.0
        %420 = vmatprep.subr.mxu0 0.0
        %421 = vmatpush1.msra.mxu0 0.0
        %422 = vmatprep.subr.mxu0 0.0
        %423 = vmatpush1.msra.mxu0 0.0
        %424 = vmatprep.subr.mxu0 0.0
        %425 = vmatpush1.msra.mxu0 0.0
        %426 = vmatprep.subr.mxu0 0.0
        %427 = vmatpush1.msra.mxu0 0.0
        %428 = vmatprep.subr.mxu0 0.0
        %429 = vmatpush1.msra.mxu0 0.0
        %430 = vmatprep.subr.mxu0 0.0
        %431 = vmatpush1.msra.mxu0 0.0
        %432 = vmatprep.subr.mxu0 0.0
        %433 = vmatpush1.msra.mxu0 0.0
        %434 = vmatprep.subr.mxu0 0.0
        %435 = vmatpush1.msra.mxu0 0.0
        %436 = vmatprep.subr.mxu0 0.0
        %437 = vmatpush1.msra.mxu0 0.0
        %438 = vmatprep.subr.mxu0 0.0
        %439 = vmatpush1.msra.mxu0 0.0
        %440 = vmatprep.mubr.f32.mxu0 0.0
        %441 = vmatmul.mubr.f32.gmra.mrb[0].mxu0 %v354
        %v442 = vpop.f32.mrb[0].mxu0
        %v443 = vadd.f32 0.0, %v442
        %v444 = vpop.f32.mrb[0].mxu0
        %445 = vmatprep.mubr.f32.mxu0 0.0
        %446 = vmatmul.mubr.f32.gmra.mrb[0].mxu0 %v355
        %v447 = vpop.f32.mrb[0].mxu0
        %v448 = vadd.f32 0.0, %v447
        %v449 = vpop.f32.mrb[0].mxu0
        %450 = vmatprep.mubr.f32.mxu0 0.0
        %451 = vmatmul.mubr.f32.gmra.mrb[0].mxu0 %v356
        %v452 = vpop.f32.mrb[0].mxu0
        %v453 = vadd.f32 0.0, %v452
        %v454 = vpop.f32.mrb[0].mxu0
        %455 = vmatprep.mubr.f32.mxu0 0.0
        %456 = vmatmul.mubr.f32.gmra.mrb[0].mxu0 %v357
        %v457 = vpop.f32.mrb[0].mxu0
        %v458 = vadd.f32 0.0, %v457
        %v459 = vpop.f32.mrb[0].mxu0
        %460 = vmatprep.mubr.f32.mxu0 0.0
        %461 = vmatmul.mubr.f32.gmra.mrb[0].mxu0 %v358
        %v462 = vpop.f32.mrb[0].mxu0
        %v463 = vadd.f32 0.0, %v462
        %v464 = vpop.f32.mrb[0].mxu0
        %465 = vmatprep.mubr.f32.mxu0 0.0
        %466 = vmatmul.mubr.f32.gmra.mrb[0].mxu0 %v359
        %v467 = vpop.f32.mrb[0].mxu0
        %v468 = vadd.f32 0.0, %v467
        %v469 = vpop.f32.mrb[0].mxu0
        %470 = vdwg.mxu0
        %v471 = vadd.f32 %v348, %v443
        %v472 = vadd.f32 %v349, %v448
        %v473 = vadd.f32 %v350, %v453
        %v474 = vadd.f32 %v351, %v458
        %v475 = vadd.f32 %v352, %v463
        %v476 = vadd.f32 %v353, %v468
        %477 = vst [vmem:[#allocation2] sm:$0xff] %v471
        %478 = vst [vmem:[#allocation2 + $0x8] sm:$0xff] %v472
        %479 = vst [vmem:[#allocation2 + $0x10] sm:$0xff] %v473
        %480 = vst [vmem:[#allocation2 + $0x18] sm:$0xff] %v474
        %481 = vst [vmem:[#allocation2 + $0x20] sm:$0xff] %v475
        %482 = vst [vmem:[#allocation2 + $0x28] sm:$0xff] %v476
        // Predicated region
        $region75: #{fwd.17} parent=65 // pred_check
          %p483 = pneg %p338
        $region76: #{fwd.17} parent=65 // pred_check_branch
          %485 = sbr.rel (%p483) target = $region78
        $region77: #{fwd.17} parent=65 // pred_region
          %v486 = vld [vmem:[#allocation2] sm:$0xff]
          %v487 = vld [vmem:[#allocation2 + $0x8] sm:$0xff]
          %v488 = vld [vmem:[#allocation2 + $0x10] sm:$0xff]
          %v489 = vld [vmem:[#allocation2 + $0x18] sm:$0xff]
          %v490 = vld [vmem:[#allocation2 + $0x20] sm:$0xff]
          %v491 = vld [vmem:[#allocation2 + $0x28] sm:$0xff]
          %v492 = vld [vmem:[%s336] sm:$0x1]
          %v494 = vlaneseq
          %v495 = vshrl.u32 %v494, 7
          %v496 = vsub.s32 0, %v495
          %v497 = vrot.slane %v492, %v496
          %v499 = vadd.f32 %v486, %v497
          %v500 = vadd.f32 %v487, %v497
          %v501 = vadd.f32 %v488, %v497
          %v502 = vadd.f32 %v489, %v497
          %v503 = vadd.f32 %v490, %v497
          %v504 = vadd.f32 %v491, %v497
          %505 = vst [vmem:[%s323] sm:$0xff] %v499
          %506 = vst [vmem:[%s323 + $0x8] sm:$0xff] %v500
          %507 = vst [vmem:[%s323 + $0x10] sm:$0xff] %v501
          %508 = vst [vmem:[%s323 + $0x18] sm:$0xff] %v502
          %509 = vst [vmem:[%s323 + $0x20] sm:$0xff] %v503
          %510 = vst [vmem:[%s323 + $0x28] sm:$0xff] %v504
        $region78: #{fwd.17} parent=65 // pred_fallthru
          _
        %s511 = sand.u32 %s128, 1
        %s512 = scalar_lea.sflag [#allocation5], %s511
        %s513 = sand.u32 %s128, 1
        %s514 = smul.addr %s513, 48
        %s515 = scalar_lea.vmem [#allocation4], %s514
        // Predicated region
        $region79: #{fwd.17} parent=65 // pred_check
          %p516 = pneg %p138
        $region80: #{fwd.17} parent=65 // pred_check_branch
          %518 = sbr.rel (%p516) target = $region82
        $region81: #{fwd.17} parent=65 // pred_region
          %s519 = smul.u32 6, %s22
          %s521 = ssub.s32 768, 768
          %522 = vsyncadd %s512, %s521
          %s523 = smul.addr %s519, 2
          %s524 = sadd.s32 %s23, %s523
          %s525 = smul.addr %s524, 128
          %s526 = scalar_lea.hbm %s3, %s525
          %s527 = sshll.u32 %s515, 4
          %s528 = int_to_ptr.vmem [resolvable:$true] %s527
          %533 = dma.vmem_to_hbm [thread:$0]  %s528, 768, %s526, %s512, 128, 256, 8
        $region82: #{fwd.17} parent=65 // pred_fallthru
          _
      $region66: #{fwd.17} parent=5 // pred_fallthru
        _
      %p534 = scmp.le.s32.totalorder 2, %s12
      // Predicated region
      $region83: #{fwd.17} parent=5 // pred_check
        %p535 = pneg %p534
      $region84: #{fwd.17} parent=5 // pred_check_branch
        %537 = sbr.rel (%p535) target = $region86
      $region85: #{fwd.17} parent=5 // pred_region
        %s538 = ssub.s32 %s12, 2
        // Predicated region
        $region87: #{fwd.17} parent=85 // pred_check
          %p539 = pneg %p144
        $region88: #{fwd.17} parent=85 // pred_check_branch
          %541 = sbr.rel (%p539) target = $region90
        $region89: #{fwd.17} parent=85 // pred_region
          %s542 = sand.u32 %s129, 1
          %s543 = scalar_lea.sflag [#allocation5], %s542
          %s544 = sand.u32 %s129, 1
          %s545 = smul.addr %s544, 48
          %s546 = scalar_lea.vmem [#allocation4], %s545
          %547 = dma.done %s543, 768
        $region90: #{fwd.17} parent=85 // pred_fallthru
          _
      $region86: #{fwd.17} parent=5 // pred_fallthru
        _
    $region6: #{fwd.17} parent=1 // loop_footer
      %s16 = sadd.s32 1, %s12
    $region7: #{fwd.17} parent=1 // loop_footer_branch
      %11 = sbr.rel target = $region3
    $region8: #{fwd.17} parent=1 // loop_exit
      _
    %548 = vsyncpa [#allocation5], 1
    %s549 = scalar_lea.sflag [#allocation5], 1
    %550 = vsyncpa %s549, 1

</llo_original>
